<compile_context>
chip_gen: v7x
topology: tpu7x:2x2x1
jax: 0.10.0
libtpu: 0.0.40
codegen_flags: <defaults>
</compile_context>

<pallas_src>
import functools
import math

import jax
import jax.numpy as jnp
from jax.experimental import pallas as pl
from jax.experimental.pallas import tpu as pltpu

# ---- small BERT-like config ----
HIDDEN = 128
NUM_HEADS = 4
HEAD_DIM = HIDDEN // NUM_HEADS
INTERMEDIATE = 256
NUM_LAYERS = 2
VOCAB = 96
MAX_POS = 32
LN_EPS = 1e-12
MASK_NEG = -10000.0
VEC_ROWS_PER_LAYER = 9   # bq, bk, bv, bo, ln1_g, ln1_b, bo2, ln2_g, ln2_b


# -------------------- in-kernel helpers (pure functions on jnp values) --------------------
def _layernorm(h, g, b):
    mu = jnp.mean(h, axis=-1, keepdims=True)
    var = jnp.mean(jnp.square(h - mu), axis=-1, keepdims=True)
    return (h - mu) * jax.lax.rsqrt(var + LN_EPS) * g + b


def _gelu_tanh(y):
    # TODO(synk): HF BERT uses erf-GELU; tanh approximation differs at ~1e-3 per element.
    return 0.5 * y * (1.0 + jnp.tanh(0.7978845608028654 * (y + 0.044715 * y * y * y)))


# -------------------- fused whole-encoder kernel (one grid step = one batch tile) ---------
def _encoder_kernel(emb_ref, mask_ref, wcat_ref, wo2_ref, vec_ref, bi_ref, out_ref,
                    *, num_layers, num_heads, head_dim, b_tile, seq):
    T, H = emb_ref.shape            # T = b_tile * seq token rows, lane-dense H = 128
    I = bi_ref.shape[-1]

    def vrow(i):                    # (1, H) row of the packed bias / LN-param slab
        return vec_ref[i:i + 1, :]

    def bf16_dot(x, w_bf16):        # bf16 MXU operands, f32 accumulation
        return jnp.dot(x.astype(jnp.bfloat16), w_bf16, preferred_element_type=jnp.float32)

    # embedding LayerNorm
    h = _layernorm(emb_ref[...], vrow(0), vrow(1))                       # (T, H) f32

    add_mask = mask_ref[...]                                             # (b_tile, 1, S) f32

    for l in range(num_layers):                                          # static unroll
        base = 2 + l * VEC_ROWS_PER_LAYER
        wl = wcat_ref[l]                                                 # (H, 3H+H+I) bf16

        # --- fused QKV projection; 1/sqrt(d) already folded into the Wq/bq columns ---
        qkv = bf16_dot(h, wl[:, 0:3 * H])                                # (T, 3H) f32
        q = (qkv[:, 0 * H:1 * H] + vrow(base + 0)).astype(jnp.bfloat16)
        k = (qkv[:, 1 * H:2 * H] + vrow(base + 1)).astype(jnp.bfloat16)
        v = (qkv[:, 2 * H:3 * H] + vrow(base + 2)).astype(jnp.bfloat16)

        # (T, H) -> (b_tile, S, H): leading-dim split only, lane dim untouched
        q3 = q.reshape(b_tile, seq, H)
        k3 = k.reshape(b_tile, seq, H)
        v3 = v.reshape(b_tile, seq, H)

        # --- batch-batched attention per head (leading-batch-dim dot_generals) ---
        heads = []
        for hh in range(num_heads):
            sl = slice(hh * head_dim, (hh + 1) * head_dim)
            s = jnp.einsum('bqd,bkd->bqk', q3[:, :, sl], k3[:, :, sl],
                           preferred_element_type=jnp.float32) + add_mask
            s = s - jnp.max(s, axis=-1, keepdims=True)
            p = jnp.exp(s)
            p = p * pl.reciprocal(jnp.sum(p, axis=-1, keepdims=True), approx=True)
            heads.append(jnp.einsum('bqk,bkd->bqd', p.astype(jnp.bfloat16),
                                    v3[:, :, sl], preferred_element_type=jnp.float32))
        ctx = jnp.concatenate(heads, axis=-1).reshape(T, H)              # lane-dense (T, H)

        # --- attention output projection + residual + LayerNorm (fused) ---
        attn_out = bf16_dot(ctx, wl[:, 3 * H:4 * H]) + vrow(base + 3)
        h = _layernorm(attn_out + h, vrow(base + 4), vrow(base + 5))

        # --- FFN: intermediate never leaves VMEM, GELU in f32 ---
        inter = _gelu_tanh(bf16_dot(h, wl[:, 4 * H:4 * H + I]) + bi_ref[l])   # (T, I)
        ffn = bf16_dot(inter, wo2_ref[l]) + vrow(base + 6)
        h = _layernorm(ffn + h, vrow(base + 7), vrow(base + 8))

    out_ref[...] = h


# -------------------- parameters (deterministic, BERT-like init) --------------------
def init_params(key):
    keys = jax.random.split(key, 32)
    ki = iter(keys)

    def w(shape):
        return 0.02 * jax.random.normal(next(ki), shape, jnp.float32)

    scale = 1.0 / math.sqrt(HEAD_DIM)

    params = {
        "word_emb": w((VOCAB, HIDDEN)),
        "pos_emb": w((MAX_POS, HIDDEN)),
        "type_emb": w((2, HIDDEN)),
    }

    vec_rows = [jnp.ones((HIDDEN,), jnp.float32),     # embedding LN gamma
                jnp.zeros((HIDDEN,), jnp.float32)]    # embedding LN beta
    w_cat, wo2, bi = [], [], []
    for _ in range(NUM_LAYERS):
        wq, wk, wv = w((HIDDEN, HIDDEN)), w((HIDDEN, HIDDEN)), w((HIDDEN, HIDDEN))
        bq = jnp.zeros((HIDDEN,), jnp.float32)
        bk = jnp.zeros((HIDDEN,), jnp.float32)
        bv = jnp.zeros((HIDDEN,), jnp.float32)
        wo_l = w((HIDDEN, HIDDEN))
        wi_l = w((HIDDEN, INTERMEDIATE))
        wo2_l = w((INTERMEDIATE, HIDDEN))

        # fold 1/sqrt(head_dim) into the query projection (numerically identical)
        wq = wq * scale
        bq = bq * scale

        w_cat.append(jnp.concatenate([wq, wk, wv, wo_l, wi_l], axis=1))   # (H, 3H+H+I)
        wo2.append(wo2_l)
        bi.append(jnp.zeros((1, INTERMEDIATE), jnp.float32))

        vec_rows += [bq, bk, bv,
                     jnp.zeros((HIDDEN,), jnp.float32),   # bo
                     jnp.ones((HIDDEN,), jnp.float32),    # ln1 gamma
                     jnp.zeros((HIDDEN,), jnp.float32),   # ln1 beta
                     jnp.zeros((HIDDEN,), jnp.float32),   # bo2
                     jnp.ones((HIDDEN,), jnp.float32),    # ln2 gamma
                     jnp.zeros((HIDDEN,), jnp.float32)]   # ln2 beta

    params["stacked"] = {
        "w_cat": jnp.stack(w_cat).astype(jnp.bfloat16),   # (L, H, 3H+H+I) bf16 MXU slab
        "wo2": jnp.stack(wo2).astype(jnp.bfloat16),       # (L, I, H) bf16
        "vecs": jnp.stack(vec_rows),                      # (2 + 9L, H) f32
        "bi": jnp.stack(bi),                              # (L, 1, I) f32
    }
    return params


# -------------------- forward: BerttunedEncoder.forward(x, attention_mask) --------------------
def bert_tuned_encoder_forward(params, x_ids, attention_mask):
    B, S = x_ids.shape
    H, nH, d, L, I = HIDDEN, NUM_HEADS, HEAD_DIM, NUM_LAYERS, INTERMEDIATE

    # 2 batch tiles when B is even (shards across v7x's 2 TensorCores); otherwise fold
    # everything into one tile.  On single-TC v5e/v6e the extra step costs ~0.35us.
    num_tiles = 2 if (B % 2 == 0 and B >= 2) else 1
    b_tile = B // num_tiles
    T = b_tile * S

    # embeddings: word + position + token_type(=0)  (plain-JAX gather glue)
    emb = (jnp.take(params["word_emb"], x_ids, axis=0)
           + params["pos_emb"][:S][None, :, :]
           + params["type_emb"][0][None, None, :]).astype(jnp.float32)   # (B, S, H)
    emb = emb.reshape(num_tiles, T, H)                                   # batch -> rows

    # HF-style additive attention mask, precomputed host-side
    add_mask = ((1.0 - attention_mask.astype(jnp.float32)) * MASK_NEG
                ).reshape(num_tiles, b_tile, 1, S)

    stk = params["stacked"]

    def full_spec(arr):   # grid-invariant weight slab: constant block index -> DMA'd once
        return pl.BlockSpec(arr.shape, lambda i, _n=arr.ndim: (0,) * _n)

    in_specs = [
        pl.BlockSpec((None, T, H), lambda i: (i, 0, 0)),                 # token slab
        pl.BlockSpec((None, b_tile, 1, S), lambda i: (i, 0, 0, 0)),      # additive mask
        full_spec(stk["w_cat"]),                                         # [Wqkv|Wo|Wi] bf16
        full_spec(stk["wo2"]),                                           # Wo2 bf16
        full_spec(stk["vecs"]),                                          # packed biases / LN
        full_spec(stk["bi"]),                                            # FFN bias (256-wide)
    ]

    out = pl.pallas_call(
        functools.partial(_encoder_kernel, num_layers=L, num_heads=nH,
                          head_dim=d, b_tile=b_tile, seq=S),
        grid=(num_tiles,),
        in_specs=in_specs,
        out_specs=pl.BlockSpec((None, T, H), lambda i: (i, 0, 0)),
        out_shape=jax.ShapeDtypeStruct((num_tiles, T, H), jnp.float32),
        compiler_params=pltpu.CompilerParams(
            dimension_semantics=("parallel",),      # batch tiles across v7x's 2 TCs
            vmem_limit_bytes=32 * 1024 * 1024,      # explicit; ~0.6 MB used, safe everywhere
        ),
    )(emb, add_mask, stk["w_cat"], stk["wo2"], stk["vecs"], stk["bi"])

    # BertModel(...).last_hidden_state
    return out.reshape(B, S, H)


if __name__ == "__main__":
    key = jax.random.PRNGKey(0)
    pkey, ikey = jax.random.split(key)
    params = init_params(pkey)

    B, S = 2, 8
    x = jax.random.randint(ikey, (B, S), 0, VOCAB, dtype=jnp.int32)
    attention_mask = jnp.array([[1] * S, [1] * (S - 3) + [0] * 3], dtype=jnp.int32)

    out = jax.jit(bert_tuned_encoder_forward)(params, x, attention_mask)
    out = jax.block_until_ready(out)
    assert out.shape == (B, S, HIDDEN) and out.dtype == jnp.float32
    print("KERNEL_OK")
</pallas_src>

<mosaic_0001>
module attributes {stable_mosaic.version = 11 : i64} {
  func.func @_encoder_kernel(%arg0: i32, %arg1: memref<1x8x128xf32, #tpu.memory_space<vmem>>, %arg2: memref<1x1x1x8xf32, #tpu.memory_space<vmem>>, %arg3: memref<2x128x768xbf16, #tpu.memory_space<vmem>>, %arg4: memref<2x256x128xbf16, #tpu.memory_space<vmem>>, %arg5: memref<20x128xf32, #tpu.memory_space<vmem>>, %arg6: memref<2x1x256xf32, #tpu.memory_space<vmem>>, %arg7: memref<1x8x128xf32, #tpu.memory_space<vmem>>) attributes {dimension_semantics = [#tpu.dimension_semantics<parallel>], iteration_bounds = array<i64: 2>, scalar_prefetch = 0 : i64, scratch_operands = 0 : i64, tpu.core_type = #tpu.core_type<tc>, window_params = [{transform_indices = @transform_0, window_bounds = array<i64: 1, 8, 128>}, {transform_indices = @transform_1, window_bounds = array<i64: 1, 1, 1, 8>}, {pipeline_mode = #tpu.pipeline_mode<synchronous>, transform_indices = @transform_2, window_bounds = array<i64: 2, 128, 768>}, {pipeline_mode = #tpu.pipeline_mode<synchronous>, transform_indices = @transform_3, window_bounds = array<i64: 2, 256, 128>}, {pipeline_mode = #tpu.pipeline_mode<synchronous>, transform_indices = @transform_4, window_bounds = array<i64: 20, 128>}, {pipeline_mode = #tpu.pipeline_mode<synchronous>, transform_indices = @transform_5, window_bounds = array<i64: 2, 1, 256>}, {transform_indices = @transform_6, window_bounds = array<i64: 1, 8, 128>}]} {
    %c0 = arith.constant 0 : index
    %c0_0 = arith.constant 0 : index
    %c0_1 = arith.constant 0 : index
    %0 = vector.load %arg1[%c0, %c0_0, %c0_1] : memref<1x8x128xf32, #tpu.memory_space<vmem>>, vector<1x8x128xf32>
    %1 = vector.shape_cast %0 : vector<1x8x128xf32> to vector<8x128xf32>
    %c0_2 = arith.constant 0 : index
    %c0_3 = arith.constant 0 : index
    %2 = vector.load %arg5[%c0_2, %c0_3] : memref<20x128xf32, #tpu.memory_space<vmem>>, vector<1x128xf32>
    %c1 = arith.constant 1 : index
    %c0_4 = arith.constant 0 : index
    %3 = vector.load %arg5[%c1, %c0_4] : memref<20x128xf32, #tpu.memory_space<vmem>>, vector<1x128xf32>
    %cst = arith.constant dense<0.000000e+00> : vector<8xf32>
    %4 = vector.multi_reduction <add>, %1, %cst [1] : vector<8x128xf32> to vector<8xf32>
    %5 = vector.shape_cast %4 : vector<8xf32> to vector<8x1xf32>
    %cst_5 = arith.constant 1.280000e+02 : f32
    %6 = vector.broadcast %cst_5 : f32 to vector<8x1xf32>
    %7 = arith.divf %5, %6 : vector<8x1xf32>
    %8 = vector.broadcast %7 : vector<8x1xf32> to vector<8x128xf32>
    %9 = arith.subf %1, %8 : vector<8x128xf32>
    %10 = arith.mulf %9, %9 : vector<8x128xf32>
    %cst_6 = arith.constant dense<0.000000e+00> : vector<8xf32>
    %11 = vector.multi_reduction <add>, %10, %cst_6 [1] : vector<8x128xf32> to vector<8xf32>
    %12 = vector.shape_cast %11 : vector<8xf32> to vector<8x1xf32>
    %cst_7 = arith.constant 1.280000e+02 : f32
    %13 = vector.broadcast %cst_7 : f32 to vector<8x1xf32>
    %14 = arith.divf %12, %13 : vector<8x1xf32>
    %15 = vector.broadcast %7 : vector<8x1xf32> to vector<8x128xf32>
    %16 = arith.subf %1, %15 : vector<8x128xf32>
    %cst_8 = arith.constant 9.99999996E-13 : f32
    %17 = vector.broadcast %cst_8 : f32 to vector<8x1xf32>
    %18 = arith.addf %14, %17 : vector<8x1xf32>
    %19 = math.rsqrt %18 : vector<8x1xf32>
    %20 = vector.broadcast %19 : vector<8x1xf32> to vector<8x128xf32>
    %21 = arith.mulf %16, %20 : vector<8x128xf32>
    %22 = vector.broadcast %2 : vector<1x128xf32> to vector<8x128xf32>
    %23 = arith.mulf %21, %22 : vector<8x128xf32>
    %24 = vector.broadcast %3 : vector<1x128xf32> to vector<8x128xf32>
    %25 = arith.addf %23, %24 : vector<8x128xf32>
    %c0_9 = arith.constant 0 : index
    %c0_10 = arith.constant 0 : index
    %c0_11 = arith.constant 0 : index
    %c0_12 = arith.constant 0 : index
    %26 = vector.load %arg2[%c0_9, %c0_10, %c0_11, %c0_12] : memref<1x1x1x8xf32, #tpu.memory_space<vmem>>, vector<1x1x1x8xf32>
    %27 = vector.shape_cast %26 : vector<1x1x1x8xf32> to vector<1x1x8xf32>
    %c0_13 = arith.constant 0 : index
    %c0_14 = arith.constant 0 : index
    %c0_15 = arith.constant 0 : index
    %28 = vector.load %arg3[%c0_13, %c0_14, %c0_15] : memref<2x128x768xbf16, #tpu.memory_space<vmem>>, vector<1x128x768xbf16>
    %29 = vector.shape_cast %28 : vector<1x128x768xbf16> to vector<128x768xbf16>
    %30 = vector.extract_strided_slice %29 {offsets = [0, 0], sizes = [128, 384], strides = [1, 1]} : vector<128x768xbf16> to vector<128x384xbf16>
    %31 = arith.truncf %25 : vector<8x128xf32> to vector<8x128xbf16>
    %cst_16 = arith.constant dense<0.000000e+00> : vector<8x384xf32>
    %32 = tpu.matmul %31, %30, %cst_16 {dimension_numbers = #tpu.dot_dimension_numbers<[1], [0], [0], [1], [0, 0, 1, 1], [], []>} : vector<8x128xbf16>, vector<128x384xbf16>, vector<8x384xf32> -> vector<8x384xf32>
    %33 = vector.extract_strided_slice %32 {offsets = [0, 0], sizes = [8, 128], strides = [1, 1]} : vector<8x384xf32> to vector<8x128xf32>
    %c2 = arith.constant 2 : index
    %c0_17 = arith.constant 0 : index
    %34 = vector.load %arg5[%c2, %c0_17] : memref<20x128xf32, #tpu.memory_space<vmem>>, vector<1x128xf32>
    %35 = vector.broadcast %34 : vector<1x128xf32> to vector<8x128xf32>
    %36 = arith.addf %33, %35 : vector<8x128xf32>
    %37 = arith.truncf %36 : vector<8x128xf32> to vector<8x128xbf16>
    %38 = vector.extract_strided_slice %32 {offsets = [0, 128], sizes = [8, 128], strides = [1, 1]} : vector<8x384xf32> to vector<8x128xf32>
    %c3 = arith.constant 3 : index
    %c0_18 = arith.constant 0 : index
    %39 = vector.load %arg5[%c3, %c0_18] : memref<20x128xf32, #tpu.memory_space<vmem>>, vector<1x128xf32>
    %40 = vector.broadcast %39 : vector<1x128xf32> to vector<8x128xf32>
    %41 = arith.addf %38, %40 : vector<8x128xf32>
    %42 = arith.truncf %41 : vector<8x128xf32> to vector<8x128xbf16>
    %43 = vector.extract_strided_slice %32 {offsets = [0, 256], sizes = [8, 128], strides = [1, 1]} : vector<8x384xf32> to vector<8x128xf32>
    %c4 = arith.constant 4 : index
    %c0_19 = arith.constant 0 : index
    %44 = vector.load %arg5[%c4, %c0_19] : memref<20x128xf32, #tpu.memory_space<vmem>>, vector<1x128xf32>
    %45 = vector.broadcast %44 : vector<1x128xf32> to vector<8x128xf32>
    %46 = arith.addf %43, %45 : vector<8x128xf32>
    %47 = arith.truncf %46 : vector<8x128xf32> to vector<8x128xbf16>
    %48 = vector.shape_cast %37 : vector<8x128xbf16> to vector<1x8x128xbf16>
    %49 = vector.shape_cast %42 : vector<8x128xbf16> to vector<1x8x128xbf16>
    %50 = vector.shape_cast %47 : vector<8x128xbf16> to vector<1x8x128xbf16>
    %51 = vector.extract_strided_slice %48 {offsets = [0, 0, 0], sizes = [1, 8, 32], strides = [1, 1, 1]} : vector<1x8x128xbf16> to vector<1x8x32xbf16>
    %52 = vector.extract_strided_slice %49 {offsets = [0, 0, 0], sizes = [1, 8, 32], strides = [1, 1, 1]} : vector<1x8x128xbf16> to vector<1x8x32xbf16>
    "tpu.trace_start"() <{level = 10 : i32, message = "bqd,bkd->bqk"}> : () -> ()
    %cst_20 = arith.constant dense<0.000000e+00> : vector<1x8x8xf32>
    %53 = tpu.matmul %51, %52, %cst_20 {dimension_numbers = #tpu.dot_dimension_numbers<[2], [2], [1], [1], [0, 0, 0, 1, 1, 1], [0], [0]>} : vector<1x8x32xbf16>, vector<1x8x32xbf16>, vector<1x8x8xf32> -> vector<1x8x8xf32>
    "tpu.trace_stop"() : () -> ()
    %54 = vector.broadcast %27 : vector<1x1x8xf32> to vector<1x8x8xf32>
    %55 = arith.addf %53, %54 : vector<1x8x8xf32>
    %cst_21 = arith.constant dense<0xFF800000> : vector<1x8xf32>
    %56 = vector.multi_reduction <maximumf>, %55, %cst_21 [2] : vector<1x8x8xf32> to vector<1x8xf32>
    %57 = vector.shape_cast %56 : vector<1x8xf32> to vector<1x8x1xf32>
    %58 = vector.broadcast %57 : vector<1x8x1xf32> to vector<1x8x8xf32>
    %59 = arith.subf %55, %58 : vector<1x8x8xf32>
    %60 = math.exp %59 : vector<1x8x8xf32>
    %cst_22 = arith.constant dense<0.000000e+00> : vector<1x8xf32>
    %61 = vector.multi_reduction <add>, %60, %cst_22 [2] : vector<1x8x8xf32> to vector<1x8xf32>
    %62 = vector.shape_cast %61 : vector<1x8xf32> to vector<1x8x1xf32>
    %63 = tpu.reciprocal %62 {approx = true} : vector<1x8x1xf32> -> vector<1x8x1xf32>
    %64 = vector.broadcast %63 : vector<1x8x1xf32> to vector<1x8x8xf32>
    %65 = arith.mulf %60, %64 : vector<1x8x8xf32>
    %66 = arith.truncf %65 : vector<1x8x8xf32> to vector<1x8x8xbf16>
    %67 = vector.extract_strided_slice %50 {offsets = [0, 0, 0], sizes = [1, 8, 32], strides = [1, 1, 1]} : vector<1x8x128xbf16> to vector<1x8x32xbf16>
    "tpu.trace_start"() <{level = 10 : i32, message = "bqk,bkd->bqd"}> : () -> ()
    %cst_23 = arith.constant dense<0.000000e+00> : vector<1x8x32xf32>
    %68 = tpu.matmul %66, %67, %cst_23 {dimension_numbers = #tpu.dot_dimension_numbers<[2], [1], [1], [2], [0, 0, 0, 1, 1, 2], [0], [0]>} : vector<1x8x8xbf16>, vector<1x8x32xbf16>, vector<1x8x32xf32> -> vector<1x8x32xf32>
    "tpu.trace_stop"() : () -> ()
    %69 = vector.extract_strided_slice %48 {offsets = [0, 0, 32], sizes = [1, 8, 32], strides = [1, 1, 1]} : vector<1x8x128xbf16> to vector<1x8x32xbf16>
    %70 = vector.extract_strided_slice %49 {offsets = [0, 0, 32], sizes = [1, 8, 32], strides = [1, 1, 1]} : vector<1x8x128xbf16> to vector<1x8x32xbf16>
    "tpu.trace_start"() <{level = 10 : i32, message = "bqd,bkd->bqk"}> : () -> ()
    %cst_24 = arith.constant dense<0.000000e+00> : vector<1x8x8xf32>
    %71 = tpu.matmul %69, %70, %cst_24 {dimension_numbers = #tpu.dot_dimension_numbers<[2], [2], [1], [1], [0, 0, 0, 1, 1, 1], [0], [0]>} : vector<1x8x32xbf16>, vector<1x8x32xbf16>, vector<1x8x8xf32> -> vector<1x8x8xf32>
    "tpu.trace_stop"() : () -> ()
    %72 = vector.broadcast %27 : vector<1x1x8xf32> to vector<1x8x8xf32>
    %73 = arith.addf %71, %72 : vector<1x8x8xf32>
    %cst_25 = arith.constant dense<0xFF800000> : vector<1x8xf32>
    %74 = vector.multi_reduction <maximumf>, %73, %cst_25 [2] : vector<1x8x8xf32> to vector<1x8xf32>
    %75 = vector.shape_cast %74 : vector<1x8xf32> to vector<1x8x1xf32>
    %76 = vector.broadcast %75 : vector<1x8x1xf32> to vector<1x8x8xf32>
    %77 = arith.subf %73, %76 : vector<1x8x8xf32>
    %78 = math.exp %77 : vector<1x8x8xf32>
    %cst_26 = arith.constant dense<0.000000e+00> : vector<1x8xf32>
    %79 = vector.multi_reduction <add>, %78, %cst_26 [2] : vector<1x8x8xf32> to vector<1x8xf32>
    %80 = vector.shape_cast %79 : vector<1x8xf32> to vector<1x8x1xf32>
    %81 = tpu.reciprocal %80 {approx = true} : vector<1x8x1xf32> -> vector<1x8x1xf32>
    %82 = vector.broadcast %81 : vector<1x8x1xf32> to vector<1x8x8xf32>
    %83 = arith.mulf %78, %82 : vector<1x8x8xf32>
    %84 = arith.truncf %83 : vector<1x8x8xf32> to vector<1x8x8xbf16>
    %85 = vector.extract_strided_slice %50 {offsets = [0, 0, 32], sizes = [1, 8, 32], strides = [1, 1, 1]} : vector<1x8x128xbf16> to vector<1x8x32xbf16>
    "tpu.trace_start"() <{level = 10 : i32, message = "bqk,bkd->bqd"}> : () -> ()
    %cst_27 = arith.constant dense<0.000000e+00> : vector<1x8x32xf32>
    %86 = tpu.matmul %84, %85, %cst_27 {dimension_numbers = #tpu.dot_dimension_numbers<[2], [1], [1], [2], [0, 0, 0, 1, 1, 2], [0], [0]>} : vector<1x8x8xbf16>, vector<1x8x32xbf16>, vector<1x8x32xf32> -> vector<1x8x32xf32>
    "tpu.trace_stop"() : () -> ()
    %87 = vector.extract_strided_slice %48 {offsets = [0, 0, 64], sizes = [1, 8, 32], strides = [1, 1, 1]} : vector<1x8x128xbf16> to vector<1x8x32xbf16>
    %88 = vector.extract_strided_slice %49 {offsets = [0, 0, 64], sizes = [1, 8, 32], strides = [1, 1, 1]} : vector<1x8x128xbf16> to vector<1x8x32xbf16>
    "tpu.trace_start"() <{level = 10 : i32, message = "bqd,bkd->bqk"}> : () -> ()
    %cst_28 = arith.constant dense<0.000000e+00> : vector<1x8x8xf32>
    %89 = tpu.matmul %87, %88, %cst_28 {dimension_numbers = #tpu.dot_dimension_numbers<[2], [2], [1], [1], [0, 0, 0, 1, 1, 1], [0], [0]>} : vector<1x8x32xbf16>, vector<1x8x32xbf16>, vector<1x8x8xf32> -> vector<1x8x8xf32>
    "tpu.trace_stop"() : () -> ()
    %90 = vector.broadcast %27 : vector<1x1x8xf32> to vector<1x8x8xf32>
    %91 = arith.addf %89, %90 : vector<1x8x8xf32>
    %cst_29 = arith.constant dense<0xFF800000> : vector<1x8xf32>
    %92 = vector.multi_reduction <maximumf>, %91, %cst_29 [2] : vector<1x8x8xf32> to vector<1x8xf32>
    %93 = vector.shape_cast %92 : vector<1x8xf32> to vector<1x8x1xf32>
    %94 = vector.broadcast %93 : vector<1x8x1xf32> to vector<1x8x8xf32>
    %95 = arith.subf %91, %94 : vector<1x8x8xf32>
    %96 = math.exp %95 : vector<1x8x8xf32>
    %cst_30 = arith.constant dense<0.000000e+00> : vector<1x8xf32>
    %97 = vector.multi_reduction <add>, %96, %cst_30 [2] : vector<1x8x8xf32> to vector<1x8xf32>
    %98 = vector.shape_cast %97 : vector<1x8xf32> to vector<1x8x1xf32>
    %99 = tpu.reciprocal %98 {approx = true} : vector<1x8x1xf32> -> vector<1x8x1xf32>
    %100 = vector.broadcast %99 : vector<1x8x1xf32> to vector<1x8x8xf32>
    %101 = arith.mulf %96, %100 : vector<1x8x8xf32>
    %102 = arith.truncf %101 : vector<1x8x8xf32> to vector<1x8x8xbf16>
    %103 = vector.extract_strided_slice %50 {offsets = [0, 0, 64], sizes = [1, 8, 32], strides = [1, 1, 1]} : vector<1x8x128xbf16> to vector<1x8x32xbf16>
    "tpu.trace_start"() <{level = 10 : i32, message = "bqk,bkd->bqd"}> : () -> ()
    %cst_31 = arith.constant dense<0.000000e+00> : vector<1x8x32xf32>
    %104 = tpu.matmul %102, %103, %cst_31 {dimension_numbers = #tpu.dot_dimension_numbers<[2], [1], [1], [2], [0, 0, 0, 1, 1, 2], [0], [0]>} : vector<1x8x8xbf16>, vector<1x8x32xbf16>, vector<1x8x32xf32> -> vector<1x8x32xf32>
    "tpu.trace_stop"() : () -> ()
    %105 = vector.extract_strided_slice %48 {offsets = [0, 0, 96], sizes = [1, 8, 32], strides = [1, 1, 1]} : vector<1x8x128xbf16> to vector<1x8x32xbf16>
    %106 = vector.extract_strided_slice %49 {offsets = [0, 0, 96], sizes = [1, 8, 32], strides = [1, 1, 1]} : vector<1x8x128xbf16> to vector<1x8x32xbf16>
    "tpu.trace_start"() <{level = 10 : i32, message = "bqd,bkd->bqk"}> : () -> ()
    %cst_32 = arith.constant dense<0.000000e+00> : vector<1x8x8xf32>
    %107 = tpu.matmul %105, %106, %cst_32 {dimension_numbers = #tpu.dot_dimension_numbers<[2], [2], [1], [1], [0, 0, 0, 1, 1, 1], [0], [0]>} : vector<1x8x32xbf16>, vector<1x8x32xbf16>, vector<1x8x8xf32> -> vector<1x8x8xf32>
    "tpu.trace_stop"() : () -> ()
    %108 = vector.broadcast %27 : vector<1x1x8xf32> to vector<1x8x8xf32>
    %109 = arith.addf %107, %108 : vector<1x8x8xf32>
    %cst_33 = arith.constant dense<0xFF800000> : vector<1x8xf32>
    %110 = vector.multi_reduction <maximumf>, %109, %cst_33 [2] : vector<1x8x8xf32> to vector<1x8xf32>
    %111 = vector.shape_cast %110 : vector<1x8xf32> to vector<1x8x1xf32>
    %112 = vector.broadcast %111 : vector<1x8x1xf32> to vector<1x8x8xf32>
    %113 = arith.subf %109, %112 : vector<1x8x8xf32>
    %114 = math.exp %113 : vector<1x8x8xf32>
    %cst_34 = arith.constant dense<0.000000e+00> : vector<1x8xf32>
    %115 = vector.multi_reduction <add>, %114, %cst_34 [2] : vector<1x8x8xf32> to vector<1x8xf32>
    %116 = vector.shape_cast %115 : vector<1x8xf32> to vector<1x8x1xf32>
    %117 = tpu.reciprocal %116 {approx = true} : vector<1x8x1xf32> -> vector<1x8x1xf32>
    %118 = vector.broadcast %117 : vector<1x8x1xf32> to vector<1x8x8xf32>
    %119 = arith.mulf %114, %118 : vector<1x8x8xf32>
    %120 = arith.truncf %119 : vector<1x8x8xf32> to vector<1x8x8xbf16>
    %121 = vector.extract_strided_slice %50 {offsets = [0, 0, 96], sizes = [1, 8, 32], strides = [1, 1, 1]} : vector<1x8x128xbf16> to vector<1x8x32xbf16>
    "tpu.trace_start"() <{level = 10 : i32, message = "bqk,bkd->bqd"}> : () -> ()
    %cst_35 = arith.constant dense<0.000000e+00> : vector<1x8x32xf32>
    %122 = tpu.matmul %120, %121, %cst_35 {dimension_numbers = #tpu.dot_dimension_numbers<[2], [1], [1], [2], [0, 0, 0, 1, 1, 2], [0], [0]>} : vector<1x8x8xbf16>, vector<1x8x32xbf16>, vector<1x8x32xf32> -> vector<1x8x32xf32>
    "tpu.trace_stop"() : () -> ()
    %123 = tpu.concatenate %68, %86, %104, %122 in 2 : vector<1x8x32xf32>, vector<1x8x32xf32>, vector<1x8x32xf32>, vector<1x8x32xf32> -> vector<1x8x128xf32>
    %124 = vector.shape_cast %123 : vector<1x8x128xf32> to vector<8x128xf32>
    %125 = vector.extract_strided_slice %29 {offsets = [0, 384], sizes = [128, 128], strides = [1, 1]} : vector<128x768xbf16> to vector<128x128xbf16>
    %126 = arith.truncf %124 : vector<8x128xf32> to vector<8x128xbf16>
    %cst_36 = arith.constant dense<0.000000e+00> : vector<8x128xf32>
    %127 = tpu.matmul %126, %125, %cst_36 {dimension_numbers = #tpu.dot_dimension_numbers<[1], [0], [0], [1], [0, 0, 1, 1], [], []>} : vector<8x128xbf16>, vector<128x128xbf16>, vector<8x128xf32> -> vector<8x128xf32>
    %c5 = arith.constant 5 : index
    %c0_37 = arith.constant 0 : index
    %128 = vector.load %arg5[%c5, %c0_37] : memref<20x128xf32, #tpu.memory_space<vmem>>, vector<1x128xf32>
    %129 = vector.broadcast %128 : vector<1x128xf32> to vector<8x128xf32>
    %130 = arith.addf %127, %129 : vector<8x128xf32>
    %131 = arith.addf %130, %25 : vector<8x128xf32>
    %c6 = arith.constant 6 : index
    %c0_38 = arith.constant 0 : index
    %132 = vector.load %arg5[%c6, %c0_38] : memref<20x128xf32, #tpu.memory_space<vmem>>, vector<1x128xf32>
    %c7 = arith.constant 7 : index
    %c0_39 = arith.constant 0 : index
    %133 = vector.load %arg5[%c7, %c0_39] : memref<20x128xf32, #tpu.memory_space<vmem>>, vector<1x128xf32>
    %cst_40 = arith.constant dense<0.000000e+00> : vector<8xf32>
    %134 = vector.multi_reduction <add>, %131, %cst_40 [1] : vector<8x128xf32> to vector<8xf32>
    %135 = vector.shape_cast %134 : vector<8xf32> to vector<8x1xf32>
    %cst_41 = arith.constant 1.280000e+02 : f32
    %136 = vector.broadcast %cst_41 : f32 to vector<8x1xf32>
    %137 = arith.divf %135, %136 : vector<8x1xf32>
    %138 = vector.broadcast %137 : vector<8x1xf32> to vector<8x128xf32>
    %139 = arith.subf %131, %138 : vector<8x128xf32>
    %140 = arith.mulf %139, %139 : vector<8x128xf32>
    %cst_42 = arith.constant dense<0.000000e+00> : vector<8xf32>
    %141 = vector.multi_reduction <add>, %140, %cst_42 [1] : vector<8x128xf32> to vector<8xf32>
    %142 = vector.shape_cast %141 : vector<8xf32> to vector<8x1xf32>
    %cst_43 = arith.constant 1.280000e+02 : f32
    %143 = vector.broadcast %cst_43 : f32 to vector<8x1xf32>
    %144 = arith.divf %142, %143 : vector<8x1xf32>
    %145 = vector.broadcast %137 : vector<8x1xf32> to vector<8x128xf32>
    %146 = arith.subf %131, %145 : vector<8x128xf32>
    %cst_44 = arith.constant 9.99999996E-13 : f32
    %147 = vector.broadcast %cst_44 : f32 to vector<8x1xf32>
    %148 = arith.addf %144, %147 : vector<8x1xf32>
    %149 = math.rsqrt %148 : vector<8x1xf32>
    %150 = vector.broadcast %149 : vector<8x1xf32> to vector<8x128xf32>
    %151 = arith.mulf %146, %150 : vector<8x128xf32>
    %152 = vector.broadcast %132 : vector<1x128xf32> to vector<8x128xf32>
    %153 = arith.mulf %151, %152 : vector<8x128xf32>
    %154 = vector.broadcast %133 : vector<1x128xf32> to vector<8x128xf32>
    %155 = arith.addf %153, %154 : vector<8x128xf32>
    %156 = vector.extract_strided_slice %29 {offsets = [0, 512], sizes = [128, 256], strides = [1, 1]} : vector<128x768xbf16> to vector<128x256xbf16>
    %157 = arith.truncf %155 : vector<8x128xf32> to vector<8x128xbf16>
    %cst_45 = arith.constant dense<0.000000e+00> : vector<8x256xf32>
    %158 = tpu.matmul %157, %156, %cst_45 {dimension_numbers = #tpu.dot_dimension_numbers<[1], [0], [0], [1], [0, 0, 1, 1], [], []>} : vector<8x128xbf16>, vector<128x256xbf16>, vector<8x256xf32> -> vector<8x256xf32>
    %c0_46 = arith.constant 0 : index
    %c0_47 = arith.constant 0 : index
    %c0_48 = arith.constant 0 : index
    %159 = vector.load %arg6[%c0_46, %c0_47, %c0_48] : memref<2x1x256xf32, #tpu.memory_space<vmem>>, vector<1x1x256xf32>
    %160 = vector.shape_cast %159 : vector<1x1x256xf32> to vector<1x256xf32>
    %161 = vector.broadcast %160 : vector<1x256xf32> to vector<8x256xf32>
    %162 = arith.addf %158, %161 : vector<8x256xf32>
    %cst_49 = arith.constant 5.000000e-01 : f32
    %163 = vector.broadcast %cst_49 : f32 to vector<8x256xf32>
    %164 = arith.mulf %163, %162 : vector<8x256xf32>
    %cst_50 = arith.constant 4.471500e-02 : f32
    %165 = vector.broadcast %cst_50 : f32 to vector<8x256xf32>
    %166 = arith.mulf %165, %162 : vector<8x256xf32>
    %167 = arith.mulf %166, %162 : vector<8x256xf32>
    %168 = arith.mulf %167, %162 : vector<8x256xf32>
    %169 = arith.addf %162, %168 : vector<8x256xf32>
    %cst_51 = arith.constant 0.797884583 : f32
    %170 = vector.broadcast %cst_51 : f32 to vector<8x256xf32>
    %171 = arith.mulf %170, %169 : vector<8x256xf32>
    %172 = math.tanh %171 : vector<8x256xf32>
    %cst_52 = arith.constant 1.000000e+00 : f32
    %173 = vector.broadcast %cst_52 : f32 to vector<8x256xf32>
    %174 = arith.addf %173, %172 : vector<8x256xf32>
    %175 = arith.mulf %164, %174 : vector<8x256xf32>
    %c0_53 = arith.constant 0 : index
    %c0_54 = arith.constant 0 : index
    %c0_55 = arith.constant 0 : index
    %176 = vector.load %arg4[%c0_53, %c0_54, %c0_55] : memref<2x256x128xbf16, #tpu.memory_space<vmem>>, vector<1x256x128xbf16>
    %177 = vector.shape_cast %176 : vector<1x256x128xbf16> to vector<256x128xbf16>
    %178 = arith.truncf %175 : vector<8x256xf32> to vector<8x256xbf16>
    %cst_56 = arith.constant dense<0.000000e+00> : vector<8x128xf32>
    %179 = tpu.matmul %178, %177, %cst_56 {dimension_numbers = #tpu.dot_dimension_numbers<[1], [0], [0], [1], [0, 0, 1, 1], [], []>} : vector<8x256xbf16>, vector<256x128xbf16>, vector<8x128xf32> -> vector<8x128xf32>
    %c8 = arith.constant 8 : index
    %c0_57 = arith.constant 0 : index
    %180 = vector.load %arg5[%c8, %c0_57] : memref<20x128xf32, #tpu.memory_space<vmem>>, vector<1x128xf32>
    %181 = vector.broadcast %180 : vector<1x128xf32> to vector<8x128xf32>
    %182 = arith.addf %179, %181 : vector<8x128xf32>
    %183 = arith.addf %182, %155 : vector<8x128xf32>
    %c9 = arith.constant 9 : index
    %c0_58 = arith.constant 0 : index
    %184 = vector.load %arg5[%c9, %c0_58] : memref<20x128xf32, #tpu.memory_space<vmem>>, vector<1x128xf32>
    %c10 = arith.constant 10 : index
    %c0_59 = arith.constant 0 : index
    %185 = vector.load %arg5[%c10, %c0_59] : memref<20x128xf32, #tpu.memory_space<vmem>>, vector<1x128xf32>
    %cst_60 = arith.constant dense<0.000000e+00> : vector<8xf32>
    %186 = vector.multi_reduction <add>, %183, %cst_60 [1] : vector<8x128xf32> to vector<8xf32>
    %187 = vector.shape_cast %186 : vector<8xf32> to vector<8x1xf32>
    %cst_61 = arith.constant 1.280000e+02 : f32
    %188 = vector.broadcast %cst_61 : f32 to vector<8x1xf32>
    %189 = arith.divf %187, %188 : vector<8x1xf32>
    %190 = vector.broadcast %189 : vector<8x1xf32> to vector<8x128xf32>
    %191 = arith.subf %183, %190 : vector<8x128xf32>
    %192 = arith.mulf %191, %191 : vector<8x128xf32>
    %cst_62 = arith.constant dense<0.000000e+00> : vector<8xf32>
    %193 = vector.multi_reduction <add>, %192, %cst_62 [1] : vector<8x128xf32> to vector<8xf32>
    %194 = vector.shape_cast %193 : vector<8xf32> to vector<8x1xf32>
    %cst_63 = arith.constant 1.280000e+02 : f32
    %195 = vector.broadcast %cst_63 : f32 to vector<8x1xf32>
    %196 = arith.divf %194, %195 : vector<8x1xf32>
    %197 = vector.broadcast %189 : vector<8x1xf32> to vector<8x128xf32>
    %198 = arith.subf %183, %197 : vector<8x128xf32>
    %cst_64 = arith.constant 9.99999996E-13 : f32
    %199 = vector.broadcast %cst_64 : f32 to vector<8x1xf32>
    %200 = arith.addf %196, %199 : vector<8x1xf32>
    %201 = math.rsqrt %200 : vector<8x1xf32>
    %202 = vector.broadcast %201 : vector<8x1xf32> to vector<8x128xf32>
    %203 = arith.mulf %198, %202 : vector<8x128xf32>
    %204 = vector.broadcast %184 : vector<1x128xf32> to vector<8x128xf32>
    %205 = arith.mulf %203, %204 : vector<8x128xf32>
    %206 = vector.broadcast %185 : vector<1x128xf32> to vector<8x128xf32>
    %207 = arith.addf %205, %206 : vector<8x128xf32>
    %c1_65 = arith.constant 1 : index
    %c0_66 = arith.constant 0 : index
    %c0_67 = arith.constant 0 : index
    %208 = vector.load %arg3[%c1_65, %c0_66, %c0_67] : memref<2x128x768xbf16, #tpu.memory_space<vmem>>, vector<1x128x768xbf16>
    %209 = vector.shape_cast %208 : vector<1x128x768xbf16> to vector<128x768xbf16>
    %210 = vector.extract_strided_slice %209 {offsets = [0, 0], sizes = [128, 384], strides = [1, 1]} : vector<128x768xbf16> to vector<128x384xbf16>
    %211 = arith.truncf %207 : vector<8x128xf32> to vector<8x128xbf16>
    %cst_68 = arith.constant dense<0.000000e+00> : vector<8x384xf32>
    %212 = tpu.matmul %211, %210, %cst_68 {dimension_numbers = #tpu.dot_dimension_numbers<[1], [0], [0], [1], [0, 0, 1, 1], [], []>} : vector<8x128xbf16>, vector<128x384xbf16>, vector<8x384xf32> -> vector<8x384xf32>
    %213 = vector.extract_strided_slice %212 {offsets = [0, 0], sizes = [8, 128], strides = [1, 1]} : vector<8x384xf32> to vector<8x128xf32>
    %c11 = arith.constant 11 : index
    %c0_69 = arith.constant 0 : index
    %214 = vector.load %arg5[%c11, %c0_69] : memref<20x128xf32, #tpu.memory_space<vmem>>, vector<1x128xf32>
    %215 = vector.broadcast %214 : vector<1x128xf32> to vector<8x128xf32>
    %216 = arith.addf %213, %215 : vector<8x128xf32>
    %217 = arith.truncf %216 : vector<8x128xf32> to vector<8x128xbf16>
    %218 = vector.extract_strided_slice %212 {offsets = [0, 128], sizes = [8, 128], strides = [1, 1]} : vector<8x384xf32> to vector<8x128xf32>
    %c12 = arith.constant 12 : index
    %c0_70 = arith.constant 0 : index
    %219 = vector.load %arg5[%c12, %c0_70] : memref<20x128xf32, #tpu.memory_space<vmem>>, vector<1x128xf32>
    %220 = vector.broadcast %219 : vector<1x128xf32> to vector<8x128xf32>
    %221 = arith.addf %218, %220 : vector<8x128xf32>
    %222 = arith.truncf %221 : vector<8x128xf32> to vector<8x128xbf16>
    %223 = vector.extract_strided_slice %212 {offsets = [0, 256], sizes = [8, 128], strides = [1, 1]} : vector<8x384xf32> to vector<8x128xf32>
    %c13 = arith.constant 13 : index
    %c0_71 = arith.constant 0 : index
    %224 = vector.load %arg5[%c13, %c0_71] : memref<20x128xf32, #tpu.memory_space<vmem>>, vector<1x128xf32>
    %225 = vector.broadcast %224 : vector<1x128xf32> to vector<8x128xf32>
    %226 = arith.addf %223, %225 : vector<8x128xf32>
    %227 = arith.truncf %226 : vector<8x128xf32> to vector<8x128xbf16>
    %228 = vector.shape_cast %217 : vector<8x128xbf16> to vector<1x8x128xbf16>
    %229 = vector.shape_cast %222 : vector<8x128xbf16> to vector<1x8x128xbf16>
    %230 = vector.shape_cast %227 : vector<8x128xbf16> to vector<1x8x128xbf16>
    %231 = vector.extract_strided_slice %228 {offsets = [0, 0, 0], sizes = [1, 8, 32], strides = [1, 1, 1]} : vector<1x8x128xbf16> to vector<1x8x32xbf16>
    %232 = vector.extract_strided_slice %229 {offsets = [0, 0, 0], sizes = [1, 8, 32], strides = [1, 1, 1]} : vector<1x8x128xbf16> to vector<1x8x32xbf16>
    "tpu.trace_start"() <{level = 10 : i32, message = "bqd,bkd->bqk"}> : () -> ()
    %cst_72 = arith.constant dense<0.000000e+00> : vector<1x8x8xf32>
    %233 = tpu.matmul %231, %232, %cst_72 {dimension_numbers = #tpu.dot_dimension_numbers<[2], [2], [1], [1], [0, 0, 0, 1, 1, 1], [0], [0]>} : vector<1x8x32xbf16>, vector<1x8x32xbf16>, vector<1x8x8xf32> -> vector<1x8x8xf32>
    "tpu.trace_stop"() : () -> ()
    %234 = vector.broadcast %27 : vector<1x1x8xf32> to vector<1x8x8xf32>
    %235 = arith.addf %233, %234 : vector<1x8x8xf32>
    %cst_73 = arith.constant dense<0xFF800000> : vector<1x8xf32>
    %236 = vector.multi_reduction <maximumf>, %235, %cst_73 [2] : vector<1x8x8xf32> to vector<1x8xf32>
    %237 = vector.shape_cast %236 : vector<1x8xf32> to vector<1x8x1xf32>
    %238 = vector.broadcast %237 : vector<1x8x1xf32> to vector<1x8x8xf32>
    %239 = arith.subf %235, %238 : vector<1x8x8xf32>
    %240 = math.exp %239 : vector<1x8x8xf32>
    %cst_74 = arith.constant dense<0.000000e+00> : vector<1x8xf32>
    %241 = vector.multi_reduction <add>, %240, %cst_74 [2] : vector<1x8x8xf32> to vector<1x8xf32>
    %242 = vector.shape_cast %241 : vector<1x8xf32> to vector<1x8x1xf32>
    %243 = tpu.reciprocal %242 {approx = true} : vector<1x8x1xf32> -> vector<1x8x1xf32>
    %244 = vector.broadcast %243 : vector<1x8x1xf32> to vector<1x8x8xf32>
    %245 = arith.mulf %240, %244 : vector<1x8x8xf32>
    %246 = arith.truncf %245 : vector<1x8x8xf32> to vector<1x8x8xbf16>
    %247 = vector.extract_strided_slice %230 {offsets = [0, 0, 0], sizes = [1, 8, 32], strides = [1, 1, 1]} : vector<1x8x128xbf16> to vector<1x8x32xbf16>
    "tpu.trace_start"() <{level = 10 : i32, message = "bqk,bkd->bqd"}> : () -> ()
    %cst_75 = arith.constant dense<0.000000e+00> : vector<1x8x32xf32>
    %248 = tpu.matmul %246, %247, %cst_75 {dimension_numbers = #tpu.dot_dimension_numbers<[2], [1], [1], [2], [0, 0, 0, 1, 1, 2], [0], [0]>} : vector<1x8x8xbf16>, vector<1x8x32xbf16>, vector<1x8x32xf32> -> vector<1x8x32xf32>
    "tpu.trace_stop"() : () -> ()
    %249 = vector.extract_strided_slice %228 {offsets = [0, 0, 32], sizes = [1, 8, 32], strides = [1, 1, 1]} : vector<1x8x128xbf16> to vector<1x8x32xbf16>
    %250 = vector.extract_strided_slice %229 {offsets = [0, 0, 32], sizes = [1, 8, 32], strides = [1, 1, 1]} : vector<1x8x128xbf16> to vector<1x8x32xbf16>
    "tpu.trace_start"() <{level = 10 : i32, message = "bqd,bkd->bqk"}> : () -> ()
    %cst_76 = arith.constant dense<0.000000e+00> : vector<1x8x8xf32>
    %251 = tpu.matmul %249, %250, %cst_76 {dimension_numbers = #tpu.dot_dimension_numbers<[2], [2], [1], [1], [0, 0, 0, 1, 1, 1], [0], [0]>} : vector<1x8x32xbf16>, vector<1x8x32xbf16>, vector<1x8x8xf32> -> vector<1x8x8xf32>
    "tpu.trace_stop"() : () -> ()
    %252 = vector.broadcast %27 : vector<1x1x8xf32> to vector<1x8x8xf32>
    %253 = arith.addf %251, %252 : vector<1x8x8xf32>
    %cst_77 = arith.constant dense<0xFF800000> : vector<1x8xf32>
    %254 = vector.multi_reduction <maximumf>, %253, %cst_77 [2] : vector<1x8x8xf32> to vector<1x8xf32>
    %255 = vector.shape_cast %254 : vector<1x8xf32> to vector<1x8x1xf32>
    %256 = vector.broadcast %255 : vector<1x8x1xf32> to vector<1x8x8xf32>
    %257 = arith.subf %253, %256 : vector<1x8x8xf32>
    %258 = math.exp %257 : vector<1x8x8xf32>
    %cst_78 = arith.constant dense<0.000000e+00> : vector<1x8xf32>
    %259 = vector.multi_reduction <add>, %258, %cst_78 [2] : vector<1x8x8xf32> to vector<1x8xf32>
    %260 = vector.shape_cast %259 : vector<1x8xf32> to vector<1x8x1xf32>
    %261 = tpu.reciprocal %260 {approx = true} : vector<1x8x1xf32> -> vector<1x8x1xf32>
    %262 = vector.broadcast %261 : vector<1x8x1xf32> to vector<1x8x8xf32>
    %263 = arith.mulf %258, %262 : vector<1x8x8xf32>
    %264 = arith.truncf %263 : vector<1x8x8xf32> to vector<1x8x8xbf16>
    %265 = vector.extract_strided_slice %230 {offsets = [0, 0, 32], sizes = [1, 8, 32], strides = [1, 1, 1]} : vector<1x8x128xbf16> to vector<1x8x32xbf16>
    "tpu.trace_start"() <{level = 10 : i32, message = "bqk,bkd->bqd"}> : () -> ()
    %cst_79 = arith.constant dense<0.000000e+00> : vector<1x8x32xf32>
    %266 = tpu.matmul %264, %265, %cst_79 {dimension_numbers = #tpu.dot_dimension_numbers<[2], [1], [1], [2], [0, 0, 0, 1, 1, 2], [0], [0]>} : vector<1x8x8xbf16>, vector<1x8x32xbf16>, vector<1x8x32xf32> -> vector<1x8x32xf32>
    "tpu.trace_stop"() : () -> ()
    %267 = vector.extract_strided_slice %228 {offsets = [0, 0, 64], sizes = [1, 8, 32], strides = [1, 1, 1]} : vector<1x8x128xbf16> to vector<1x8x32xbf16>
    %268 = vector.extract_strided_slice %229 {offsets = [0, 0, 64], sizes = [1, 8, 32], strides = [1, 1, 1]} : vector<1x8x128xbf16> to vector<1x8x32xbf16>
    "tpu.trace_start"() <{level = 10 : i32, message = "bqd,bkd->bqk"}> : () -> ()
    %cst_80 = arith.constant dense<0.000000e+00> : vector<1x8x8xf32>
    %269 = tpu.matmul %267, %268, %cst_80 {dimension_numbers = #tpu.dot_dimension_numbers<[2], [2], [1], [1], [0, 0, 0, 1, 1, 1], [0], [0]>} : vector<1x8x32xbf16>, vector<1x8x32xbf16>, vector<1x8x8xf32> -> vector<1x8x8xf32>
    "tpu.trace_stop"() : () -> ()
    %270 = vector.broadcast %27 : vector<1x1x8xf32> to vector<1x8x8xf32>
    %271 = arith.addf %269, %270 : vector<1x8x8xf32>
    %cst_81 = arith.constant dense<0xFF800000> : vector<1x8xf32>
    %272 = vector.multi_reduction <maximumf>, %271, %cst_81 [2] : vector<1x8x8xf32> to vector<1x8xf32>
    %273 = vector.shape_cast %272 : vector<1x8xf32> to vector<1x8x1xf32>
    %274 = vector.broadcast %273 : vector<1x8x1xf32> to vector<1x8x8xf32>
    %275 = arith.subf %271, %274 : vector<1x8x8xf32>
    %276 = math.exp %275 : vector<1x8x8xf32>
    %cst_82 = arith.constant dense<0.000000e+00> : vector<1x8xf32>
    %277 = vector.multi_reduction <add>, %276, %cst_82 [2] : vector<1x8x8xf32> to vector<1x8xf32>
    %278 = vector.shape_cast %277 : vector<1x8xf32> to vector<1x8x1xf32>
    %279 = tpu.reciprocal %278 {approx = true} : vector<1x8x1xf32> -> vector<1x8x1xf32>
    %280 = vector.broadcast %279 : vector<1x8x1xf32> to vector<1x8x8xf32>
    %281 = arith.mulf %276, %280 : vector<1x8x8xf32>
    %282 = arith.truncf %281 : vector<1x8x8xf32> to vector<1x8x8xbf16>
    %283 = vector.extract_strided_slice %230 {offsets = [0, 0, 64], sizes = [1, 8, 32], strides = [1, 1, 1]} : vector<1x8x128xbf16> to vector<1x8x32xbf16>
    "tpu.trace_start"() <{level = 10 : i32, message = "bqk,bkd->bqd"}> : () -> ()
    %cst_83 = arith.constant dense<0.000000e+00> : vector<1x8x32xf32>
    %284 = tpu.matmul %282, %283, %cst_83 {dimension_numbers = #tpu.dot_dimension_numbers<[2], [1], [1], [2], [0, 0, 0, 1, 1, 2], [0], [0]>} : vector<1x8x8xbf16>, vector<1x8x32xbf16>, vector<1x8x32xf32> -> vector<1x8x32xf32>
    "tpu.trace_stop"() : () -> ()
    %285 = vector.extract_strided_slice %228 {offsets = [0, 0, 96], sizes = [1, 8, 32], strides = [1, 1, 1]} : vector<1x8x128xbf16> to vector<1x8x32xbf16>
    %286 = vector.extract_strided_slice %229 {offsets = [0, 0, 96], sizes = [1, 8, 32], strides = [1, 1, 1]} : vector<1x8x128xbf16> to vector<1x8x32xbf16>
    "tpu.trace_start"() <{level = 10 : i32, message = "bqd,bkd->bqk"}> : () -> ()
    %cst_84 = arith.constant dense<0.000000e+00> : vector<1x8x8xf32>
    %287 = tpu.matmul %285, %286, %cst_84 {dimension_numbers = #tpu.dot_dimension_numbers<[2], [2], [1], [1], [0, 0, 0, 1, 1, 1], [0], [0]>} : vector<1x8x32xbf16>, vector<1x8x32xbf16>, vector<1x8x8xf32> -> vector<1x8x8xf32>
    "tpu.trace_stop"() : () -> ()
    %288 = vector.broadcast %27 : vector<1x1x8xf32> to vector<1x8x8xf32>
    %289 = arith.addf %287, %288 : vector<1x8x8xf32>
    %cst_85 = arith.constant dense<0xFF800000> : vector<1x8xf32>
    %290 = vector.multi_reduction <maximumf>, %289, %cst_85 [2] : vector<1x8x8xf32> to vector<1x8xf32>
    %291 = vector.shape_cast %290 : vector<1x8xf32> to vector<1x8x1xf32>
    %292 = vector.broadcast %291 : vector<1x8x1xf32> to vector<1x8x8xf32>
    %293 = arith.subf %289, %292 : vector<1x8x8xf32>
    %294 = math.exp %293 : vector<1x8x8xf32>
    %cst_86 = arith.constant dense<0.000000e+00> : vector<1x8xf32>
    %295 = vector.multi_reduction <add>, %294, %cst_86 [2] : vector<1x8x8xf32> to vector<1x8xf32>
    %296 = vector.shape_cast %295 : vector<1x8xf32> to vector<1x8x1xf32>
    %297 = tpu.reciprocal %296 {approx = true} : vector<1x8x1xf32> -> vector<1x8x1xf32>
    %298 = vector.broadcast %297 : vector<1x8x1xf32> to vector<1x8x8xf32>
    %299 = arith.mulf %294, %298 : vector<1x8x8xf32>
    %300 = arith.truncf %299 : vector<1x8x8xf32> to vector<1x8x8xbf16>
    %301 = vector.extract_strided_slice %230 {offsets = [0, 0, 96], sizes = [1, 8, 32], strides = [1, 1, 1]} : vector<1x8x128xbf16> to vector<1x8x32xbf16>
    "tpu.trace_start"() <{level = 10 : i32, message = "bqk,bkd->bqd"}> : () -> ()
    %cst_87 = arith.constant dense<0.000000e+00> : vector<1x8x32xf32>
    %302 = tpu.matmul %300, %301, %cst_87 {dimension_numbers = #tpu.dot_dimension_numbers<[2], [1], [1], [2], [0, 0, 0, 1, 1, 2], [0], [0]>} : vector<1x8x8xbf16>, vector<1x8x32xbf16>, vector<1x8x32xf32> -> vector<1x8x32xf32>
    "tpu.trace_stop"() : () -> ()
    %303 = tpu.concatenate %248, %266, %284, %302 in 2 : vector<1x8x32xf32>, vector<1x8x32xf32>, vector<1x8x32xf32>, vector<1x8x32xf32> -> vector<1x8x128xf32>
    %304 = vector.shape_cast %303 : vector<1x8x128xf32> to vector<8x128xf32>
    %305 = vector.extract_strided_slice %209 {offsets = [0, 384], sizes = [128, 128], strides = [1, 1]} : vector<128x768xbf16> to vector<128x128xbf16>
    %306 = arith.truncf %304 : vector<8x128xf32> to vector<8x128xbf16>
    %cst_88 = arith.constant dense<0.000000e+00> : vector<8x128xf32>
    %307 = tpu.matmul %306, %305, %cst_88 {dimension_numbers = #tpu.dot_dimension_numbers<[1], [0], [0], [1], [0, 0, 1, 1], [], []>} : vector<8x128xbf16>, vector<128x128xbf16>, vector<8x128xf32> -> vector<8x128xf32>
    %c14 = arith.constant 14 : index
    %c0_89 = arith.constant 0 : index
    %308 = vector.load %arg5[%c14, %c0_89] : memref<20x128xf32, #tpu.memory_space<vmem>>, vector<1x128xf32>
    %309 = vector.broadcast %308 : vector<1x128xf32> to vector<8x128xf32>
    %310 = arith.addf %307, %309 : vector<8x128xf32>
    %311 = arith.addf %310, %207 : vector<8x128xf32>
    %c15 = arith.constant 15 : index
    %c0_90 = arith.constant 0 : index
    %312 = vector.load %arg5[%c15, %c0_90] : memref<20x128xf32, #tpu.memory_space<vmem>>, vector<1x128xf32>
    %c16 = arith.constant 16 : index
    %c0_91 = arith.constant 0 : index
    %313 = vector.load %arg5[%c16, %c0_91] : memref<20x128xf32, #tpu.memory_space<vmem>>, vector<1x128xf32>
    %cst_92 = arith.constant dense<0.000000e+00> : vector<8xf32>
    %314 = vector.multi_reduction <add>, %311, %cst_92 [1] : vector<8x128xf32> to vector<8xf32>
    %315 = vector.shape_cast %314 : vector<8xf32> to vector<8x1xf32>
    %cst_93 = arith.constant 1.280000e+02 : f32
    %316 = vector.broadcast %cst_93 : f32 to vector<8x1xf32>
    %317 = arith.divf %315, %316 : vector<8x1xf32>
    %318 = vector.broadcast %317 : vector<8x1xf32> to vector<8x128xf32>
    %319 = arith.subf %311, %318 : vector<8x128xf32>
    %320 = arith.mulf %319, %319 : vector<8x128xf32>
    %cst_94 = arith.constant dense<0.000000e+00> : vector<8xf32>
    %321 = vector.multi_reduction <add>, %320, %cst_94 [1] : vector<8x128xf32> to vector<8xf32>
    %322 = vector.shape_cast %321 : vector<8xf32> to vector<8x1xf32>
    %cst_95 = arith.constant 1.280000e+02 : f32
    %323 = vector.broadcast %cst_95 : f32 to vector<8x1xf32>
    %324 = arith.divf %322, %323 : vector<8x1xf32>
    %325 = vector.broadcast %317 : vector<8x1xf32> to vector<8x128xf32>
    %326 = arith.subf %311, %325 : vector<8x128xf32>
    %cst_96 = arith.constant 9.99999996E-13 : f32
    %327 = vector.broadcast %cst_96 : f32 to vector<8x1xf32>
    %328 = arith.addf %324, %327 : vector<8x1xf32>
    %329 = math.rsqrt %328 : vector<8x1xf32>
    %330 = vector.broadcast %329 : vector<8x1xf32> to vector<8x128xf32>
    %331 = arith.mulf %326, %330 : vector<8x128xf32>
    %332 = vector.broadcast %312 : vector<1x128xf32> to vector<8x128xf32>
    %333 = arith.mulf %331, %332 : vector<8x128xf32>
    %334 = vector.broadcast %313 : vector<1x128xf32> to vector<8x128xf32>
    %335 = arith.addf %333, %334 : vector<8x128xf32>
    %336 = vector.extract_strided_slice %209 {offsets = [0, 512], sizes = [128, 256], strides = [1, 1]} : vector<128x768xbf16> to vector<128x256xbf16>
    %337 = arith.truncf %335 : vector<8x128xf32> to vector<8x128xbf16>
    %cst_97 = arith.constant dense<0.000000e+00> : vector<8x256xf32>
    %338 = tpu.matmul %337, %336, %cst_97 {dimension_numbers = #tpu.dot_dimension_numbers<[1], [0], [0], [1], [0, 0, 1, 1], [], []>} : vector<8x128xbf16>, vector<128x256xbf16>, vector<8x256xf32> -> vector<8x256xf32>
    %c1_98 = arith.constant 1 : index
    %c0_99 = arith.constant 0 : index
    %c0_100 = arith.constant 0 : index
    %339 = vector.load %arg6[%c1_98, %c0_99, %c0_100] : memref<2x1x256xf32, #tpu.memory_space<vmem>>, vector<1x1x256xf32>
    %340 = vector.shape_cast %339 : vector<1x1x256xf32> to vector<1x256xf32>
    %341 = vector.broadcast %340 : vector<1x256xf32> to vector<8x256xf32>
    %342 = arith.addf %338, %341 : vector<8x256xf32>
    %cst_101 = arith.constant 5.000000e-01 : f32
    %343 = vector.broadcast %cst_101 : f32 to vector<8x256xf32>
    %344 = arith.mulf %343, %342 : vector<8x256xf32>
    %cst_102 = arith.constant 4.471500e-02 : f32
    %345 = vector.broadcast %cst_102 : f32 to vector<8x256xf32>
    %346 = arith.mulf %345, %342 : vector<8x256xf32>
    %347 = arith.mulf %346, %342 : vector<8x256xf32>
    %348 = arith.mulf %347, %342 : vector<8x256xf32>
    %349 = arith.addf %342, %348 : vector<8x256xf32>
    %cst_103 = arith.constant 0.797884583 : f32
    %350 = vector.broadcast %cst_103 : f32 to vector<8x256xf32>
    %351 = arith.mulf %350, %349 : vector<8x256xf32>
    %352 = math.tanh %351 : vector<8x256xf32>
    %cst_104 = arith.constant 1.000000e+00 : f32
    %353 = vector.broadcast %cst_104 : f32 to vector<8x256xf32>
    %354 = arith.addf %353, %352 : vector<8x256xf32>
    %355 = arith.mulf %344, %354 : vector<8x256xf32>
    %c1_105 = arith.constant 1 : index
    %c0_106 = arith.constant 0 : index
    %c0_107 = arith.constant 0 : index
    %356 = vector.load %arg4[%c1_105, %c0_106, %c0_107] : memref<2x256x128xbf16, #tpu.memory_space<vmem>>, vector<1x256x128xbf16>
    %357 = vector.shape_cast %356 : vector<1x256x128xbf16> to vector<256x128xbf16>
    %358 = arith.truncf %355 : vector<8x256xf32> to vector<8x256xbf16>
    %cst_108 = arith.constant dense<0.000000e+00> : vector<8x128xf32>
    %359 = tpu.matmul %358, %357, %cst_108 {dimension_numbers = #tpu.dot_dimension_numbers<[1], [0], [0], [1], [0, 0, 1, 1], [], []>} : vector<8x256xbf16>, vector<256x128xbf16>, vector<8x128xf32> -> vector<8x128xf32>
    %c17 = arith.constant 17 : index
    %c0_109 = arith.constant 0 : index
    %360 = vector.load %arg5[%c17, %c0_109] : memref<20x128xf32, #tpu.memory_space<vmem>>, vector<1x128xf32>
    %361 = vector.broadcast %360 : vector<1x128xf32> to vector<8x128xf32>
    %362 = arith.addf %359, %361 : vector<8x128xf32>
    %363 = arith.addf %362, %335 : vector<8x128xf32>
    %c18 = arith.constant 18 : index
    %c0_110 = arith.constant 0 : index
    %364 = vector.load %arg5[%c18, %c0_110] : memref<20x128xf32, #tpu.memory_space<vmem>>, vector<1x128xf32>
    %c19 = arith.constant 19 : index
    %c0_111 = arith.constant 0 : index
    %365 = vector.load %arg5[%c19, %c0_111] : memref<20x128xf32, #tpu.memory_space<vmem>>, vector<1x128xf32>
    %cst_112 = arith.constant dense<0.000000e+00> : vector<8xf32>
    %366 = vector.multi_reduction <add>, %363, %cst_112 [1] : vector<8x128xf32> to vector<8xf32>
    %367 = vector.shape_cast %366 : vector<8xf32> to vector<8x1xf32>
    %cst_113 = arith.constant 1.280000e+02 : f32
    %368 = vector.broadcast %cst_113 : f32 to vector<8x1xf32>
    %369 = arith.divf %367, %368 : vector<8x1xf32>
    %370 = vector.broadcast %369 : vector<8x1xf32> to vector<8x128xf32>
    %371 = arith.subf %363, %370 : vector<8x128xf32>
    %372 = arith.mulf %371, %371 : vector<8x128xf32>
    %cst_114 = arith.constant dense<0.000000e+00> : vector<8xf32>
    %373 = vector.multi_reduction <add>, %372, %cst_114 [1] : vector<8x128xf32> to vector<8xf32>
    %374 = vector.shape_cast %373 : vector<8xf32> to vector<8x1xf32>
    %cst_115 = arith.constant 1.280000e+02 : f32
    %375 = vector.broadcast %cst_115 : f32 to vector<8x1xf32>
    %376 = arith.divf %374, %375 : vector<8x1xf32>
    %377 = vector.broadcast %369 : vector<8x1xf32> to vector<8x128xf32>
    %378 = arith.subf %363, %377 : vector<8x128xf32>
    %cst_116 = arith.constant 9.99999996E-13 : f32
    %379 = vector.broadcast %cst_116 : f32 to vector<8x1xf32>
    %380 = arith.addf %376, %379 : vector<8x1xf32>
    %381 = math.rsqrt %380 : vector<8x1xf32>
    %382 = vector.broadcast %381 : vector<8x1xf32> to vector<8x128xf32>
    %383 = arith.mulf %378, %382 : vector<8x128xf32>
    %384 = vector.broadcast %364 : vector<1x128xf32> to vector<8x128xf32>
    %385 = arith.mulf %383, %384 : vector<8x128xf32>
    %386 = vector.broadcast %365 : vector<1x128xf32> to vector<8x128xf32>
    %387 = arith.addf %385, %386 : vector<8x128xf32>
    %c0_117 = arith.constant 0 : index
    %c0_118 = arith.constant 0 : index
    %c0_119 = arith.constant 0 : index
    %388 = vector.load %arg7[%c0_117, %c0_118, %c0_119] : memref<1x8x128xf32, #tpu.memory_space<vmem>>, vector<1x8x128xf32>
    %389 = vector.shape_cast %388 : vector<1x8x128xf32> to vector<8x128xf32>
    %390 = vector.shape_cast %387 : vector<8x128xf32> to vector<1x8x128xf32>
    tpu.vector_store %arg7[%c0_117, %c0_118, %c0_119], %390 {strides = array<i32>} : memref<1x8x128xf32, #tpu.memory_space<vmem>>, vector<1x8x128xf32>,
    return
  }
  func.func @transform_0(%arg0: i32) -> (i32, i32, i32) {
    %c0_i32 = arith.constant 0 : i32
    %c0_i32_0 = arith.constant 0 : i32
    %c0_i32_1 = arith.constant 0 : i32
    return %arg0, %c0_i32, %c0_i32_0 : i32, i32, i32
  }
  func.func @transform_1(%arg0: i32) -> (i32, i32, i32, i32) {
    %c0_i32 = arith.constant 0 : i32
    %c0_i32_0 = arith.constant 0 : i32
    %c0_i32_1 = arith.constant 0 : i32
    %c0_i32_2 = arith.constant 0 : i32
    return %arg0, %c0_i32, %c0_i32_0, %c0_i32_1 : i32, i32, i32, i32
  }
  func.func @transform_2(%arg0: i32) -> (i32, i32, i32) {
    %c0_i32 = arith.constant 0 : i32
    %c0_i32_0 = arith.constant 0 : i32
    %c0_i32_1 = arith.constant 0 : i32
    %c0_i32_2 = arith.constant 0 : i32
    return %c0_i32, %c0_i32_0, %c0_i32_1 : i32, i32, i32
  }
  func.func @transform_3(%arg0: i32) -> (i32, i32, i32) {
    %c0_i32 = arith.constant 0 : i32
    %c0_i32_0 = arith.constant 0 : i32
    %c0_i32_1 = arith.constant 0 : i32
    %c0_i32_2 = arith.constant 0 : i32
    return %c0_i32, %c0_i32_0, %c0_i32_1 : i32, i32, i32
  }
  func.func @transform_4(%arg0: i32) -> (i32, i32) {
    %c0_i32 = arith.constant 0 : i32
    %c0_i32_0 = arith.constant 0 : i32
    %c0_i32_1 = arith.constant 0 : i32
    return %c0_i32, %c0_i32_0 : i32, i32
  }
  func.func @transform_5(%arg0: i32) -> (i32, i32, i32) {
    %c0_i32 = arith.constant 0 : i32
    %c0_i32_0 = arith.constant 0 : i32
    %c0_i32_1 = arith.constant 0 : i32
    %c0_i32_2 = arith.constant 0 : i32
    return %c0_i32, %c0_i32_0, %c0_i32_1 : i32, i32, i32
  }
  func.func @transform_6(%arg0: i32) -> (i32, i32, i32) {
    %c0_i32 = arith.constant 0 : i32
    %c0_i32_0 = arith.constant 0 : i32
    %c0_i32_1 = arith.constant 0 : i32
    return %arg0, %c0_i32, %c0_i32_0 : i32, i32, i32
  }
}

</mosaic_0001>

<llo_original>
// kernel: bert_tuned_encoder_forward.1
$region0: #{bert_tuned_encoder_forward.1}
  #allocation0 [shape = 'u32[]', space=smem, size = 0x4, offset = 0x4, fixed_abs, tag = 'smem constant byte address 0x4 - core index']
  #allocation1 [shape = 'u32[144,128]{1,0:T(1,128)}', space=vmem, size = 0x12000, scoped, tag = 'internal scratch']
  %s0 = inlined_call_operand.vmem [shape: f32[2,8,128], index: 0, kind: input, shape index: {}]
  %s1 = inlined_call_operand.vmem [shape: f32[2,1,1,8], index: 1, kind: input, shape index: {}]
  %s2 = inlined_call_operand.hbm [shape: bf16[2,128,768], index: 2, kind: input, shape index: {}]
  %s3 = inlined_call_operand.hbm [shape: bf16[2,256,128], index: 3, kind: input, shape index: {}]
  %s4 = inlined_call_operand.vmem [shape: f32[20,128], index: 4, kind: input, shape index: {}]
  %s5 = inlined_call_operand.vmem [shape: f32[2,1,256], index: 5, kind: input, shape index: {}]
  %s6 = inlined_call_operand.hbm [shape: f32[2,8,128], index: 6, kind: output, shape index: {}]
  %s7 = sld [smem:[#allocation0]]
  $region65: #{bert_tuned_encoder_forward.1} parent=0
    _
  %s9 = ssub.s32 1, %s7
  %s10 = scalar_select 0, %s9, %s7
  $region1: #{bert_tuned_encoder_forward.1} parent=0
    #allocation2 [shape = 'u8[393216]{0}', space=vmem, size = 0x60000, scoped, tag = 'input window, operand 2, single buffered']
    #allocation3 [shape = 's32[2]{0}', space=sflag, size = 0x8, scoped, tag = 'scoped memory for bert_tuned_encoder_forward.1']
    #allocation4 [shape = 's32[2]{0}', space=sflag, size = 0x8, scoped, tag = 'scoped memory for bert_tuned_encoder_forward.1']
    #allocation5 [shape = 'u8[131072]{0}', space=vmem, size = 0x20000, scoped, tag = 'input window, operand 3, single buffered']
    #allocation6 [shape = 's32[1]{0}', space=sflag, size = 0x4, scoped, tag = 'scoped memory for bert_tuned_encoder_forward.1']
    #allocation7 [shape = 'u8[8192]{0}', space=vmem, size = 0x2000, scoped, tag = 'output window, operand 0']
    %11 = vsyncpa [#allocation3], 0
    %12 = vsyncpa [#allocation6], 0
    %13 = vsyncpa [#allocation4], 0
    %s14 = scalar_lea.sflag [#allocation4], 1
    %15 = vsyncpa %s14, 0
    loop: start=0, step=1, limit=4
    $region2: #{bert_tuned_encoder_forward.1} parent=1 // loop_pre_header
      _
    $region3: #{bert_tuned_encoder_forward.1} parent=1 // loop_header
      %s17 = sphi 0, %s21
      %p18 = scmp.ge.s32.totalorder %s17, 4
      %s27 = sphi 0, %s29
      %s30 = sphi 0, %s27
      %s31 = sphi 0, %s30
      %s47 = sphi 0, %s31
      %s53 = sphi 0, %s55
      %s56 = sphi 0, %s53
      %s57 = sphi 0, %s56
      %s73 = sphi 0, %s57
      %s77 = sphi 0, %s77
      %s79 = sphi 0, %s77
      %s80 = sphi 0, %s79
      %s94 = sphi 0, %s80
      %s98 = sphi 0, %s98
      %s100 = sphi 0, %s98
      %s101 = sphi 0, %s100
      %s115 = sphi 0, %s101
      %s119 = sphi 0, %s119
      %s121 = sphi 0, %s119
      %s122 = sphi 0, %s121
      %s136 = sphi 0, %s122
      %s140 = sphi 0, %s140
      %s142 = sphi 0, %s140
      %s143 = sphi 0, %s142
      %s157 = sphi 0, %s143
      %s163 = sphi 0, %s165
      %s166 = sphi 0, %s163
      %s167 = sphi 0, %s166
      %s183 = sphi 0, %s167
    $region4: #{bert_tuned_encoder_forward.1} parent=1 // loop_header_branch
      %20 = sbr.rel (%p18) target = $region8
    $region5: #{bert_tuned_encoder_forward.1} parent=1 // loop_body
      %s22 = ssub.s32 %s17, 1
      %s23 = ssub.s32 %s17, 2
      %s24 = sadd.s32 %s17, 1
      %s25 = ssub.s32 %s17, %s24
      %p26 = scmp.eq.s32.totalorder %s25, 0
      %s28 = sadd.s32 %s27, 1
      %s29 = scalar_select %p26, %s27, %s28
      %p32 = pneg %p26
      %p33 = scmp.eq.s32.totalorder %s17, 1
      %p34 = por %p32, %p33
      %p35 = scmp.ne.s32.totalorder %s27, %s30
      %p36 = scmp.eq.s32.totalorder %s17, 0
      %p37 = por %p35, %p36
      %p38 = scmp.ne.s32.totalorder %s27, %s30
      %p39 = scmp.eq.s32.totalorder %s22, 1
      %p40 = por %p38, %p39
      %p41 = scmp.ne.s32.totalorder %s30, %s31
      %p42 = scmp.eq.s32.totalorder %s22, 0
      %p43 = por %p41, %p42
      %p44 = scmp.ne.s32.totalorder %s30, %s31
      %p45 = scmp.eq.s32.totalorder %s23, 1
      %p46 = por %p44, %p45
      %p48 = scmp.ne.s32.totalorder %s31, %s47
      %p49 = scmp.eq.s32.totalorder %s23, 0
      %p50 = por %p48, %p49
      %s51 = ssub.s32 %s17, %s24
      %p52 = scmp.eq.s32.totalorder %s51, 0
      %s54 = sadd.s32 %s53, 1
      %s55 = scalar_select %p52, %s53, %s54
      %p58 = pneg %p52
      %p59 = scmp.eq.s32.totalorder %s17, 1
      %p60 = por %p58, %p59
      %p61 = scmp.ne.s32.totalorder %s53, %s56
      %p62 = scmp.eq.s32.totalorder %s17, 0
      %p63 = por %p61, %p62
      %p64 = scmp.ne.s32.totalorder %s53, %s56
      %p65 = scmp.eq.s32.totalorder %s22, 1
      %p66 = por %p64, %p65
      %p67 = scmp.ne.s32.totalorder %s56, %s57
      %p68 = scmp.eq.s32.totalorder %s22, 0
      %p69 = por %p67, %p68
      %p70 = scmp.ne.s32.totalorder %s56, %s57
      %p71 = scmp.eq.s32.totalorder %s23, 1
      %p72 = por %p70, %p71
      %p74 = scmp.ne.s32.totalorder %s57, %s73
      %p75 = scmp.eq.s32.totalorder %s23, 0
      %p76 = por %p74, %p75
      %s78 = sadd.s32 %s77, 1
      %p81 = scmp.eq.s32.totalorder %s17, 1
      %p82 = scmp.ne.s32.totalorder %s77, %s79
      %p83 = scmp.eq.s32.totalorder %s17, 0
      %p84 = por %p82, %p83
      %p85 = scmp.ne.s32.totalorder %s77, %s79
      %p86 = scmp.eq.s32.totalorder %s22, 1
      %p87 = por %p85, %p86
      %p88 = scmp.ne.s32.totalorder %s79, %s80
      %p89 = scmp.eq.s32.totalorder %s22, 0
      %p90 = por %p88, %p89
      %p91 = scmp.ne.s32.totalorder %s79, %s80
      %p92 = scmp.eq.s32.totalorder %s23, 1
      %p93 = por %p91, %p92
      %p95 = scmp.ne.s32.totalorder %s80, %s94
      %p96 = scmp.eq.s32.totalorder %s23, 0
      %p97 = por %p95, %p96
      %s99 = sadd.s32 %s98, 1
      %p102 = scmp.eq.s32.totalorder %s17, 1
      %p103 = scmp.ne.s32.totalorder %s98, %s100
      %p104 = scmp.eq.s32.totalorder %s17, 0
      %p105 = por %p103, %p104
      %p106 = scmp.ne.s32.totalorder %s98, %s100
      %p107 = scmp.eq.s32.totalorder %s22, 1
      %p108 = por %p106, %p107
      %p109 = scmp.ne.s32.totalorder %s100, %s101
      %p110 = scmp.eq.s32.totalorder %s22, 0
      %p111 = por %p109, %p110
      %p112 = scmp.ne.s32.totalorder %s100, %s101
      %p113 = scmp.eq.s32.totalorder %s23, 1
      %p114 = por %p112, %p113
      %p116 = scmp.ne.s32.totalorder %s101, %s115
      %p117 = scmp.eq.s32.totalorder %s23, 0
      %p118 = por %p116, %p117
      %s120 = sadd.s32 %s119, 1
      %p123 = scmp.eq.s32.totalorder %s17, 1
      %p124 = scmp.ne.s32.totalorder %s119, %s121
      %p125 = scmp.eq.s32.totalorder %s17, 0
      %p126 = por %p124, %p125
      %p127 = scmp.ne.s32.totalorder %s119, %s121
      %p128 = scmp.eq.s32.totalorder %s22, 1
      %p129 = por %p127, %p128
      %p130 = scmp.ne.s32.totalorder %s121, %s122
      %p131 = scmp.eq.s32.totalorder %s22, 0
      %p132 = por %p130, %p131
      %p133 = scmp.ne.s32.totalorder %s121, %s122
      %p134 = scmp.eq.s32.totalorder %s23, 1
      %p135 = por %p133, %p134
      %p137 = scmp.ne.s32.totalorder %s122, %s136
      %p138 = scmp.eq.s32.totalorder %s23, 0
      %p139 = por %p137, %p138
      %s141 = sadd.s32 %s140, 1
      %p144 = scmp.eq.s32.totalorder %s17, 1
      %p145 = scmp.ne.s32.totalorder %s140, %s142
      %p146 = scmp.eq.s32.totalorder %s17, 0
      %p147 = por %p145, %p146
      %p148 = scmp.ne.s32.totalorder %s140, %s142
      %p149 = scmp.eq.s32.totalorder %s22, 1
      %p150 = por %p148, %p149
      %p151 = scmp.ne.s32.totalorder %s142, %s143
      %p152 = scmp.eq.s32.totalorder %s22, 0
      %p153 = por %p151, %p152
      %p154 = scmp.ne.s32.totalorder %s142, %s143
      %p155 = scmp.eq.s32.totalorder %s23, 1
      %p156 = por %p154, %p155
      %p158 = scmp.ne.s32.totalorder %s143, %s157
      %p159 = scmp.eq.s32.totalorder %s23, 0
      %p160 = por %p158, %p159
      %s161 = ssub.s32 %s17, %s24
      %p162 = scmp.eq.s32.totalorder %s161, 0
      %s164 = sadd.s32 %s163, 1
      %s165 = scalar_select %p162, %s163, %s164
      %p168 = pneg %p162
      %p169 = scmp.eq.s32.totalorder %s17, 1
      %p170 = por %p168, %p169
      %p171 = scmp.ne.s32.totalorder %s163, %s166
      %p172 = scmp.eq.s32.totalorder %s17, 0
      %p173 = por %p171, %p172
      %p174 = scmp.ne.s32.totalorder %s163, %s166
      %p175 = scmp.eq.s32.totalorder %s22, 1
      %p176 = por %p174, %p175
      %p177 = scmp.ne.s32.totalorder %s166, %s167
      %p178 = scmp.eq.s32.totalorder %s22, 0
      %p179 = por %p177, %p178
      %p180 = scmp.ne.s32.totalorder %s166, %s167
      %p181 = scmp.eq.s32.totalorder %s23, 1
      %p182 = por %p180, %p181
      %p184 = scmp.ne.s32.totalorder %s167, %s183
      %p185 = scmp.eq.s32.totalorder %s23, 0
      %p186 = por %p184, %p185
      %p187 = scmp.le.s32.totalorder 1, %s17
      %p188 = scmp.lt.s32.totalorder %s17, 3
      %p189 = pnand %p187, %p188
      %p190 = pneg %p189
      // Predicated region
      $region9: #{bert_tuned_encoder_forward.1} parent=5 // pred_check
        _
      $region10: #{bert_tuned_encoder_forward.1} parent=5 // pred_check_branch
        %192 = sbr.rel (%p189) target = $region12
      $region11: #{bert_tuned_encoder_forward.1} parent=5 // pred_region
        %s193 = ssub.s32 %s17, 1
        // Predicated region
        $region13: #{bert_tuned_encoder_forward.1} parent=11 // pred_check
          %p194 = pneg %p90
        $region14: #{bert_tuned_encoder_forward.1} parent=11 // pred_check_branch
          %196 = sbr.rel (%p194) target = $region16
        $region15: #{bert_tuned_encoder_forward.1} parent=11 // pred_region
          %s198 = ssub.s32 12288, 12288
          %199 = vsyncadd [#allocation3], %s198
          %s200 = sshll.u32 [#allocation2], 4
          %s201 = int_to_ptr.vmem [resolvable:$true] %s200
          %206 = dma.hbm_to_vmem [thread:$0]  %s2, 12288, %s201, [#allocation3], 384, 384, 24
        $region16: #{bert_tuned_encoder_forward.1} parent=11 // pred_fallthru
          _
        // Predicated region
        $region17: #{bert_tuned_encoder_forward.1} parent=11 // pred_check
          %p207 = pneg %p111
        $region18: #{bert_tuned_encoder_forward.1} parent=11 // pred_check_branch
          %209 = sbr.rel (%p207) target = $region20
        $region19: #{bert_tuned_encoder_forward.1} parent=11 // pred_region
          %s211 = ssub.s32 4096, 4096
          %212 = vsyncadd [#allocation6], %s211
          %s213 = sshll.u32 [#allocation5], 4
          %s214 = int_to_ptr.vmem [resolvable:$true] %s213
          %219 = dma.hbm_to_vmem [thread:$0]  %s3, 4096, %s214, [#allocation6], 64, 64, 4
        $region20: #{bert_tuned_encoder_forward.1} parent=11 // pred_fallthru
          _
        // Predicated region
        $region21: #{bert_tuned_encoder_forward.1} parent=11 // pred_check
          %p220 = pneg %p132
        $region22: #{bert_tuned_encoder_forward.1} parent=11 // pred_check_branch
          %222 = sbr.rel (%p220) target = $region24
        $region23: #{bert_tuned_encoder_forward.1} parent=11 // pred_region
          _
        $region24: #{bert_tuned_encoder_forward.1} parent=11 // pred_fallthru
          _
        // Predicated region
        $region25: #{bert_tuned_encoder_forward.1} parent=11 // pred_check
          %p223 = pneg %p153
        $region26: #{bert_tuned_encoder_forward.1} parent=11 // pred_check_branch
          %225 = sbr.rel (%p223) target = $region28
        $region27: #{bert_tuned_encoder_forward.1} parent=11 // pred_region
          _
        $region28: #{bert_tuned_encoder_forward.1} parent=11 // pred_fallthru
          _
      $region12: #{bert_tuned_encoder_forward.1} parent=5 // pred_fallthru
        _
      %p226 = scmp.lt.s32.totalorder %s17, 2
      // Predicated region
      $region29: #{bert_tuned_encoder_forward.1} parent=5 // pred_check
        %p227 = pneg %p226
      $region30: #{bert_tuned_encoder_forward.1} parent=5 // pred_check_branch
        %229 = sbr.rel (%p227) target = $region32
      $region31: #{bert_tuned_encoder_forward.1} parent=5 // pred_region
        // Predicated region
        $region33: #{bert_tuned_encoder_forward.1} parent=31 // pred_check
          %p230 = pneg %p37
        $region34: #{bert_tuned_encoder_forward.1} parent=31 // pred_check_branch
          %232 = sbr.rel (%p230) target = $region36
        $region35: #{bert_tuned_encoder_forward.1} parent=31 // pred_region
          %p233 = scmp.lt.s32.totalorder %s17, 1
          %s234 = scalar_select %p233, %s17, 1
          %s235 = smul.addr %s234, 8
          %s236 = scalar_lea.vmem %s0, %s235
        $region36: #{bert_tuned_encoder_forward.1} parent=31 // pred_fallthru
          _
        // Predicated region
        $region37: #{bert_tuned_encoder_forward.1} parent=31 // pred_check
          %p237 = pneg %p63
        $region38: #{bert_tuned_encoder_forward.1} parent=31 // pred_check_branch
          %239 = sbr.rel (%p237) target = $region40
        $region39: #{bert_tuned_encoder_forward.1} parent=31 // pred_region
          %p240 = scmp.lt.s32.totalorder %s17, 1
          %s241 = scalar_select %p240, %s17, 1
          %s242 = scalar_lea.vmem %s1, %s241
        $region40: #{bert_tuned_encoder_forward.1} parent=31 // pred_fallthru
          _
      $region32: #{bert_tuned_encoder_forward.1} parent=5 // pred_fallthru
        _
      %p243 = scmp.le.s32.totalorder 1, %s17
      %p244 = scmp.lt.s32.totalorder %s17, 3
      %p245 = pnand %p243, %p244
      %p246 = pneg %p245
      // Predicated region
      $region41: #{bert_tuned_encoder_forward.1} parent=5 // pred_check
        _
      $region42: #{bert_tuned_encoder_forward.1} parent=5 // pred_check_branch
        %248 = sbr.rel (%p245) target = $region44
      $region43: #{bert_tuned_encoder_forward.1} parent=5 // pred_region
        %s249 = ssub.s32 %s17, 1
        // Predicated region
        $region45: #{bert_tuned_encoder_forward.1} parent=43 // pred_check
          %p250 = pneg %p90
        $region46: #{bert_tuned_encoder_forward.1} parent=43 // pred_check_branch
          %252 = sbr.rel (%p250) target = $region48
        $region47: #{bert_tuned_encoder_forward.1} parent=43 // pred_region
          %253 = dma.done [#allocation3], 12288
        $region48: #{bert_tuned_encoder_forward.1} parent=43 // pred_fallthru
          _
        // Predicated region
        $region49: #{bert_tuned_encoder_forward.1} parent=43 // pred_check
          %p254 = pneg %p111
        $region50: #{bert_tuned_encoder_forward.1} parent=43 // pred_check_branch
          %256 = sbr.rel (%p254) target = $region52
        $region51: #{bert_tuned_encoder_forward.1} parent=43 // pred_region
          %257 = dma.done [#allocation6], 4096
        $region52: #{bert_tuned_encoder_forward.1} parent=43 // pred_fallthru
          _
        %p258 = scmp.lt.s32.totalorder %s22, 1
        %s259 = scalar_select %p258, %s22, 1
        %s260 = smul.addr %s259, 8
        %s261 = scalar_lea.vmem %s0, %s260
        %p262 = pneg %p43
        %p263 = pneg %p40
        %p264 = scmp.lt.s32.totalorder %s22, 1
        %s265 = scalar_select %p264, %s22, 1
        %s266 = scalar_lea.vmem %s1, %s265
        %p267 = pneg %p69
        %p268 = pneg %p66
        %p269 = pneg %p90
        %p270 = pneg %p87
        %p271 = pneg %p111
        %p272 = pneg %p108
        %p273 = pneg %p132
        %p274 = pneg %p129
        %p275 = pneg %p153
        %p276 = pneg %p150
        %p277 = pneg %p179
        %p278 = pneg %p176
        %s279 = sand.u32 %s166, 1
        %s280 = scalar_lea.sflag [#allocation4], %s279
        %s281 = sand.u32 %s166, 1
        %s282 = smul.addr %s281, 8
        %s283 = scalar_lea.vmem [#allocation7], %s282
        %p284 = scmp.lt.s32.totalorder %s22, 1
        %s285 = scalar_select %p284, %s22, 1
        %s286 = smul.addr %s285, 8
        %s287 = scalar_lea.vmem %s0, %s286
        %p288 = scmp.lt.s32.totalorder %s22, 1
        %s289 = scalar_select %p288, %s22, 1
        %s290 = scalar_lea.vmem %s1, %s289
        %v292 = vld [vmem:[%s287] sm:$0xff]
        %v293 = vld [vmem:[%s4] sm:$0x1]
        %v294 = vld [vmem:[%s4 + $0x1] sm:$0x1]
        %295 = vadd.xlane.f32.xlu0 %v292
        %v296 = vpop.xlane.xlu0 %295
        %v297 = vrcp.pop 128.0
        %v298 = vmul.f32 %v296, %v297
        %v299 = vsub.f32 %v292, %v298
        %v300 = vmul.f32 %v299, %v299
        %301 = vadd.xlane.f32.xlu0 %v300
        %v302 = vpop.xlane.xlu0 %301
        %v303 = vmul.f32 %v302, %v297
        %v304 = vadd.f32 %v303, 1e-12
        %v305 = vrsqrt.pop %v304
        %v306 = vmul.f32 %v299, %v305
        %v307 = vlaneseq
        %v308 = vshrl.u32 %v307, 7
        %v309 = vsub.s32 0, %v308
        %v310 = vrot.slane %v293, %v309
        %v311 = vmul.f32 %v306, %v310
        %v312 = vlaneseq
        %v313 = vshrl.u32 %v312, 7
        %v314 = vsub.s32 0, %v313
        %v315 = vrot.slane %v294, %v314
        %v316 = vadd.f32 %v311, %v315
        %v317 = vld [vmem:[%s290] sm:$0x1]
        %v318 = vld [vmem:[#allocation2] sm:$0xff]
        %v319 = vld [vmem:[#allocation2 + $0x8] sm:$0xff]
        %v320 = vld [vmem:[#allocation2 + $0x10] sm:$0xff]
        %v321 = vld [vmem:[#allocation2 + $0x18] sm:$0xff]
        %v322 = vld [vmem:[#allocation2 + $0x20] sm:$0xff]
        %v323 = vld [vmem:[#allocation2 + $0x28] sm:$0xff]
        %v324 = vld [vmem:[#allocation2 + $0x30] sm:$0xff]
        %v325 = vld [vmem:[#allocation2 + $0x38] sm:$0xff]
        %v326 = vld [vmem:[#allocation2 + $0x40] sm:$0xff]
        %v327 = vld [vmem:[#allocation2 + $0x48] sm:$0xff]
        %v328 = vld [vmem:[#allocation2 + $0x50] sm:$0xff]
        %v329 = vld [vmem:[#allocation2 + $0x58] sm:$0xff]
        %v330 = vld [vmem:[#allocation2 + $0x60] sm:$0xff]
        %v331 = vld [vmem:[#allocation2 + $0x68] sm:$0xff]
        %v332 = vld [vmem:[#allocation2 + $0x70] sm:$0xff]
        %v333 = vld [vmem:[#allocation2 + $0x78] sm:$0xff]
        %v334 = vld [vmem:[#allocation2 + $0x80] sm:$0xff]
        %v335 = vld [vmem:[#allocation2 + $0x88] sm:$0xff]
        %v336 = vld [vmem:[#allocation2 + $0x90] sm:$0xff]
        %v337 = vld [vmem:[#allocation2 + $0x98] sm:$0xff]
        %v338 = vld [vmem:[#allocation2 + $0xa0] sm:$0xff]
        %v339 = vld [vmem:[#allocation2 + $0xa8] sm:$0xff]
        %v340 = vld [vmem:[#allocation2 + $0xb0] sm:$0xff]
        %v341 = vld [vmem:[#allocation2 + $0xb8] sm:$0xff]
        %v342 = vld [vmem:[#allocation2 + $0xc0] sm:$0xff]
        %v343 = vld [vmem:[#allocation2 + $0xc8] sm:$0xff]
        %v344 = vld [vmem:[#allocation2 + $0xd0] sm:$0xff]
        %v345 = vld [vmem:[#allocation2 + $0xd8] sm:$0xff]
        %v346 = vld [vmem:[#allocation2 + $0xe0] sm:$0xff]
        %v347 = vld [vmem:[#allocation2 + $0xe8] sm:$0xff]
        %v348 = vld [vmem:[#allocation2 + $0xf0] sm:$0xff]
        %v349 = vld [vmem:[#allocation2 + $0xf8] sm:$0xff]
        %v350 = vld [vmem:[#allocation2 + $0x100] sm:$0xff]
        %v351 = vld [vmem:[#allocation2 + $0x108] sm:$0xff]
        %v352 = vld [vmem:[#allocation2 + $0x110] sm:$0xff]
        %v353 = vld [vmem:[#allocation2 + $0x118] sm:$0xff]
        %v354 = vld [vmem:[#allocation2 + $0x120] sm:$0xff]
        %v355 = vld [vmem:[#allocation2 + $0x128] sm:$0xff]
        %v356 = vld [vmem:[#allocation2 + $0x130] sm:$0xff]
        %v357 = vld [vmem:[#allocation2 + $0x138] sm:$0xff]
        %v358 = vld [vmem:[#allocation2 + $0x140] sm:$0xff]
        %v359 = vld [vmem:[#allocation2 + $0x148] sm:$0xff]
        %v360 = vld [vmem:[#allocation2 + $0x150] sm:$0xff]
        %v361 = vld [vmem:[#allocation2 + $0x158] sm:$0xff]
        %v362 = vld [vmem:[#allocation2 + $0x160] sm:$0xff]
        %v363 = vld [vmem:[#allocation2 + $0x168] sm:$0xff]
        %v364 = vld [vmem:[#allocation2 + $0x170] sm:$0xff]
        %v365 = vld [vmem:[#allocation2 + $0x178] sm:$0xff]
        %v366 = vpack.c.bf16 %v316, %v316
        %v399 = vunpack.c.l.b16 %v318
        %v400 = vunpack.c.h.b16 %v318
        %v401 = vunpack.c.l.b16 %v319
        %v402 = vunpack.c.l.b16 %v321
        %v403 = vunpack.c.h.b16 %v321
        %v404 = vunpack.c.l.b16 %v322
        %v405 = vunpack.c.l.b16 %v324
        %v406 = vunpack.c.h.b16 %v324
        %v407 = vunpack.c.l.b16 %v325
        %v408 = vunpack.c.l.b16 %v327
        %v409 = vunpack.c.h.b16 %v327
        %v410 = vunpack.c.l.b16 %v328
        %v411 = vunpack.c.l.b16 %v330
        %v412 = vunpack.c.h.b16 %v330
        %v413 = vunpack.c.l.b16 %v331
        %v414 = vunpack.c.l.b16 %v333
        %v415 = vunpack.c.h.b16 %v333
        %v416 = vunpack.c.l.b16 %v334
        %v417 = vunpack.c.l.b16 %v336
        %v418 = vunpack.c.h.b16 %v336
        %v419 = vunpack.c.l.b16 %v337
        %v420 = vunpack.c.l.b16 %v339
        %v421 = vunpack.c.h.b16 %v339
        %v422 = vunpack.c.l.b16 %v340
        %v423 = vunpack.c.l.b16 %v342
        %v424 = vunpack.c.h.b16 %v342
        %v425 = vunpack.c.l.b16 %v343
        %v426 = vunpack.c.l.b16 %v345
        %v427 = vunpack.c.h.b16 %v345
        %v428 = vunpack.c.l.b16 %v346
        %v429 = vunpack.c.l.b16 %v348
        %v430 = vunpack.c.h.b16 %v348
        %v431 = vunpack.c.l.b16 %v349
        %v432 = vunpack.c.l.b16 %v351
        %v433 = vunpack.c.h.b16 %v351
        %v434 = vunpack.c.l.b16 %v352
        %v435 = vunpack.c.l.b16 %v354
        %v436 = vunpack.c.h.b16 %v354
        %v437 = vunpack.c.l.b16 %v355
        %v438 = vunpack.c.l.b16 %v357
        %v439 = vunpack.c.h.b16 %v357
        %v440 = vunpack.c.l.b16 %v358
        %v441 = vunpack.c.l.b16 %v360
        %v442 = vunpack.c.h.b16 %v360
        %v443 = vunpack.c.l.b16 %v361
        %v444 = vunpack.c.l.b16 %v363
        %v445 = vunpack.c.h.b16 %v363
        %v446 = vunpack.c.l.b16 %v364
        %v447 = vpack.c.b16 %v402, %v399
        %v448 = vpack.c.b16 %v403, %v400
        %v449 = vpack.c.b16 %v404, %v401
        %v450 = vpack.c.b16 %v408, %v405
        %v451 = vpack.c.b16 %v409, %v406
        %v452 = vpack.c.b16 %v410, %v407
        %v453 = vpack.c.b16 %v414, %v411
        %v454 = vpack.c.b16 %v415, %v412
        %v455 = vpack.c.b16 %v416, %v413
        %v456 = vpack.c.b16 %v420, %v417
        %v457 = vpack.c.b16 %v421, %v418
        %v458 = vpack.c.b16 %v422, %v419
        %v459 = vpack.c.b16 %v426, %v423
        %v460 = vpack.c.b16 %v427, %v424
        %v461 = vpack.c.b16 %v428, %v425
        %v462 = vpack.c.b16 %v432, %v429
        %v463 = vpack.c.b16 %v433, %v430
        %v464 = vpack.c.b16 %v434, %v431
        %v465 = vpack.c.b16 %v438, %v435
        %v466 = vpack.c.b16 %v439, %v436
        %v467 = vpack.c.b16 %v440, %v437
        %v468 = vpack.c.b16 %v444, %v441
        %v469 = vpack.c.b16 %v445, %v442
        %v470 = vpack.c.b16 %v446, %v443
        %495 = vmatprep.subr.bf16.mxu0 %v448
        %496 = vmatpush1.bf16.msra.mxu0 %v447
        %497 = vmatprep.subr.bf16.mxu0 %v451
        %498 = vmatpush1.bf16.msra.mxu0 %v450
        %499 = vmatprep.subr.bf16.mxu0 %v454
        %500 = vmatpush1.bf16.msra.mxu0 %v453
        %501 = vmatprep.subr.bf16.mxu0 %v457
        %502 = vmatpush1.bf16.msra.mxu0 %v456
        %503 = vmatprep.subr.bf16.mxu0 %v460
        %504 = vmatpush1.bf16.msra.mxu0 %v459
        %505 = vmatprep.subr.bf16.mxu0 %v463
        %506 = vmatpush1.bf16.msra.mxu0 %v462
        %507 = vmatprep.subr.bf16.mxu0 %v466
        %508 = vmatpush1.bf16.msra.mxu0 %v465
        %509 = vmatprep.subr.bf16.mxu0 %v469
        %510 = vmatpush1.bf16.msra.mxu0 %v468
        %511 = vmatprep.subr.bf16.mxu0 0
        %512 = vmatpush1.bf16.msra.mxu0 0
        %513 = vmatprep.subr.bf16.mxu0 0
        %514 = vmatpush1.bf16.msra.mxu0 0
        %515 = vmatprep.subr.bf16.mxu0 0
        %516 = vmatpush1.bf16.msra.mxu0 0
        %517 = vmatprep.subr.bf16.mxu0 0
        %518 = vmatpush1.bf16.msra.mxu0 0
        %519 = vmatprep.subr.bf16.mxu0 0
        %520 = vmatpush1.bf16.msra.mxu0 0
        %521 = vmatprep.subr.bf16.mxu0 0
        %522 = vmatpush1.bf16.msra.mxu0 0
        %523 = vmatprep.subr.bf16.mxu0 0
        %524 = vmatpush1.bf16.msra.mxu0 0
        %525 = vmatprep.subr.bf16.mxu0 0
        %526 = vmatpush1.bf16.msra.mxu0 0
        %527 = vmatprep.mubr.bf16.mxu0 0
        %528 = vmatmul.mubr.bf16.gmra.mrb[0].mxu0 %v366
        %v529 = vpop.f32.mrb[0].mxu0
        %v530 = vadd.f32 0.0, %v529
        %v531 = vpop.f32.mrb[0].mxu0
        %v532 = vadd.f32 0.0, %v531
        %v533 = vpop.f32.mrb[0].mxu0
        %v534 = vpop.f32.mrb[0].mxu0
        %535 = vdwg.mxu0
        %536 = vmatprep.subr.bf16.mxu0 0
        %537 = vmatpush1.bf16.msra.mxu0 %v449
        %538 = vmatprep.subr.bf16.mxu0 0
        %539 = vmatpush1.bf16.msra.mxu0 %v452
        %540 = vmatprep.subr.bf16.mxu0 0
        %541 = vmatpush1.bf16.msra.mxu0 %v455
        %542 = vmatprep.subr.bf16.mxu0 0
        %543 = vmatpush1.bf16.msra.mxu0 %v458
        %544 = vmatprep.subr.bf16.mxu0 0
        %545 = vmatpush1.bf16.msra.mxu0 %v461
        %546 = vmatprep.subr.bf16.mxu0 0
        %547 = vmatpush1.bf16.msra.mxu0 %v464
        %548 = vmatprep.subr.bf16.mxu0 0
        %549 = vmatpush1.bf16.msra.mxu0 %v467
        %550 = vmatprep.subr.bf16.mxu0 0
        %551 = vmatpush1.bf16.msra.mxu0 %v470
        %552 = vmatprep.subr.bf16.mxu0 0
        %553 = vmatpush1.bf16.msra.mxu0 0
        %554 = vmatprep.subr.bf16.mxu0 0
        %555 = vmatpush1.bf16.msra.mxu0 0
        %556 = vmatprep.subr.bf16.mxu0 0
        %557 = vmatpush1.bf16.msra.mxu0 0
        %558 = vmatprep.subr.bf16.mxu0 0
        %559 = vmatpush1.bf16.msra.mxu0 0
        %560 = vmatprep.subr.bf16.mxu0 0
        %561 = vmatpush1.bf16.msra.mxu0 0
        %562 = vmatprep.subr.bf16.mxu0 0
        %563 = vmatpush1.bf16.msra.mxu0 0
        %564 = vmatprep.subr.bf16.mxu0 0
        %565 = vmatpush1.bf16.msra.mxu0 0
        %566 = vmatprep.subr.bf16.mxu0 0
        %567 = vmatpush1.bf16.msra.mxu0 0
        %568 = vmatprep.mubr.bf16.mxu0 0
        %569 = vmatmul.mubr.bf16.gmra.mrb[0].mxu0 %v366
        %v570 = vpop.f32.mrb[0].mxu0
        %v571 = vadd.f32 0.0, %v570
        %v572 = vpop.f32.mrb[0].mxu0
        %v573 = vpop.f32.mrb[0].mxu0
        %v574 = vpop.f32.mrb[0].mxu0
        %575 = vdwg.mxu0
        %v576 = vld [vmem:[%s4 + $0x2] sm:$0x1]
        %v577 = vlaneseq
        %v578 = vshrl.u32 %v577, 7
        %v579 = vsub.s32 0, %v578
        %v580 = vrot.slane %v576, %v579
        %v581 = vadd.f32 %v530, %v580
        %v582 = vpack.c.bf16 %v581, %v581
        %v583 = vld [vmem:[%s4 + $0x3] sm:$0x1]
        %v584 = vlaneseq
        %v585 = vshrl.u32 %v584, 7
        %v586 = vsub.s32 0, %v585
        %v587 = vrot.slane %v583, %v586
        %v588 = vadd.f32 %v532, %v587
        %v589 = vpack.c.bf16 %v588, %v588
        %v590 = vld [vmem:[%s4 + $0x4] sm:$0x1]
        %v591 = vlaneseq
        %v592 = vshrl.u32 %v591, 7
        %v593 = vsub.s32 0, %v592
        %v594 = vrot.slane %v590, %v593
        %v595 = vadd.f32 %v571, %v594
        %v596 = vpack.c.bf16 %v595, %v595
        %v598 = vlaneseq
        %v599 = vshrl.u32 %v598, 7
        %v600 = vsub.s32 0, %v599
        %v601 = vrot.slane %v317, %v600
        %vm603 = vcmask 261120
        %v605 = vsel %vm603, %v582, 0
        %v608 = vsel %vm603, %v589, 0
        %610 = vmatprep.subr.bf16.mxu0 0
        %611 = vmatpush1.bf16.xpose.msra.mxu0 %v608
        %612 = vmatprep.subr.bf16.mxu0 0
        %613 = vmatpush1.bf16.xpose.msra.mxu0 0
        %614 = vmatprep.subr.bf16.mxu0 0
        %615 = vmatpush1.bf16.xpose.msra.mxu0 0
        %616 = vmatprep.subr.bf16.mxu0 0
        %617 = vmatpush1.bf16.xpose.msra.mxu0 0
        %618 = vmatprep.subr.bf16.mxu0 0
        %619 = vmatpush1.bf16.xpose.msra.mxu0 0
        %620 = vmatprep.subr.bf16.mxu0 0
        %621 = vmatpush1.bf16.xpose.msra.mxu0 0
        %622 = vmatprep.subr.bf16.mxu0 0
        %623 = vmatpush1.bf16.xpose.msra.mxu0 0
        %624 = vmatprep.subr.bf16.mxu0 0
        %625 = vmatpush1.bf16.xpose.msra.mxu0 0
        %626 = vmatprep.subr.bf16.mxu0 0
        %627 = vmatpush1.bf16.xpose.msra.mxu0 0
        %628 = vmatprep.subr.bf16.mxu0 0
        %629 = vmatpush1.bf16.xpose.msra.mxu0 0
        %630 = vmatprep.subr.bf16.mxu0 0
        %631 = vmatpush1.bf16.xpose.msra.mxu0 0
        %632 = vmatprep.subr.bf16.mxu0 0
        %633 = vmatpush1.bf16.xpose.msra.mxu0 0
        %634 = vmatprep.subr.bf16.mxu0 0
        %635 = vmatpush1.bf16.xpose.msra.mxu0 0
        %636 = vmatprep.subr.bf16.mxu0 0
        %637 = vmatpush1.bf16.xpose.msra.mxu0 0
        %638 = vmatprep.subr.bf16.mxu0 0
        %639 = vmatpush1.bf16.xpose.msra.mxu0 0
        %640 = vmatprep.subr.bf16.mxu0 0
        %641 = vmatpush1.bf16.xpose.msra.mxu0 0
        %642 = vmatprep.mubr.bf16.mxu0 0
        %643 = vmatmul.mubr.bf16.gmra.mrb[0].mxu0 %v605
        %v644 = vpop.f32.mrb[0].mxu0
        %v645 = vadd.f32 %v601, %v644
        %v646 = vpop.f32.mrb[0].mxu0
        %v647 = vpop.f32.mrb[0].mxu0
        %v648 = vpop.f32.mrb[0].mxu0
        %649 = vdwg.mxu0
        %vm650 = vcmask 64512
        %v651 = vsel %vm650, %v645, -inf
        %652 = vmax.xlane.f32.xlu0 %v651
        %v653 = vpop.xlane.xlu0 %652
        %v654 = vsub.f32 %v645, %v653
        %v655 = vmul.f32 %v654, 1.442695
        %v656 = vpow.pop %v655
        %v657 = vsel %vm650, %v656, 0.0
        %658 = vadd.xlane.f32.xlu0 %v657
        %v659 = vpop.xlane.xlu0 %658
        %v660 = vrcp.pop %v659
        %v661 = vmul.f32 %v656, %v660
        %v662 = vpack.c.bf16 %v661, %v661
        %v664 = vsel %vm650, %v662, 0
        %vm666 = vcmask 1043456
        %v668 = vsel %vm666, %v596, 0
        %670 = vmatprep.subr.bf16.mxu0 0
        %671 = vmatpush1.bf16.msra.mxu0 %v668
        %672 = vmatprep.subr.bf16.mxu0 0
        %673 = vmatpush1.bf16.msra.mxu0 0
        %674 = vmatprep.subr.bf16.mxu0 0
        %675 = vmatpush1.bf16.msra.mxu0 0
        %676 = vmatprep.subr.bf16.mxu0 0
        %677 = vmatpush1.bf16.msra.mxu0 0
        %678 = vmatprep.subr.bf16.mxu0 0
        %679 = vmatpush1.bf16.msra.mxu0 0
        %680 = vmatprep.subr.bf16.mxu0 0
        %681 = vmatpush1.bf16.msra.mxu0 0
        %682 = vmatprep.subr.bf16.mxu0 0
        %683 = vmatpush1.bf16.msra.mxu0 0
        %684 = vmatprep.subr.bf16.mxu0 0
        %685 = vmatpush1.bf16.msra.mxu0 0
        %686 = vmatprep.subr.bf16.mxu0 0
        %687 = vmatpush1.bf16.msra.mxu0 0
        %688 = vmatprep.subr.bf16.mxu0 0
        %689 = vmatpush1.bf16.msra.mxu0 0
        %690 = vmatprep.subr.bf16.mxu0 0
        %691 = vmatpush1.bf16.msra.mxu0 0
        %692 = vmatprep.subr.bf16.mxu0 0
        %693 = vmatpush1.bf16.msra.mxu0 0
        %694 = vmatprep.subr.bf16.mxu0 0
        %695 = vmatpush1.bf16.msra.mxu0 0
        %696 = vmatprep.subr.bf16.mxu0 0
        %697 = vmatpush1.bf16.msra.mxu0 0
        %698 = vmatprep.subr.bf16.mxu0 0
        %699 = vmatpush1.bf16.msra.mxu0 0
        %700 = vmatprep.subr.bf16.mxu0 0
        %701 = vmatpush1.bf16.msra.mxu0 0
        %702 = vmatprep.mubr.bf16.mxu0 0
        %703 = vmatmul.mubr.bf16.gmra.mrb[0].mxu0 %v664
        %v704 = vpop.f32.mrb[0].mxu0
        %v705 = vadd.f32 0.0, %v704
        %v706 = vpop.f32.mrb[0].mxu0
        %v707 = vpop.f32.mrb[0].mxu0
        %v708 = vpop.f32.mrb[0].mxu0
        %709 = vdwg.mxu0
        %711 = vrot.lane.b32.xlu0 %v582, 96
        %v712 = vpop.permute.xlu0 %711
        %714 = vrot.lane.b32.xlu0 %v589, 96
        %v715 = vpop.permute.xlu0 %714
        %v717 = vsel %vm603, %v712, 0
        %v720 = vsel %vm603, %v715, 0
        %722 = vmatprep.subr.bf16.mxu0 0
        %723 = vmatpush1.bf16.xpose.msra.mxu0 %v720
        %724 = vmatprep.subr.bf16.mxu0 0
        %725 = vmatpush1.bf16.xpose.msra.mxu0 0
        %726 = vmatprep.subr.bf16.mxu0 0
        %727 = vmatpush1.bf16.xpose.msra.mxu0 0
        %728 = vmatprep.subr.bf16.mxu0 0
        %729 = vmatpush1.bf16.xpose.msra.mxu0 0
        %730 = vmatprep.subr.bf16.mxu0 0
        %731 = vmatpush1.bf16.xpose.msra.mxu0 0
        %732 = vmatprep.subr.bf16.mxu0 0
        %733 = vmatpush1.bf16.xpose.msra.mxu0 0
        %734 = vmatprep.subr.bf16.mxu0 0
        %735 = vmatpush1.bf16.xpose.msra.mxu0 0
        %736 = vmatprep.subr.bf16.mxu0 0
        %737 = vmatpush1.bf16.xpose.msra.mxu0 0
        %738 = vmatprep.subr.bf16.mxu0 0
        %739 = vmatpush1.bf16.xpose.msra.mxu0 0
        %740 = vmatprep.subr.bf16.mxu0 0
        %741 = vmatpush1.bf16.xpose.msra.mxu0 0
        %742 = vmatprep.subr.bf16.mxu0 0
        %743 = vmatpush1.bf16.xpose.msra.mxu0 0
        %744 = vmatprep.subr.bf16.mxu0 0
        %745 = vmatpush1.bf16.xpose.msra.mxu0 0
        %746 = vmatprep.subr.bf16.mxu0 0
        %747 = vmatpush1.bf16.xpose.msra.mxu0 0
        %748 = vmatprep.subr.bf16.mxu0 0
        %749 = vmatpush1.bf16.xpose.msra.mxu0 0
        %750 = vmatprep.subr.bf16.mxu0 0
        %751 = vmatpush1.bf16.xpose.msra.mxu0 0
        %752 = vmatprep.subr.bf16.mxu0 0
        %753 = vmatpush1.bf16.xpose.msra.mxu0 0
        %754 = vmatprep.mubr.bf16.mxu0 0
        %755 = vmatmul.mubr.bf16.gmra.mrb[0].mxu0 %v717
        %v756 = vpop.f32.mrb[0].mxu0
        %v757 = vadd.f32 %v601, %v756
        %v758 = vpop.f32.mrb[0].mxu0
        %v759 = vpop.f32.mrb[0].mxu0
        %v760 = vpop.f32.mrb[0].mxu0
        %761 = vdwg.mxu0
        %v762 = vsel %vm650, %v757, -inf
        %763 = vmax.xlane.f32.xlu0 %v762
        %v764 = vpop.xlane.xlu0 %763
        %v765 = vsub.f32 %v757, %v764
        %v766 = vmul.f32 %v765, 1.442695
        %v767 = vpow.pop %v766
        %v768 = vsel %vm650, %v767, 0.0
        %769 = vadd.xlane.f32.xlu0 %v768
        %v770 = vpop.xlane.xlu0 %769
        %v771 = vrcp.pop %v770
        %v772 = vmul.f32 %v767, %v771
        %v773 = vpack.c.bf16 %v772, %v772
        %775 = vrot.lane.b32.xlu0 %v596, 96
        %v776 = vpop.permute.xlu0 %775
        %v778 = vsel %vm650, %v773, 0
        %v781 = vsel %vm666, %v776, 0
        %783 = vmatprep.subr.bf16.mxu0 0
        %784 = vmatpush1.bf16.msra.mxu0 %v781
        %785 = vmatprep.subr.bf16.mxu0 0
        %786 = vmatpush1.bf16.msra.mxu0 0
        %787 = vmatprep.subr.bf16.mxu0 0
        %788 = vmatpush1.bf16.msra.mxu0 0
        %789 = vmatprep.subr.bf16.mxu0 0
        %790 = vmatpush1.bf16.msra.mxu0 0
        %791 = vmatprep.subr.bf16.mxu0 0
        %792 = vmatpush1.bf16.msra.mxu0 0
        %793 = vmatprep.subr.bf16.mxu0 0
        %794 = vmatpush1.bf16.msra.mxu0 0
        %795 = vmatprep.subr.bf16.mxu0 0
        %796 = vmatpush1.bf16.msra.mxu0 0
        %797 = vmatprep.subr.bf16.mxu0 0
        %798 = vmatpush1.bf16.msra.mxu0 0
        %799 = vmatprep.subr.bf16.mxu0 0
        %800 = vmatpush1.bf16.msra.mxu0 0
        %801 = vmatprep.subr.bf16.mxu0 0
        %802 = vmatpush1.bf16.msra.mxu0 0
        %803 = vmatprep.subr.bf16.mxu0 0
        %804 = vmatpush1.bf16.msra.mxu0 0
        %805 = vmatprep.subr.bf16.mxu0 0
        %806 = vmatpush1.bf16.msra.mxu0 0
        %807 = vmatprep.subr.bf16.mxu0 0
        %808 = vmatpush1.bf16.msra.mxu0 0
        %809 = vmatprep.subr.bf16.mxu0 0
        %810 = vmatpush1.bf16.msra.mxu0 0
        %811 = vmatprep.subr.bf16.mxu0 0
        %812 = vmatpush1.bf16.msra.mxu0 0
        %813 = vmatprep.subr.bf16.mxu0 0
        %814 = vmatpush1.bf16.msra.mxu0 0
        %815 = vmatprep.mubr.bf16.mxu0 0
        %816 = vmatmul.mubr.bf16.gmra.mrb[0].mxu0 %v778
        %v817 = vpop.f32.mrb[0].mxu0
        %v818 = vadd.f32 0.0, %v817
        %v819 = vpop.f32.mrb[0].mxu0
        %v820 = vpop.f32.mrb[0].mxu0
        %v821 = vpop.f32.mrb[0].mxu0
        %822 = vdwg.mxu0
        %823 = vrot.lane.b32.xlu0 %v582, 64
        %v824 = vpop.permute.xlu0 %823
        %825 = vrot.lane.b32.xlu0 %v589, 64
        %v826 = vpop.permute.xlu0 %825
        %v828 = vsel %vm603, %v824, 0
        %v831 = vsel %vm603, %v826, 0
        %833 = vmatprep.subr.bf16.mxu0 0
        %834 = vmatpush1.bf16.xpose.msra.mxu0 %v831
        %835 = vmatprep.subr.bf16.mxu0 0
        %836 = vmatpush1.bf16.xpose.msra.mxu0 0
        %837 = vmatprep.subr.bf16.mxu0 0
        %838 = vmatpush1.bf16.xpose.msra.mxu0 0
        %839 = vmatprep.subr.bf16.mxu0 0
        %840 = vmatpush1.bf16.xpose.msra.mxu0 0
        %841 = vmatprep.subr.bf16.mxu0 0
        %842 = vmatpush1.bf16.xpose.msra.mxu0 0
        %843 = vmatprep.subr.bf16.mxu0 0
        %844 = vmatpush1.bf16.xpose.msra.mxu0 0
        %845 = vmatprep.subr.bf16.mxu0 0
        %846 = vmatpush1.bf16.xpose.msra.mxu0 0
        %847 = vmatprep.subr.bf16.mxu0 0
        %848 = vmatpush1.bf16.xpose.msra.mxu0 0
        %849 = vmatprep.subr.bf16.mxu0 0
        %850 = vmatpush1.bf16.xpose.msra.mxu0 0
        %851 = vmatprep.subr.bf16.mxu0 0
        %852 = vmatpush1.bf16.xpose.msra.mxu0 0
        %853 = vmatprep.subr.bf16.mxu0 0
        %854 = vmatpush1.bf16.xpose.msra.mxu0 0
        %855 = vmatprep.subr.bf16.mxu0 0
        %856 = vmatpush1.bf16.xpose.msra.mxu0 0
        %857 = vmatprep.subr.bf16.mxu0 0
        %858 = vmatpush1.bf16.xpose.msra.mxu0 0
        %859 = vmatprep.subr.bf16.mxu0 0
        %860 = vmatpush1.bf16.xpose.msra.mxu0 0
        %861 = vmatprep.subr.bf16.mxu0 0
        %862 = vmatpush1.bf16.xpose.msra.mxu0 0
        %863 = vmatprep.subr.bf16.mxu0 0
        %864 = vmatpush1.bf16.xpose.msra.mxu0 0
        %865 = vmatprep.mubr.bf16.mxu0 0
        %866 = vmatmul.mubr.bf16.gmra.mrb[0].mxu0 %v828
        %v867 = vpop.f32.mrb[0].mxu0
        %v868 = vadd.f32 %v601, %v867
        %v869 = vpop.f32.mrb[0].mxu0
        %v870 = vpop.f32.mrb[0].mxu0
        %v871 = vpop.f32.mrb[0].mxu0
        %872 = vdwg.mxu0
        %v873 = vsel %vm650, %v868, -inf
        %874 = vmax.xlane.f32.xlu0 %v873
        %v875 = vpop.xlane.xlu0 %874
        %v876 = vsub.f32 %v868, %v875
        %v877 = vmul.f32 %v876, 1.442695
        %v878 = vpow.pop %v877
        %v879 = vsel %vm650, %v878, 0.0
        %880 = vadd.xlane.f32.xlu0 %v879
        %v881 = vpop.xlane.xlu0 %880
        %v882 = vrcp.pop %v881
        %v883 = vmul.f32 %v878, %v882
        %v884 = vpack.c.bf16 %v883, %v883
        %885 = vrot.lane.b32.xlu0 %v596, 64
        %v886 = vpop.permute.xlu0 %885
        %v888 = vsel %vm650, %v884, 0
        %v891 = vsel %vm666, %v886, 0
        %893 = vmatprep.subr.bf16.mxu0 0
        %894 = vmatpush1.bf16.msra.mxu0 %v891
        %895 = vmatprep.subr.bf16.mxu0 0
        %896 = vmatpush1.bf16.msra.mxu0 0
        %897 = vmatprep.subr.bf16.mxu0 0
        %898 = vmatpush1.bf16.msra.mxu0 0
        %899 = vmatprep.subr.bf16.mxu0 0
        %900 = vmatpush1.bf16.msra.mxu0 0
        %901 = vmatprep.subr.bf16.mxu0 0
        %902 = vmatpush1.bf16.msra.mxu0 0
        %903 = vmatprep.subr.bf16.mxu0 0
        %904 = vmatpush1.bf16.msra.mxu0 0
        %905 = vmatprep.subr.bf16.mxu0 0
        %906 = vmatpush1.bf16.msra.mxu0 0
        %907 = vmatprep.subr.bf16.mxu0 0
        %908 = vmatpush1.bf16.msra.mxu0 0
        %909 = vmatprep.subr.bf16.mxu0 0
        %910 = vmatpush1.bf16.msra.mxu0 0
        %911 = vmatprep.subr.bf16.mxu0 0
        %912 = vmatpush1.bf16.msra.mxu0 0
        %913 = vmatprep.subr.bf16.mxu0 0
        %914 = vmatpush1.bf16.msra.mxu0 0
        %915 = vmatprep.subr.bf16.mxu0 0
        %916 = vmatpush1.bf16.msra.mxu0 0
        %917 = vmatprep.subr.bf16.mxu0 0
        %918 = vmatpush1.bf16.msra.mxu0 0
        %919 = vmatprep.subr.bf16.mxu0 0
        %920 = vmatpush1.bf16.msra.mxu0 0
        %921 = vmatprep.subr.bf16.mxu0 0
        %922 = vmatpush1.bf16.msra.mxu0 0
        %923 = vmatprep.subr.bf16.mxu0 0
        %924 = vmatpush1.bf16.msra.mxu0 0
        %925 = vmatprep.mubr.bf16.mxu0 0
        %926 = vmatmul.mubr.bf16.gmra.mrb[0].mxu0 %v888
        %v927 = vpop.f32.mrb[0].mxu0
        %v928 = vadd.f32 0.0, %v927
        %v929 = vpop.f32.mrb[0].mxu0
        %v930 = vpop.f32.mrb[0].mxu0
        %v931 = vpop.f32.mrb[0].mxu0
        %932 = vdwg.mxu0
        %933 = vrot.lane.b32.xlu0 %v582, 32
        %v934 = vpop.permute.xlu0 %933
        %935 = vrot.lane.b32.xlu0 %v589, 32
        %v936 = vpop.permute.xlu0 %935
        %v938 = vsel %vm603, %v934, 0
        %v941 = vsel %vm603, %v936, 0
        %943 = vmatprep.subr.bf16.mxu0 0
        %944 = vmatpush1.bf16.xpose.msra.mxu0 %v941
        %945 = vmatprep.subr.bf16.mxu0 0
        %946 = vmatpush1.bf16.xpose.msra.mxu0 0
        %947 = vmatprep.subr.bf16.mxu0 0
        %948 = vmatpush1.bf16.xpose.msra.mxu0 0
        %949 = vmatprep.subr.bf16.mxu0 0
        %950 = vmatpush1.bf16.xpose.msra.mxu0 0
        %951 = vmatprep.subr.bf16.mxu0 0
        %952 = vmatpush1.bf16.xpose.msra.mxu0 0
        %953 = vmatprep.subr.bf16.mxu0 0
        %954 = vmatpush1.bf16.xpose.msra.mxu0 0
        %955 = vmatprep.subr.bf16.mxu0 0
        %956 = vmatpush1.bf16.xpose.msra.mxu0 0
        %957 = vmatprep.subr.bf16.mxu0 0
        %958 = vmatpush1.bf16.xpose.msra.mxu0 0
        %959 = vmatprep.subr.bf16.mxu0 0
        %960 = vmatpush1.bf16.xpose.msra.mxu0 0
        %961 = vmatprep.subr.bf16.mxu0 0
        %962 = vmatpush1.bf16.xpose.msra.mxu0 0
        %963 = vmatprep.subr.bf16.mxu0 0
        %964 = vmatpush1.bf16.xpose.msra.mxu0 0
        %965 = vmatprep.subr.bf16.mxu0 0
        %966 = vmatpush1.bf16.xpose.msra.mxu0 0
        %967 = vmatprep.subr.bf16.mxu0 0
        %968 = vmatpush1.bf16.xpose.msra.mxu0 0
        %969 = vmatprep.subr.bf16.mxu0 0
        %970 = vmatpush1.bf16.xpose.msra.mxu0 0
        %971 = vmatprep.subr.bf16.mxu0 0
        %972 = vmatpush1.bf16.xpose.msra.mxu0 0
        %973 = vmatprep.subr.bf16.mxu0 0
        %974 = vmatpush1.bf16.xpose.msra.mxu0 0
        %975 = vmatprep.mubr.bf16.mxu0 0
        %976 = vmatmul.mubr.bf16.gmra.mrb[0].mxu0 %v938
        %v977 = vpop.f32.mrb[0].mxu0
        %v978 = vadd.f32 %v601, %v977
        %v979 = vpop.f32.mrb[0].mxu0
        %v980 = vpop.f32.mrb[0].mxu0
        %v981 = vpop.f32.mrb[0].mxu0
        %982 = vdwg.mxu0
        %v983 = vsel %vm650, %v978, -inf
        %984 = vmax.xlane.f32.xlu0 %v983
        %v985 = vpop.xlane.xlu0 %984
        %v986 = vsub.f32 %v978, %v985
        %v987 = vmul.f32 %v986, 1.442695
        %v988 = vpow.pop %v987
        %v989 = vsel %vm650, %v988, 0.0
        %990 = vadd.xlane.f32.xlu0 %v989
        %v991 = vpop.xlane.xlu0 %990
        %v992 = vrcp.pop %v991
        %v993 = vmul.f32 %v988, %v992
        %v994 = vpack.c.bf16 %v993, %v993
        %995 = vrot.lane.b32.xlu0 %v596, 32
        %v996 = vpop.permute.xlu0 %995
        %v998 = vsel %vm650, %v994, 0
        %v1001 = vsel %vm666, %v996, 0
        %1003 = vmatprep.subr.bf16.mxu0 0
        %1004 = vmatpush1.bf16.msra.mxu0 %v1001
        %1005 = vmatprep.subr.bf16.mxu0 0
        %1006 = vmatpush1.bf16.msra.mxu0 0
        %1007 = vmatprep.subr.bf16.mxu0 0
        %1008 = vmatpush1.bf16.msra.mxu0 0
        %1009 = vmatprep.subr.bf16.mxu0 0
        %1010 = vmatpush1.bf16.msra.mxu0 0
        %1011 = vmatprep.subr.bf16.mxu0 0
        %1012 = vmatpush1.bf16.msra.mxu0 0
        %1013 = vmatprep.subr.bf16.mxu0 0
        %1014 = vmatpush1.bf16.msra.mxu0 0
        %1015 = vmatprep.subr.bf16.mxu0 0
        %1016 = vmatpush1.bf16.msra.mxu0 0
        %1017 = vmatprep.subr.bf16.mxu0 0
        %1018 = vmatpush1.bf16.msra.mxu0 0
        %1019 = vmatprep.subr.bf16.mxu0 0
        %1020 = vmatpush1.bf16.msra.mxu0 0
        %1021 = vmatprep.subr.bf16.mxu0 0
        %1022 = vmatpush1.bf16.msra.mxu0 0
        %1023 = vmatprep.subr.bf16.mxu0 0
        %1024 = vmatpush1.bf16.msra.mxu0 0
        %1025 = vmatprep.subr.bf16.mxu0 0
        %1026 = vmatpush1.bf16.msra.mxu0 0
        %1027 = vmatprep.subr.bf16.mxu0 0
        %1028 = vmatpush1.bf16.msra.mxu0 0
        %1029 = vmatprep.subr.bf16.mxu0 0
        %1030 = vmatpush1.bf16.msra.mxu0 0
        %1031 = vmatprep.subr.bf16.mxu0 0
        %1032 = vmatpush1.bf16.msra.mxu0 0
        %1033 = vmatprep.subr.bf16.mxu0 0
        %1034 = vmatpush1.bf16.msra.mxu0 0
        %1035 = vmatprep.mubr.bf16.mxu0 0
        %1036 = vmatmul.mubr.bf16.gmra.mrb[0].mxu0 %v998
        %v1037 = vpop.f32.mrb[0].mxu0
        %v1038 = vadd.f32 0.0, %v1037
        %v1039 = vpop.f32.mrb[0].mxu0
        %v1040 = vpop.f32.mrb[0].mxu0
        %v1041 = vpop.f32.mrb[0].mxu0
        %1042 = vdwg.mxu0
        %1044 = vrot.lane.b32.xlu0 %v818, 32
        %v1045 = vpop.permute.xlu0 %1044
        %1048 = vrot.lane.b32.xlu0 %v928, 64
        %v1049 = vpop.permute.xlu0 %1048
        %1052 = vrot.lane.b32.xlu0 %v1038, 96
        %v1053 = vpop.permute.xlu0 %1052
        %v1055 = vsel %vm603, %v705, %v1045
        %vm1056 = vcmask 523264
        %v1057 = vsel %vm1056, %v1055, %v1049
        %vm1058 = vcmask 785408
        %v1059 = vsel %vm1058, %v1057, %v1053
        %v1060 = vpack.c.bf16 %v1059, %v1059
        %v1061 = vld [vmem:[%s4 + $0x5] sm:$0x1]
        %v1062 = vlaneseq
        %v1063 = vshrl.u32 %v1062, 7
        %v1064 = vsub.s32 0, %v1063
        %v1065 = vrot.slane %v1061, %v1064
        %v1066 = vunpack.c.h.b16 %v319
        %v1067 = vunpack.c.h.b16 %v322
        %v1068 = vunpack.c.h.b16 %v325
        %v1069 = vunpack.c.h.b16 %v328
        %v1070 = vunpack.c.h.b16 %v331
        %v1071 = vunpack.c.h.b16 %v334
        %v1072 = vunpack.c.h.b16 %v337
        %v1073 = vunpack.c.h.b16 %v340
        %v1074 = vunpack.c.h.b16 %v343
        %v1075 = vunpack.c.h.b16 %v346
        %v1076 = vunpack.c.h.b16 %v349
        %v1077 = vunpack.c.h.b16 %v352
        %v1078 = vunpack.c.h.b16 %v355
        %v1079 = vunpack.c.h.b16 %v358
        %v1080 = vunpack.c.h.b16 %v361
        %v1081 = vunpack.c.h.b16 %v364
        %v1082 = vpack.c.b16 %v1067, %v1066
        %v1083 = vpack.c.b16 %v1069, %v1068
        %v1084 = vpack.c.b16 %v1071, %v1070
        %v1085 = vpack.c.b16 %v1073, %v1072
        %v1086 = vpack.c.b16 %v1075, %v1074
        %v1087 = vpack.c.b16 %v1077, %v1076
        %v1088 = vpack.c.b16 %v1079, %v1078
        %v1089 = vpack.c.b16 %v1081, %v1080
        %1098 = vmatprep.subr.bf16.mxu0 0
        %1099 = vmatpush1.bf16.msra.mxu0 %v1082
        %1100 = vmatprep.subr.bf16.mxu0 0
        %1101 = vmatpush1.bf16.msra.mxu0 %v1083
        %1102 = vmatprep.subr.bf16.mxu0 0
        %1103 = vmatpush1.bf16.msra.mxu0 %v1084
        %1104 = vmatprep.subr.bf16.mxu0 0
        %1105 = vmatpush1.bf16.msra.mxu0 %v1085
        %1106 = vmatprep.subr.bf16.mxu0 0
        %1107 = vmatpush1.bf16.msra.mxu0 %v1086
        %1108 = vmatprep.subr.bf16.mxu0 0
        %1109 = vmatpush1.bf16.msra.mxu0 %v1087
        %1110 = vmatprep.subr.bf16.mxu0 0
        %1111 = vmatpush1.bf16.msra.mxu0 %v1088
        %1112 = vmatprep.subr.bf16.mxu0 0
        %1113 = vmatpush1.bf16.msra.mxu0 %v1089
        %1114 = vmatprep.subr.bf16.mxu0 0
        %1115 = vmatpush1.bf16.msra.mxu0 0
        %1116 = vmatprep.subr.bf16.mxu0 0
        %1117 = vmatpush1.bf16.msra.mxu0 0
        %1118 = vmatprep.subr.bf16.mxu0 0
        %1119 = vmatpush1.bf16.msra.mxu0 0
        %1120 = vmatprep.subr.bf16.mxu0 0
        %1121 = vmatpush1.bf16.msra.mxu0 0
        %1122 = vmatprep.subr.bf16.mxu0 0
        %1123 = vmatpush1.bf16.msra.mxu0 0
        %1124 = vmatprep.subr.bf16.mxu0 0
        %1125 = vmatpush1.bf16.msra.mxu0 0
        %1126 = vmatprep.subr.bf16.mxu0 0
        %1127 = vmatpush1.bf16.msra.mxu0 0
        %1128 = vmatprep.subr.bf16.mxu0 0
        %1129 = vmatpush1.bf16.msra.mxu0 0
        %1130 = vmatprep.mubr.bf16.mxu0 0
        %1131 = vmatmul.mubr.bf16.gmra.mrb[0].mxu0 %v1060
        %v1132 = vpop.f32.mrb[0].mxu0
        %v1133 = vadd.f32 %v1065, %v1132
        %v1134 = vpop.f32.mrb[0].mxu0
        %v1135 = vpop.f32.mrb[0].mxu0
        %v1136 = vpop.f32.mrb[0].mxu0
        %1137 = vdwg.mxu0
        %v1138 = vadd.f32 %v1133, %v316
        %v1139 = vld [vmem:[%s4 + $0x6] sm:$0x1]
        %v1140 = vld [vmem:[%s4 + $0x7] sm:$0x1]
        %1141 = vadd.xlane.f32.xlu0 %v1138
        %v1142 = vpop.xlane.xlu0 %1141
        %v1143 = vmul.f32 %v1142, %v297
        %v1144 = vsub.f32 %v1138, %v1143
        %v1145 = vmul.f32 %v1144, %v1144
        %1146 = vadd.xlane.f32.xlu0 %v1145
        %v1147 = vpop.xlane.xlu0 %1146
        %v1148 = vmul.f32 %v1147, %v297
        %v1149 = vadd.f32 %v1148, 1e-12
        %v1150 = vrsqrt.pop %v1149
        %v1151 = vmul.f32 %v1144, %v1150
        %v1152 = vlaneseq
        %v1153 = vshrl.u32 %v1152, 7
        %v1154 = vsub.s32 0, %v1153
        %v1155 = vrot.slane %v1139, %v1154
        %v1156 = vmul.f32 %v1151, %v1155
        %v1157 = vlaneseq
        %v1158 = vshrl.u32 %v1157, 7
        %v1159 = vsub.s32 0, %v1158
        %v1160 = vrot.slane %v1140, %v1159
        %v1161 = vadd.f32 %v1156, %v1160
        %v1162 = vpack.c.bf16 %v1161, %v1161
        %v1163 = vld [vmem:[%s5] sm:$0x3]
        %v1165 = vlaneseq
        %v1166 = vshrl.u32 %v1165, 7
        %v1167 = vsub.s32 0, %v1166
        %v1168 = vrot.slane %v1163, %v1167
        %v1169 = vlaneseq
        %v1170 = vshrl.u32 %v1169, 7
        %v1171 = vsub.s32 1, %v1170
        %v1172 = vrot.slane %v1163, %v1171
        %v1191 = vunpack.c.l.b16 %v320
        %v1192 = vunpack.c.h.b16 %v320
        %v1193 = vunpack.c.l.b16 %v323
        %v1194 = vunpack.c.h.b16 %v323
        %v1195 = vunpack.c.l.b16 %v326
        %v1196 = vunpack.c.h.b16 %v326
        %v1197 = vunpack.c.l.b16 %v329
        %v1198 = vunpack.c.h.b16 %v329
        %v1199 = vunpack.c.l.b16 %v332
        %v1200 = vunpack.c.h.b16 %v332
        %v1201 = vunpack.c.l.b16 %v335
        %v1202 = vunpack.c.h.b16 %v335
        %v1203 = vunpack.c.l.b16 %v338
        %v1204 = vunpack.c.h.b16 %v338
        %v1205 = vunpack.c.l.b16 %v341
        %v1206 = vunpack.c.h.b16 %v341
        %v1207 = vunpack.c.l.b16 %v344
        %v1208 = vunpack.c.h.b16 %v344
        %v1209 = vunpack.c.l.b16 %v347
        %v1210 = vunpack.c.h.b16 %v347
        %v1211 = vunpack.c.l.b16 %v350
        %v1212 = vunpack.c.h.b16 %v350
        %v1213 = vunpack.c.l.b16 %v353
        %v1214 = vunpack.c.h.b16 %v353
        %v1215 = vunpack.c.l.b16 %v356
        %v1216 = vunpack.c.h.b16 %v356
        %v1217 = vunpack.c.l.b16 %v359
        %v1218 = vunpack.c.h.b16 %v359
        %v1219 = vunpack.c.l.b16 %v362
        %v1220 = vunpack.c.h.b16 %v362
        %v1221 = vunpack.c.l.b16 %v365
        %v1222 = vunpack.c.h.b16 %v365
        %v1223 = vpack.c.b16 %v1193, %v1191
        %v1224 = vpack.c.b16 %v1194, %v1192
        %v1225 = vpack.c.b16 %v1197, %v1195
        %v1226 = vpack.c.b16 %v1198, %v1196
        %v1227 = vpack.c.b16 %v1201, %v1199
        %v1228 = vpack.c.b16 %v1202, %v1200
        %v1229 = vpack.c.b16 %v1205, %v1203
        %v1230 = vpack.c.b16 %v1206, %v1204
        %v1231 = vpack.c.b16 %v1209, %v1207
        %v1232 = vpack.c.b16 %v1210, %v1208
        %v1233 = vpack.c.b16 %v1213, %v1211
        %v1234 = vpack.c.b16 %v1214, %v1212
        %v1235 = vpack.c.b16 %v1217, %v1215
        %v1236 = vpack.c.b16 %v1218, %v1216
        %v1237 = vpack.c.b16 %v1221, %v1219
        %v1238 = vpack.c.b16 %v1222, %v1220
        %1255 = vmatprep.subr.bf16.mxu0 %v1224
        %1256 = vmatpush1.bf16.msra.mxu0 %v1223
        %1257 = vmatprep.subr.bf16.mxu0 %v1226
        %1258 = vmatpush1.bf16.msra.mxu0 %v1225
        %1259 = vmatprep.subr.bf16.mxu0 %v1228
        %1260 = vmatpush1.bf16.msra.mxu0 %v1227
        %1261 = vmatprep.subr.bf16.mxu0 %v1230
        %1262 = vmatpush1.bf16.msra.mxu0 %v1229
        %1263 = vmatprep.subr.bf16.mxu0 %v1232
        %1264 = vmatpush1.bf16.msra.mxu0 %v1231
        %1265 = vmatprep.subr.bf16.mxu0 %v1234
        %1266 = vmatpush1.bf16.msra.mxu0 %v1233
        %1267 = vmatprep.subr.bf16.mxu0 %v1236
        %1268 = vmatpush1.bf16.msra.mxu0 %v1235
        %1269 = vmatprep.subr.bf16.mxu0 %v1238
        %1270 = vmatpush1.bf16.msra.mxu0 %v1237
        %1271 = vmatprep.subr.bf16.mxu0 0
        %1272 = vmatpush1.bf16.msra.mxu0 0
        %1273 = vmatprep.subr.bf16.mxu0 0
        %1274 = vmatpush1.bf16.msra.mxu0 0
        %1275 = vmatprep.subr.bf16.mxu0 0
        %1276 = vmatpush1.bf16.msra.mxu0 0
        %1277 = vmatprep.subr.bf16.mxu0 0
        %1278 = vmatpush1.bf16.msra.mxu0 0
        %1279 = vmatprep.subr.bf16.mxu0 0
        %1280 = vmatpush1.bf16.msra.mxu0 0
        %1281 = vmatprep.subr.bf16.mxu0 0
        %1282 = vmatpush1.bf16.msra.mxu0 0
        %1283 = vmatprep.subr.bf16.mxu0 0
        %1284 = vmatpush1.bf16.msra.mxu0 0
        %1285 = vmatprep.subr.bf16.mxu0 0
        %1286 = vmatpush1.bf16.msra.mxu0 0
        %1287 = vmatprep.mubr.bf16.mxu0 0
        %1288 = vmatmul.mubr.bf16.gmra.mrb[0].mxu0 %v1162
        %v1289 = vpop.f32.mrb[0].mxu0
        %v1290 = vadd.f32 %v1168, %v1289
        %v1291 = vpop.f32.mrb[0].mxu0
        %v1292 = vadd.f32 %v1172, %v1291
        %v1293 = vpop.f32.mrb[0].mxu0
        %v1294 = vpop.f32.mrb[0].mxu0
        %1295 = vdwg.mxu0
        %v1296 = vmul.f32 %v1290, 0.5
        %v1297 = vmul.f32 %v1292, 0.5
        %v1298 = vmul.f32 %v1290, 0.044715
        %v1299 = vmul.f32 %v1292, 0.044715
        %v1300 = vmul.f32 %v1298, %v1290
        %v1301 = vmul.f32 %v1299, %v1292
        %v1302 = vmul.f32 %v1300, %v1290
        %v1303 = vmul.f32 %v1301, %v1292
        %v1304 = vadd.f32 %v1290, %v1302
        %v1305 = vadd.f32 %v1292, %v1303
        %v1306 = vmul.f32 %v1304, 0.7978846
        %v1307 = vmul.f32 %v1305, 0.7978846
        %v1308 = vtanh.pop %v1306
        %v1309 = vtanh.pop %v1307
        %v1310 = vadd.f32 %v1308, 1.0
        %v1311 = vadd.f32 %v1309, 1.0
        %v1312 = vmul.f32 %v1296, %v1310
        %v1313 = vmul.f32 %v1297, %v1311
        %v1314 = vld [vmem:[#allocation5] sm:$0xf]
        %v1315 = vld [vmem:[#allocation5 + $0x4] sm:$0xf]
        %v1316 = vld [vmem:[#allocation5 + $0x8] sm:$0xf]
        %v1317 = vld [vmem:[#allocation5 + $0xc] sm:$0xf]
        %v1318 = vld [vmem:[#allocation5 + $0x10] sm:$0xf]
        %v1319 = vld [vmem:[#allocation5 + $0x14] sm:$0xf]
        %v1320 = vld [vmem:[#allocation5 + $0x18] sm:$0xf]
        %v1321 = vld [vmem:[#allocation5 + $0x1c] sm:$0xf]
        %v1322 = vld [vmem:[#allocation5 + $0x20] sm:$0xf]
        %v1323 = vld [vmem:[#allocation5 + $0x24] sm:$0xf]
        %v1324 = vld [vmem:[#allocation5 + $0x28] sm:$0xf]
        %v1325 = vld [vmem:[#allocation5 + $0x2c] sm:$0xf]
        %v1326 = vld [vmem:[#allocation5 + $0x30] sm:$0xf]
        %v1327 = vld [vmem:[#allocation5 + $0x34] sm:$0xf]
        %v1328 = vld [vmem:[#allocation5 + $0x38] sm:$0xf]
        %v1329 = vld [vmem:[#allocation5 + $0x3c] sm:$0xf]
        %v1330 = vld [vmem:[#allocation5 + $0x40] sm:$0xf]
        %v1331 = vld [vmem:[#allocation5 + $0x44] sm:$0xf]
        %v1332 = vld [vmem:[#allocation5 + $0x48] sm:$0xf]
        %v1333 = vld [vmem:[#allocation5 + $0x4c] sm:$0xf]
        %v1334 = vld [vmem:[#allocation5 + $0x50] sm:$0xf]
        %v1335 = vld [vmem:[#allocation5 + $0x54] sm:$0xf]
        %v1336 = vld [vmem:[#allocation5 + $0x58] sm:$0xf]
        %v1337 = vld [vmem:[#allocation5 + $0x5c] sm:$0xf]
        %v1338 = vld [vmem:[#allocation5 + $0x60] sm:$0xf]
        %v1339 = vld [vmem:[#allocation5 + $0x64] sm:$0xf]
        %v1340 = vld [vmem:[#allocation5 + $0x68] sm:$0xf]
        %v1341 = vld [vmem:[#allocation5 + $0x6c] sm:$0xf]
        %v1342 = vld [vmem:[#allocation5 + $0x70] sm:$0xf]
        %v1343 = vld [vmem:[#allocation5 + $0x74] sm:$0xf]
        %v1344 = vld [vmem:[#allocation5 + $0x78] sm:$0xf]
        %v1345 = vld [vmem:[#allocation5 + $0x7c] sm:$0xf]
        %v1346 = vpack.c.bf16 %v1312, %v1312
        %v1347 = vpack.c.bf16 %v1313, %v1313
        %v1348 = vld [vmem:[%s4 + $0x8] sm:$0x1]
        %v1349 = vlaneseq
        %v1350 = vshrl.u32 %v1349, 7
        %v1351 = vsub.s32 0, %v1350
        %v1352 = vrot.slane %v1348, %v1351
        %v1385 = vunpack.c.l.b16 %v1314
        %v1386 = vunpack.c.l.b16 %v1315
        %v1387 = vunpack.c.l.b16 %v1316
        %v1388 = vunpack.c.l.b16 %v1317
        %v1389 = vunpack.c.l.b16 %v1318
        %v1390 = vunpack.c.l.b16 %v1319
        %v1391 = vunpack.c.l.b16 %v1320
        %v1392 = vunpack.c.l.b16 %v1321
        %v1393 = vunpack.c.l.b16 %v1322
        %v1394 = vunpack.c.l.b16 %v1323
        %v1395 = vunpack.c.l.b16 %v1324
        %v1396 = vunpack.c.l.b16 %v1325
        %v1397 = vunpack.c.l.b16 %v1326
        %v1398 = vunpack.c.l.b16 %v1327
        %v1399 = vunpack.c.l.b16 %v1328
        %v1400 = vunpack.c.l.b16 %v1329
        %v1401 = vunpack.c.l.b16 %v1330
        %v1402 = vunpack.c.l.b16 %v1331
        %v1403 = vunpack.c.l.b16 %v1332
        %v1404 = vunpack.c.l.b16 %v1333
        %v1405 = vunpack.c.l.b16 %v1334
        %v1406 = vunpack.c.l.b16 %v1335
        %v1407 = vunpack.c.l.b16 %v1336
        %v1408 = vunpack.c.l.b16 %v1337
        %v1409 = vunpack.c.l.b16 %v1338
        %v1410 = vunpack.c.l.b16 %v1339
        %v1411 = vunpack.c.l.b16 %v1340
        %v1412 = vunpack.c.l.b16 %v1341
        %v1413 = vunpack.c.l.b16 %v1342
        %v1414 = vunpack.c.l.b16 %v1343
        %v1415 = vunpack.c.l.b16 %v1344
        %v1416 = vunpack.c.l.b16 %v1345
        %v1417 = vpack.c.b16 %v1386, %v1385
        %v1418 = vpack.c.b16 %v1388, %v1387
        %v1419 = vpack.c.b16 %v1390, %v1389
        %v1420 = vpack.c.b16 %v1392, %v1391
        %v1421 = vpack.c.b16 %v1394, %v1393
        %v1422 = vpack.c.b16 %v1396, %v1395
        %v1423 = vpack.c.b16 %v1398, %v1397
        %v1424 = vpack.c.b16 %v1400, %v1399
        %v1425 = vpack.c.b16 %v1402, %v1401
        %v1426 = vpack.c.b16 %v1404, %v1403
        %v1427 = vpack.c.b16 %v1406, %v1405
        %v1428 = vpack.c.b16 %v1408, %v1407
        %v1429 = vpack.c.b16 %v1410, %v1409
        %v1430 = vpack.c.b16 %v1412, %v1411
        %v1431 = vpack.c.b16 %v1414, %v1413
        %v1432 = vpack.c.b16 %v1416, %v1415
        %1449 = vmatprep.subr.bf16.mxu0 0
        %1450 = vmatpush1.bf16.msra.mxu0 %v1417
        %1451 = vmatprep.subr.bf16.mxu0 0
        %1452 = vmatpush1.bf16.msra.mxu0 %v1418
        %1453 = vmatprep.subr.bf16.mxu0 0
        %1454 = vmatpush1.bf16.msra.mxu0 %v1419
        %1455 = vmatprep.subr.bf16.mxu0 0
        %1456 = vmatpush1.bf16.msra.mxu0 %v1420
        %1457 = vmatprep.subr.bf16.mxu0 0
        %1458 = vmatpush1.bf16.msra.mxu0 %v1421
        %1459 = vmatprep.subr.bf16.mxu0 0
        %1460 = vmatpush1.bf16.msra.mxu0 %v1422
        %1461 = vmatprep.subr.bf16.mxu0 0
        %1462 = vmatpush1.bf16.msra.mxu0 %v1423
        %1463 = vmatprep.subr.bf16.mxu0 0
        %1464 = vmatpush1.bf16.msra.mxu0 %v1424
        %1465 = vmatprep.subr.bf16.mxu0 0
        %1466 = vmatpush1.bf16.msra.mxu0 %v1425
        %1467 = vmatprep.subr.bf16.mxu0 0
        %1468 = vmatpush1.bf16.msra.mxu0 %v1426
        %1469 = vmatprep.subr.bf16.mxu0 0
        %1470 = vmatpush1.bf16.msra.mxu0 %v1427
        %1471 = vmatprep.subr.bf16.mxu0 0
        %1472 = vmatpush1.bf16.msra.mxu0 %v1428
        %1473 = vmatprep.subr.bf16.mxu0 0
        %1474 = vmatpush1.bf16.msra.mxu0 %v1429
        %1475 = vmatprep.subr.bf16.mxu0 0
        %1476 = vmatpush1.bf16.msra.mxu0 %v1430
        %1477 = vmatprep.subr.bf16.mxu0 0
        %1478 = vmatpush1.bf16.msra.mxu0 %v1431
        %1479 = vmatprep.subr.bf16.mxu0 0
        %1480 = vmatpush1.bf16.msra.mxu0 %v1432
        %1481 = vmatprep.mubr.bf16.mxu0 %v1347
        %1482 = vmatmul.mubr.bf16.gmra.mrb[0].mxu0 %v1346
        %v1483 = vpop.f32.mrb[0].mxu0
        %v1484 = vadd.f32 %v1352, %v1483
        %v1485 = vpop.f32.mrb[0].mxu0
        %v1486 = vpop.f32.mrb[0].mxu0
        %v1487 = vpop.f32.mrb[0].mxu0
        %1488 = vdwg.mxu0
        %v1489 = vadd.f32 %v1484, %v1161
        %v1490 = vld [vmem:[%s4 + $0x9] sm:$0x1]
        %v1491 = vld [vmem:[%s4 + $0xa] sm:$0x1]
        %1492 = vadd.xlane.f32.xlu0 %v1489
        %v1493 = vpop.xlane.xlu0 %1492
        %v1494 = vmul.f32 %v1493, %v297
        %v1495 = vsub.f32 %v1489, %v1494
        %v1496 = vmul.f32 %v1495, %v1495
        %1497 = vadd.xlane.f32.xlu0 %v1496
        %v1498 = vpop.xlane.xlu0 %1497
        %v1499 = vmul.f32 %v1498, %v297
        %v1500 = vadd.f32 %v1499, 1e-12
        %v1501 = vrsqrt.pop %v1500
        %v1502 = vmul.f32 %v1495, %v1501
        %v1503 = vlaneseq
        %v1504 = vshrl.u32 %v1503, 7
        %v1505 = vsub.s32 0, %v1504
        %v1506 = vrot.slane %v1490, %v1505
        %v1507 = vmul.f32 %v1502, %v1506
        %v1508 = vlaneseq
        %v1509 = vshrl.u32 %v1508, 7
        %v1510 = vsub.s32 0, %v1509
        %v1511 = vrot.slane %v1491, %v1510
        %v1512 = vadd.f32 %v1507, %v1511
        %s1513 = scalar_lea.vmem [#allocation2], 384
        %v1514 = vld [vmem:[%s1513] sm:$0xff]
        %v1515 = vld [vmem:[%s1513 + $0x8] sm:$0xff]
        %v1516 = vld [vmem:[%s1513 + $0x10] sm:$0xff]
        %v1517 = vld [vmem:[%s1513 + $0x18] sm:$0xff]
        %v1518 = vld [vmem:[%s1513 + $0x20] sm:$0xff]
        %v1519 = vld [vmem:[%s1513 + $0x28] sm:$0xff]
        %v1520 = vld [vmem:[%s1513 + $0x30] sm:$0xff]
        %v1521 = vld [vmem:[%s1513 + $0x38] sm:$0xff]
        %v1522 = vld [vmem:[%s1513 + $0x40] sm:$0xff]
        %v1523 = vld [vmem:[%s1513 + $0x48] sm:$0xff]
        %v1524 = vld [vmem:[%s1513 + $0x50] sm:$0xff]
        %v1525 = vld [vmem:[%s1513 + $0x58] sm:$0xff]
        %v1526 = vld [vmem:[%s1513 + $0x60] sm:$0xff]
        %v1527 = vld [vmem:[%s1513 + $0x68] sm:$0xff]
        %v1528 = vld [vmem:[%s1513 + $0x70] sm:$0xff]
        %v1529 = vld [vmem:[%s1513 + $0x78] sm:$0xff]
        %v1530 = vld [vmem:[%s1513 + $0x80] sm:$0xff]
        %v1531 = vld [vmem:[%s1513 + $0x88] sm:$0xff]
        %v1532 = vld [vmem:[%s1513 + $0x90] sm:$0xff]
        %v1533 = vld [vmem:[%s1513 + $0x98] sm:$0xff]
        %v1534 = vld [vmem:[%s1513 + $0xa0] sm:$0xff]
        %v1535 = vld [vmem:[%s1513 + $0xa8] sm:$0xff]
        %v1536 = vld [vmem:[%s1513 + $0xb0] sm:$0xff]
        %v1537 = vld [vmem:[%s1513 + $0xb8] sm:$0xff]
        %v1538 = vld [vmem:[%s1513 + $0xc0] sm:$0xff]
        %v1539 = vld [vmem:[%s1513 + $0xc8] sm:$0xff]
        %v1540 = vld [vmem:[%s1513 + $0xd0] sm:$0xff]
        %v1541 = vld [vmem:[%s1513 + $0xd8] sm:$0xff]
        %v1542 = vld [vmem:[%s1513 + $0xe0] sm:$0xff]
        %v1543 = vld [vmem:[%s1513 + $0xe8] sm:$0xff]
        %v1544 = vld [vmem:[%s1513 + $0xf0] sm:$0xff]
        %v1545 = vld [vmem:[%s1513 + $0xf8] sm:$0xff]
        %v1546 = vld [vmem:[%s1513 + $0x100] sm:$0xff]
        %v1547 = vld [vmem:[%s1513 + $0x108] sm:$0xff]
        %v1548 = vld [vmem:[%s1513 + $0x110] sm:$0xff]
        %v1549 = vld [vmem:[%s1513 + $0x118] sm:$0xff]
        %v1550 = vld [vmem:[%s1513 + $0x120] sm:$0xff]
        %v1551 = vld [vmem:[%s1513 + $0x128] sm:$0xff]
        %v1552 = vld [vmem:[%s1513 + $0x130] sm:$0xff]
        %v1553 = vld [vmem:[%s1513 + $0x138] sm:$0xff]
        %v1554 = vld [vmem:[%s1513 + $0x140] sm:$0xff]
        %v1555 = vld [vmem:[%s1513 + $0x148] sm:$0xff]
        %v1556 = vld [vmem:[%s1513 + $0x150] sm:$0xff]
        %v1557 = vld [vmem:[%s1513 + $0x158] sm:$0xff]
        %v1558 = vld [vmem:[%s1513 + $0x160] sm:$0xff]
        %v1559 = vld [vmem:[%s1513 + $0x168] sm:$0xff]
        %v1560 = vld [vmem:[%s1513 + $0x170] sm:$0xff]
        %v1561 = vld [vmem:[%s1513 + $0x178] sm:$0xff]
        %v1562 = vpack.c.bf16 %v1512, %v1512
        %v1595 = vunpack.c.l.b16 %v1514
        %v1596 = vunpack.c.h.b16 %v1514
        %v1597 = vunpack.c.l.b16 %v1515
        %v1598 = vunpack.c.l.b16 %v1517
        %v1599 = vunpack.c.h.b16 %v1517
        %v1600 = vunpack.c.l.b16 %v1518
        %v1601 = vunpack.c.l.b16 %v1520
        %v1602 = vunpack.c.h.b16 %v1520
        %v1603 = vunpack.c.l.b16 %v1521
        %v1604 = vunpack.c.l.b16 %v1523
        %v1605 = vunpack.c.h.b16 %v1523
        %v1606 = vunpack.c.l.b16 %v1524
        %v1607 = vunpack.c.l.b16 %v1526
        %v1608 = vunpack.c.h.b16 %v1526
        %v1609 = vunpack.c.l.b16 %v1527
        %v1610 = vunpack.c.l.b16 %v1529
        %v1611 = vunpack.c.h.b16 %v1529
        %v1612 = vunpack.c.l.b16 %v1530
        %v1613 = vunpack.c.l.b16 %v1532
        %v1614 = vunpack.c.h.b16 %v1532
        %v1615 = vunpack.c.l.b16 %v1533
        %v1616 = vunpack.c.l.b16 %v1535
        %v1617 = vunpack.c.h.b16 %v1535
        %v1618 = vunpack.c.l.b16 %v1536
        %v1619 = vunpack.c.l.b16 %v1538
        %v1620 = vunpack.c.h.b16 %v1538
        %v1621 = vunpack.c.l.b16 %v1539
        %v1622 = vunpack.c.l.b16 %v1541
        %v1623 = vunpack.c.h.b16 %v1541
        %v1624 = vunpack.c.l.b16 %v1542
        %v1625 = vunpack.c.l.b16 %v1544
        %v1626 = vunpack.c.h.b16 %v1544
        %v1627 = vunpack.c.l.b16 %v1545
        %v1628 = vunpack.c.l.b16 %v1547
        %v1629 = vunpack.c.h.b16 %v1547
        %v1630 = vunpack.c.l.b16 %v1548
        %v1631 = vunpack.c.l.b16 %v1550
        %v1632 = vunpack.c.h.b16 %v1550
        %v1633 = vunpack.c.l.b16 %v1551
        %v1634 = vunpack.c.l.b16 %v1553
        %v1635 = vunpack.c.h.b16 %v1553
        %v1636 = vunpack.c.l.b16 %v1554
        %v1637 = vunpack.c.l.b16 %v1556
        %v1638 = vunpack.c.h.b16 %v1556
        %v1639 = vunpack.c.l.b16 %v1557
        %v1640 = vunpack.c.l.b16 %v1559
        %v1641 = vunpack.c.h.b16 %v1559
        %v1642 = vunpack.c.l.b16 %v1560
        %v1643 = vpack.c.b16 %v1598, %v1595
        %v1644 = vpack.c.b16 %v1599, %v1596
        %v1645 = vpack.c.b16 %v1600, %v1597
        %v1646 = vpack.c.b16 %v1604, %v1601
        %v1647 = vpack.c.b16 %v1605, %v1602
        %v1648 = vpack.c.b16 %v1606, %v1603
        %v1649 = vpack.c.b16 %v1610, %v1607
        %v1650 = vpack.c.b16 %v1611, %v1608
        %v1651 = vpack.c.b16 %v1612, %v1609
        %v1652 = vpack.c.b16 %v1616, %v1613
        %v1653 = vpack.c.b16 %v1617, %v1614
        %v1654 = vpack.c.b16 %v1618, %v1615
        %v1655 = vpack.c.b16 %v1622, %v1619
        %v1656 = vpack.c.b16 %v1623, %v1620
        %v1657 = vpack.c.b16 %v1624, %v1621
        %v1658 = vpack.c.b16 %v1628, %v1625
        %v1659 = vpack.c.b16 %v1629, %v1626
        %v1660 = vpack.c.b16 %v1630, %v1627
        %v1661 = vpack.c.b16 %v1634, %v1631
        %v1662 = vpack.c.b16 %v1635, %v1632
        %v1663 = vpack.c.b16 %v1636, %v1633
        %v1664 = vpack.c.b16 %v1640, %v1637
        %v1665 = vpack.c.b16 %v1641, %v1638
        %v1666 = vpack.c.b16 %v1642, %v1639
        %1691 = vmatprep.subr.bf16.mxu0 %v1644
        %1692 = vmatpush1.bf16.msra.mxu0 %v1643
        %1693 = vmatprep.subr.bf16.mxu0 %v1647
        %1694 = vmatpush1.bf16.msra.mxu0 %v1646
        %1695 = vmatprep.subr.bf16.mxu0 %v1650
        %1696 = vmatpush1.bf16.msra.mxu0 %v1649
        %1697 = vmatprep.subr.bf16.mxu0 %v1653
        %1698 = vmatpush1.bf16.msra.mxu0 %v1652
        %1699 = vmatprep.subr.bf16.mxu0 %v1656
        %1700 = vmatpush1.bf16.msra.mxu0 %v1655
        %1701 = vmatprep.subr.bf16.mxu0 %v1659
        %1702 = vmatpush1.bf16.msra.mxu0 %v1658
        %1703 = vmatprep.subr.bf16.mxu0 %v1662
        %1704 = vmatpush1.bf16.msra.mxu0 %v1661
        %1705 = vmatprep.subr.bf16.mxu0 %v1665
        %1706 = vmatpush1.bf16.msra.mxu0 %v1664
        %1707 = vmatprep.subr.bf16.mxu0 0
        %1708 = vmatpush1.bf16.msra.mxu0 0
        %1709 = vmatprep.subr.bf16.mxu0 0
        %1710 = vmatpush1.bf16.msra.mxu0 0
        %1711 = vmatprep.subr.bf16.mxu0 0
        %1712 = vmatpush1.bf16.msra.mxu0 0
        %1713 = vmatprep.subr.bf16.mxu0 0
        %1714 = vmatpush1.bf16.msra.mxu0 0
        %1715 = vmatprep.subr.bf16.mxu0 0
        %1716 = vmatpush1.bf16.msra.mxu0 0
        %1717 = vmatprep.subr.bf16.mxu0 0
        %1718 = vmatpush1.bf16.msra.mxu0 0
        %1719 = vmatprep.subr.bf16.mxu0 0
        %1720 = vmatpush1.bf16.msra.mxu0 0
        %1721 = vmatprep.subr.bf16.mxu0 0
        %1722 = vmatpush1.bf16.msra.mxu0 0
        %1723 = vmatprep.mubr.bf16.mxu0 0
        %1724 = vmatmul.mubr.bf16.gmra.mrb[0].mxu0 %v1562
        %v1725 = vpop.f32.mrb[0].mxu0
        %v1726 = vadd.f32 0.0, %v1725
        %v1727 = vpop.f32.mrb[0].mxu0
        %v1728 = vadd.f32 0.0, %v1727
        %v1729 = vpop.f32.mrb[0].mxu0
        %v1730 = vpop.f32.mrb[0].mxu0
        %1731 = vdwg.mxu0
        %1732 = vmatprep.subr.bf16.mxu0 0
        %1733 = vmatpush1.bf16.msra.mxu0 %v1645
        %1734 = vmatprep.subr.bf16.mxu0 0
        %1735 = vmatpush1.bf16.msra.mxu0 %v1648
        %1736 = vmatprep.subr.bf16.mxu0 0
        %1737 = vmatpush1.bf16.msra.mxu0 %v1651
        %1738 = vmatprep.subr.bf16.mxu0 0
        %1739 = vmatpush1.bf16.msra.mxu0 %v1654
        %1740 = vmatprep.subr.bf16.mxu0 0
        %1741 = vmatpush1.bf16.msra.mxu0 %v1657
        %1742 = vmatprep.subr.bf16.mxu0 0
        %1743 = vmatpush1.bf16.msra.mxu0 %v1660
        %1744 = vmatprep.subr.bf16.mxu0 0
        %1745 = vmatpush1.bf16.msra.mxu0 %v1663
        %1746 = vmatprep.subr.bf16.mxu0 0
        %1747 = vmatpush1.bf16.msra.mxu0 %v1666
        %1748 = vmatprep.subr.bf16.mxu0 0
        %1749 = vmatpush1.bf16.msra.mxu0 0
        %1750 = vmatprep.subr.bf16.mxu0 0
        %1751 = vmatpush1.bf16.msra.mxu0 0
        %1752 = vmatprep.subr.bf16.mxu0 0
        %1753 = vmatpush1.bf16.msra.mxu0 0
        %1754 = vmatprep.subr.bf16.mxu0 0
        %1755 = vmatpush1.bf16.msra.mxu0 0
        %1756 = vmatprep.subr.bf16.mxu0 0
        %1757 = vmatpush1.bf16.msra.mxu0 0
        %1758 = vmatprep.subr.bf16.mxu0 0
        %1759 = vmatpush1.bf16.msra.mxu0 0
        %1760 = vmatprep.subr.bf16.mxu0 0
        %1761 = vmatpush1.bf16.msra.mxu0 0
        %1762 = vmatprep.subr.bf16.mxu0 0
        %1763 = vmatpush1.bf16.msra.mxu0 0
        %1764 = vmatprep.mubr.bf16.mxu0 0
        %1765 = vmatmul.mubr.bf16.gmra.mrb[0].mxu0 %v1562
        %v1766 = vpop.f32.mrb[0].mxu0
        %v1767 = vadd.f32 0.0, %v1766
        %v1768 = vpop.f32.mrb[0].mxu0
        %v1769 = vpop.f32.mrb[0].mxu0
        %v1770 = vpop.f32.mrb[0].mxu0
        %1771 = vdwg.mxu0
        %v1772 = vld [vmem:[%s4 + $0xb] sm:$0x1]
        %v1773 = vlaneseq
        %v1774 = vshrl.u32 %v1773, 7
        %v1775 = vsub.s32 0, %v1774
        %v1776 = vrot.slane %v1772, %v1775
        %v1777 = vadd.f32 %v1726, %v1776
        %v1778 = vpack.c.bf16 %v1777, %v1777
        %v1779 = vld [vmem:[%s4 + $0xc] sm:$0x1]
        %v1780 = vlaneseq
        %v1781 = vshrl.u32 %v1780, 7
        %v1782 = vsub.s32 0, %v1781
        %v1783 = vrot.slane %v1779, %v1782
        %v1784 = vadd.f32 %v1728, %v1783
        %v1785 = vpack.c.bf16 %v1784, %v1784
        %v1786 = vld [vmem:[%s4 + $0xd] sm:$0x1]
        %v1787 = vlaneseq
        %v1788 = vshrl.u32 %v1787, 7
        %v1789 = vsub.s32 0, %v1788
        %v1790 = vrot.slane %v1786, %v1789
        %v1791 = vadd.f32 %v1767, %v1790
        %v1792 = vpack.c.bf16 %v1791, %v1791
        %v1794 = vsel %vm603, %v1778, 0
        %v1797 = vsel %vm603, %v1785, 0
        %1799 = vmatprep.subr.bf16.mxu0 0
        %1800 = vmatpush1.bf16.xpose.msra.mxu0 %v1797
        %1801 = vmatprep.subr.bf16.mxu0 0
        %1802 = vmatpush1.bf16.xpose.msra.mxu0 0
        %1803 = vmatprep.subr.bf16.mxu0 0
        %1804 = vmatpush1.bf16.xpose.msra.mxu0 0
        %1805 = vmatprep.subr.bf16.mxu0 0
        %1806 = vmatpush1.bf16.xpose.msra.mxu0 0
        %1807 = vmatprep.subr.bf16.mxu0 0
        %1808 = vmatpush1.bf16.xpose.msra.mxu0 0
        %1809 = vmatprep.subr.bf16.mxu0 0
        %1810 = vmatpush1.bf16.xpose.msra.mxu0 0
        %1811 = vmatprep.subr.bf16.mxu0 0
        %1812 = vmatpush1.bf16.xpose.msra.mxu0 0
        %1813 = vmatprep.subr.bf16.mxu0 0
        %1814 = vmatpush1.bf16.xpose.msra.mxu0 0
        %1815 = vmatprep.subr.bf16.mxu0 0
        %1816 = vmatpush1.bf16.xpose.msra.mxu0 0
        %1817 = vmatprep.subr.bf16.mxu0 0
        %1818 = vmatpush1.bf16.xpose.msra.mxu0 0
        %1819 = vmatprep.subr.bf16.mxu0 0
        %1820 = vmatpush1.bf16.xpose.msra.mxu0 0
        %1821 = vmatprep.subr.bf16.mxu0 0
        %1822 = vmatpush1.bf16.xpose.msra.mxu0 0
        %1823 = vmatprep.subr.bf16.mxu0 0
        %1824 = vmatpush1.bf16.xpose.msra.mxu0 0
        %1825 = vmatprep.subr.bf16.mxu0 0
        %1826 = vmatpush1.bf16.xpose.msra.mxu0 0
        %1827 = vmatprep.subr.bf16.mxu0 0
        %1828 = vmatpush1.bf16.xpose.msra.mxu0 0
        %1829 = vmatprep.subr.bf16.mxu0 0
        %1830 = vmatpush1.bf16.xpose.msra.mxu0 0
        %1831 = vmatprep.mubr.bf16.mxu0 0
        %1832 = vmatmul.mubr.bf16.gmra.mrb[0].mxu0 %v1794
        %v1833 = vpop.f32.mrb[0].mxu0
        %v1834 = vadd.f32 %v601, %v1833
        %v1835 = vpop.f32.mrb[0].mxu0
        %v1836 = vpop.f32.mrb[0].mxu0
        %v1837 = vpop.f32.mrb[0].mxu0
        %1838 = vdwg.mxu0
        %v1839 = vsel %vm650, %v1834, -inf
        %1840 = vmax.xlane.f32.xlu0 %v1839
        %v1841 = vpop.xlane.xlu0 %1840
        %v1842 = vsub.f32 %v1834, %v1841
        %v1843 = vmul.f32 %v1842, 1.442695
        %v1844 = vpow.pop %v1843
        %v1845 = vsel %vm650, %v1844, 0.0
        %1846 = vadd.xlane.f32.xlu0 %v1845
        %v1847 = vpop.xlane.xlu0 %1846
        %v1848 = vrcp.pop %v1847
        %v1849 = vmul.f32 %v1844, %v1848
        %v1850 = vpack.c.bf16 %v1849, %v1849
        %v1852 = vsel %vm650, %v1850, 0
        %v1855 = vsel %vm666, %v1792, 0
        %1857 = vmatprep.subr.bf16.mxu0 0
        %1858 = vmatpush1.bf16.msra.mxu0 %v1855
        %1859 = vmatprep.subr.bf16.mxu0 0
        %1860 = vmatpush1.bf16.msra.mxu0 0
        %1861 = vmatprep.subr.bf16.mxu0 0
        %1862 = vmatpush1.bf16.msra.mxu0 0
        %1863 = vmatprep.subr.bf16.mxu0 0
        %1864 = vmatpush1.bf16.msra.mxu0 0
        %1865 = vmatprep.subr.bf16.mxu0 0
        %1866 = vmatpush1.bf16.msra.mxu0 0
        %1867 = vmatprep.subr.bf16.mxu0 0
        %1868 = vmatpush1.bf16.msra.mxu0 0
        %1869 = vmatprep.subr.bf16.mxu0 0
        %1870 = vmatpush1.bf16.msra.mxu0 0
        %1871 = vmatprep.subr.bf16.mxu0 0
        %1872 = vmatpush1.bf16.msra.mxu0 0
        %1873 = vmatprep.subr.bf16.mxu0 0
        %1874 = vmatpush1.bf16.msra.mxu0 0
        %1875 = vmatprep.subr.bf16.mxu0 0
        %1876 = vmatpush1.bf16.msra.mxu0 0
        %1877 = vmatprep.subr.bf16.mxu0 0
        %1878 = vmatpush1.bf16.msra.mxu0 0
        %1879 = vmatprep.subr.bf16.mxu0 0
        %1880 = vmatpush1.bf16.msra.mxu0 0
        %1881 = vmatprep.subr.bf16.mxu0 0
        %1882 = vmatpush1.bf16.msra.mxu0 0
        %1883 = vmatprep.subr.bf16.mxu0 0
        %1884 = vmatpush1.bf16.msra.mxu0 0
        %1885 = vmatprep.subr.bf16.mxu0 0
        %1886 = vmatpush1.bf16.msra.mxu0 0
        %1887 = vmatprep.subr.bf16.mxu0 0
        %1888 = vmatpush1.bf16.msra.mxu0 0
        %1889 = vmatprep.mubr.bf16.mxu0 0
        %1890 = vmatmul.mubr.bf16.gmra.mrb[0].mxu0 %v1852
        %v1891 = vpop.f32.mrb[0].mxu0
        %v1892 = vadd.f32 0.0, %v1891
        %v1893 = vpop.f32.mrb[0].mxu0
        %v1894 = vpop.f32.mrb[0].mxu0
        %v1895 = vpop.f32.mrb[0].mxu0
        %1896 = vdwg.mxu0
        %1898 = vrot.lane.b32.xlu0 %v1778, 96
        %v1899 = vpop.permute.xlu0 %1898
        %1901 = vrot.lane.b32.xlu0 %v1785, 96
        %v1902 = vpop.permute.xlu0 %1901
        %v1904 = vsel %vm603, %v1899, 0
        %v1907 = vsel %vm603, %v1902, 0
        %1909 = vmatprep.subr.bf16.mxu0 0
        %1910 = vmatpush1.bf16.xpose.msra.mxu0 %v1907
        %1911 = vmatprep.subr.bf16.mxu0 0
        %1912 = vmatpush1.bf16.xpose.msra.mxu0 0
        %1913 = vmatprep.subr.bf16.mxu0 0
        %1914 = vmatpush1.bf16.xpose.msra.mxu0 0
        %1915 = vmatprep.subr.bf16.mxu0 0
        %1916 = vmatpush1.bf16.xpose.msra.mxu0 0
        %1917 = vmatprep.subr.bf16.mxu0 0
        %1918 = vmatpush1.bf16.xpose.msra.mxu0 0
        %1919 = vmatprep.subr.bf16.mxu0 0
        %1920 = vmatpush1.bf16.xpose.msra.mxu0 0
        %1921 = vmatprep.subr.bf16.mxu0 0
        %1922 = vmatpush1.bf16.xpose.msra.mxu0 0
        %1923 = vmatprep.subr.bf16.mxu0 0
        %1924 = vmatpush1.bf16.xpose.msra.mxu0 0
        %1925 = vmatprep.subr.bf16.mxu0 0
        %1926 = vmatpush1.bf16.xpose.msra.mxu0 0
        %1927 = vmatprep.subr.bf16.mxu0 0
        %1928 = vmatpush1.bf16.xpose.msra.mxu0 0
        %1929 = vmatprep.subr.bf16.mxu0 0
        %1930 = vmatpush1.bf16.xpose.msra.mxu0 0
        %1931 = vmatprep.subr.bf16.mxu0 0
        %1932 = vmatpush1.bf16.xpose.msra.mxu0 0
        %1933 = vmatprep.subr.bf16.mxu0 0
        %1934 = vmatpush1.bf16.xpose.msra.mxu0 0
        %1935 = vmatprep.subr.bf16.mxu0 0
        %1936 = vmatpush1.bf16.xpose.msra.mxu0 0
        %1937 = vmatprep.subr.bf16.mxu0 0
        %1938 = vmatpush1.bf16.xpose.msra.mxu0 0
        %1939 = vmatprep.subr.bf16.mxu0 0
        %1940 = vmatpush1.bf16.xpose.msra.mxu0 0
        %1941 = vmatprep.mubr.bf16.mxu0 0
        %1942 = vmatmul.mubr.bf16.gmra.mrb[0].mxu0 %v1904
        %v1943 = vpop.f32.mrb[0].mxu0
        %v1944 = vadd.f32 %v601, %v1943
        %v1945 = vpop.f32.mrb[0].mxu0
        %v1946 = vpop.f32.mrb[0].mxu0
        %v1947 = vpop.f32.mrb[0].mxu0
        %1948 = vdwg.mxu0
        %v1949 = vsel %vm650, %v1944, -inf
        %1950 = vmax.xlane.f32.xlu0 %v1949
        %v1951 = vpop.xlane.xlu0 %1950
        %v1952 = vsub.f32 %v1944, %v1951
        %v1953 = vmul.f32 %v1952, 1.442695
        %v1954 = vpow.pop %v1953
        %v1955 = vsel %vm650, %v1954, 0.0
        %1956 = vadd.xlane.f32.xlu0 %v1955
        %v1957 = vpop.xlane.xlu0 %1956
        %v1958 = vrcp.pop %v1957
        %v1959 = vmul.f32 %v1954, %v1958
        %v1960 = vpack.c.bf16 %v1959, %v1959
        %1962 = vrot.lane.b32.xlu0 %v1792, 96
        %v1963 = vpop.permute.xlu0 %1962
        %v1965 = vsel %vm650, %v1960, 0
        %v1968 = vsel %vm666, %v1963, 0
        %1970 = vmatprep.subr.bf16.mxu0 0
        %1971 = vmatpush1.bf16.msra.mxu0 %v1968
        %1972 = vmatprep.subr.bf16.mxu0 0
        %1973 = vmatpush1.bf16.msra.mxu0 0
        %1974 = vmatprep.subr.bf16.mxu0 0
        %1975 = vmatpush1.bf16.msra.mxu0 0
        %1976 = vmatprep.subr.bf16.mxu0 0
        %1977 = vmatpush1.bf16.msra.mxu0 0
        %1978 = vmatprep.subr.bf16.mxu0 0
        %1979 = vmatpush1.bf16.msra.mxu0 0
        %1980 = vmatprep.subr.bf16.mxu0 0
        %1981 = vmatpush1.bf16.msra.mxu0 0
        %1982 = vmatprep.subr.bf16.mxu0 0
        %1983 = vmatpush1.bf16.msra.mxu0 0
        %1984 = vmatprep.subr.bf16.mxu0 0
        %1985 = vmatpush1.bf16.msra.mxu0 0
        %1986 = vmatprep.subr.bf16.mxu0 0
        %1987 = vmatpush1.bf16.msra.mxu0 0
        %1988 = vmatprep.subr.bf16.mxu0 0
        %1989 = vmatpush1.bf16.msra.mxu0 0
        %1990 = vmatprep.subr.bf16.mxu0 0
        %1991 = vmatpush1.bf16.msra.mxu0 0
        %1992 = vmatprep.subr.bf16.mxu0 0
        %1993 = vmatpush1.bf16.msra.mxu0 0
        %1994 = vmatprep.subr.bf16.mxu0 0
        %1995 = vmatpush1.bf16.msra.mxu0 0
        %1996 = vmatprep.subr.bf16.mxu0 0
        %1997 = vmatpush1.bf16.msra.mxu0 0
        %1998 = vmatprep.subr.bf16.mxu0 0
        %1999 = vmatpush1.bf16.msra.mxu0 0
        %2000 = vmatprep.subr.bf16.mxu0 0
        %2001 = vmatpush1.bf16.msra.mxu0 0
        %2002 = vmatprep.mubr.bf16.mxu0 0
        %2003 = vmatmul.mubr.bf16.gmra.mrb[0].mxu0 %v1965
        %v2004 = vpop.f32.mrb[0].mxu0
        %v2005 = vadd.f32 0.0, %v2004
        %v2006 = vpop.f32.mrb[0].mxu0
        %v2007 = vpop.f32.mrb[0].mxu0
        %v2008 = vpop.f32.mrb[0].mxu0
        %2009 = vdwg.mxu0
        %2010 = vrot.lane.b32.xlu0 %v1778, 64
        %v2011 = vpop.permute.xlu0 %2010
        %2012 = vrot.lane.b32.xlu0 %v1785, 64
        %v2013 = vpop.permute.xlu0 %2012
        %v2015 = vsel %vm603, %v2011, 0
        %v2018 = vsel %vm603, %v2013, 0
        %2020 = vmatprep.subr.bf16.mxu0 0
        %2021 = vmatpush1.bf16.xpose.msra.mxu0 %v2018
        %2022 = vmatprep.subr.bf16.mxu0 0
        %2023 = vmatpush1.bf16.xpose.msra.mxu0 0
        %2024 = vmatprep.subr.bf16.mxu0 0
        %2025 = vmatpush1.bf16.xpose.msra.mxu0 0
        %2026 = vmatprep.subr.bf16.mxu0 0
        %2027 = vmatpush1.bf16.xpose.msra.mxu0 0
        %2028 = vmatprep.subr.bf16.mxu0 0
        %2029 = vmatpush1.bf16.xpose.msra.mxu0 0
        %2030 = vmatprep.subr.bf16.mxu0 0
        %2031 = vmatpush1.bf16.xpose.msra.mxu0 0
        %2032 = vmatprep.subr.bf16.mxu0 0
        %2033 = vmatpush1.bf16.xpose.msra.mxu0 0
        %2034 = vmatprep.subr.bf16.mxu0 0
        %2035 = vmatpush1.bf16.xpose.msra.mxu0 0
        %2036 = vmatprep.subr.bf16.mxu0 0
        %2037 = vmatpush1.bf16.xpose.msra.mxu0 0
        %2038 = vmatprep.subr.bf16.mxu0 0
        %2039 = vmatpush1.bf16.xpose.msra.mxu0 0
        %2040 = vmatprep.subr.bf16.mxu0 0
        %2041 = vmatpush1.bf16.xpose.msra.mxu0 0
        %2042 = vmatprep.subr.bf16.mxu0 0
        %2043 = vmatpush1.bf16.xpose.msra.mxu0 0
        %2044 = vmatprep.subr.bf16.mxu0 0
        %2045 = vmatpush1.bf16.xpose.msra.mxu0 0
        %2046 = vmatprep.subr.bf16.mxu0 0
        %2047 = vmatpush1.bf16.xpose.msra.mxu0 0
        %2048 = vmatprep.subr.bf16.mxu0 0
        %2049 = vmatpush1.bf16.xpose.msra.mxu0 0
        %2050 = vmatprep.subr.bf16.mxu0 0
        %2051 = vmatpush1.bf16.xpose.msra.mxu0 0
        %2052 = vmatprep.mubr.bf16.mxu0 0
        %2053 = vmatmul.mubr.bf16.gmra.mrb[0].mxu0 %v2015
        %v2054 = vpop.f32.mrb[0].mxu0
        %v2055 = vadd.f32 %v601, %v2054
        %v2056 = vpop.f32.mrb[0].mxu0
        %v2057 = vpop.f32.mrb[0].mxu0
        %v2058 = vpop.f32.mrb[0].mxu0
        %2059 = vdwg.mxu0
        %v2060 = vsel %vm650, %v2055, -inf
        %2061 = vmax.xlane.f32.xlu0 %v2060
        %v2062 = vpop.xlane.xlu0 %2061
        %v2063 = vsub.f32 %v2055, %v2062
        %v2064 = vmul.f32 %v2063, 1.442695
        %v2065 = vpow.pop %v2064
        %v2066 = vsel %vm650, %v2065, 0.0
        %2067 = vadd.xlane.f32.xlu0 %v2066
        %v2068 = vpop.xlane.xlu0 %2067
        %v2069 = vrcp.pop %v2068
        %v2070 = vmul.f32 %v2065, %v2069
        %v2071 = vpack.c.bf16 %v2070, %v2070
        %2072 = vrot.lane.b32.xlu0 %v1792, 64
        %v2073 = vpop.permute.xlu0 %2072
        %v2075 = vsel %vm650, %v2071, 0
        %v2078 = vsel %vm666, %v2073, 0
        %2080 = vmatprep.subr.bf16.mxu0 0
        %2081 = vmatpush1.bf16.msra.mxu0 %v2078
        %2082 = vmatprep.subr.bf16.mxu0 0
        %2083 = vmatpush1.bf16.msra.mxu0 0
        %2084 = vmatprep.subr.bf16.mxu0 0
        %2085 = vmatpush1.bf16.msra.mxu0 0
        %2086 = vmatprep.subr.bf16.mxu0 0
        %2087 = vmatpush1.bf16.msra.mxu0 0
        %2088 = vmatprep.subr.bf16.mxu0 0
        %2089 = vmatpush1.bf16.msra.mxu0 0
        %2090 = vmatprep.subr.bf16.mxu0 0
        %2091 = vmatpush1.bf16.msra.mxu0 0
        %2092 = vmatprep.subr.bf16.mxu0 0
        %2093 = vmatpush1.bf16.msra.mxu0 0
        %2094 = vmatprep.subr.bf16.mxu0 0
        %2095 = vmatpush1.bf16.msra.mxu0 0
        %2096 = vmatprep.subr.bf16.mxu0 0
        %2097 = vmatpush1.bf16.msra.mxu0 0
        %2098 = vmatprep.subr.bf16.mxu0 0
        %2099 = vmatpush1.bf16.msra.mxu0 0
        %2100 = vmatprep.subr.bf16.mxu0 0
        %2101 = vmatpush1.bf16.msra.mxu0 0
        %2102 = vmatprep.subr.bf16.mxu0 0
        %2103 = vmatpush1.bf16.msra.mxu0 0
        %2104 = vmatprep.subr.bf16.mxu0 0
        %2105 = vmatpush1.bf16.msra.mxu0 0
        %2106 = vmatprep.subr.bf16.mxu0 0
        %2107 = vmatpush1.bf16.msra.mxu0 0
        %2108 = vmatprep.subr.bf16.mxu0 0
        %2109 = vmatpush1.bf16.msra.mxu0 0
        %2110 = vmatprep.subr.bf16.mxu0 0
        %2111 = vmatpush1.bf16.msra.mxu0 0
        %2112 = vmatprep.mubr.bf16.mxu0 0
        %2113 = vmatmul.mubr.bf16.gmra.mrb[0].mxu0 %v2075
        %v2114 = vpop.f32.mrb[0].mxu0
        %v2115 = vadd.f32 0.0, %v2114
        %v2116 = vpop.f32.mrb[0].mxu0
        %v2117 = vpop.f32.mrb[0].mxu0
        %v2118 = vpop.f32.mrb[0].mxu0
        %2119 = vdwg.mxu0
        %2120 = vrot.lane.b32.xlu0 %v1778, 32
        %v2121 = vpop.permute.xlu0 %2120
        %2122 = vrot.lane.b32.xlu0 %v1785, 32
        %v2123 = vpop.permute.xlu0 %2122
        %v2125 = vsel %vm603, %v2121, 0
        %v2128 = vsel %vm603, %v2123, 0
        %2130 = vmatprep.subr.bf16.mxu0 0
        %2131 = vmatpush1.bf16.xpose.msra.mxu0 %v2128
        %2132 = vmatprep.subr.bf16.mxu0 0
        %2133 = vmatpush1.bf16.xpose.msra.mxu0 0
        %2134 = vmatprep.subr.bf16.mxu0 0
        %2135 = vmatpush1.bf16.xpose.msra.mxu0 0
        %2136 = vmatprep.subr.bf16.mxu0 0
        %2137 = vmatpush1.bf16.xpose.msra.mxu0 0
        %2138 = vmatprep.subr.bf16.mxu0 0
        %2139 = vmatpush1.bf16.xpose.msra.mxu0 0
        %2140 = vmatprep.subr.bf16.mxu0 0
        %2141 = vmatpush1.bf16.xpose.msra.mxu0 0
        %2142 = vmatprep.subr.bf16.mxu0 0
        %2143 = vmatpush1.bf16.xpose.msra.mxu0 0
        %2144 = vmatprep.subr.bf16.mxu0 0
        %2145 = vmatpush1.bf16.xpose.msra.mxu0 0
        %2146 = vmatprep.subr.bf16.mxu0 0
        %2147 = vmatpush1.bf16.xpose.msra.mxu0 0
        %2148 = vmatprep.subr.bf16.mxu0 0
        %2149 = vmatpush1.bf16.xpose.msra.mxu0 0
        %2150 = vmatprep.subr.bf16.mxu0 0
        %2151 = vmatpush1.bf16.xpose.msra.mxu0 0
        %2152 = vmatprep.subr.bf16.mxu0 0
        %2153 = vmatpush1.bf16.xpose.msra.mxu0 0
        %2154 = vmatprep.subr.bf16.mxu0 0
        %2155 = vmatpush1.bf16.xpose.msra.mxu0 0
        %2156 = vmatprep.subr.bf16.mxu0 0
        %2157 = vmatpush1.bf16.xpose.msra.mxu0 0
        %2158 = vmatprep.subr.bf16.mxu0 0
        %2159 = vmatpush1.bf16.xpose.msra.mxu0 0
        %2160 = vmatprep.subr.bf16.mxu0 0
        %2161 = vmatpush1.bf16.xpose.msra.mxu0 0
        %2162 = vmatprep.mubr.bf16.mxu0 0
        %2163 = vmatmul.mubr.bf16.gmra.mrb[0].mxu0 %v2125
        %v2164 = vpop.f32.mrb[0].mxu0
        %v2165 = vadd.f32 %v601, %v2164
        %v2166 = vpop.f32.mrb[0].mxu0
        %v2167 = vpop.f32.mrb[0].mxu0
        %v2168 = vpop.f32.mrb[0].mxu0
        %2169 = vdwg.mxu0
        %v2170 = vsel %vm650, %v2165, -inf
        %2171 = vmax.xlane.f32.xlu0 %v2170
        %v2172 = vpop.xlane.xlu0 %2171
        %v2173 = vsub.f32 %v2165, %v2172
        %v2174 = vmul.f32 %v2173, 1.442695
        %v2175 = vpow.pop %v2174
        %v2176 = vsel %vm650, %v2175, 0.0
        %2177 = vadd.xlane.f32.xlu0 %v2176
        %v2178 = vpop.xlane.xlu0 %2177
        %v2179 = vrcp.pop %v2178
        %v2180 = vmul.f32 %v2175, %v2179
        %v2181 = vpack.c.bf16 %v2180, %v2180
        %2182 = vrot.lane.b32.xlu0 %v1792, 32
        %v2183 = vpop.permute.xlu0 %2182
        %v2185 = vsel %vm650, %v2181, 0
        %v2188 = vsel %vm666, %v2183, 0
        %2190 = vmatprep.subr.bf16.mxu0 0
        %2191 = vmatpush1.bf16.msra.mxu0 %v2188
        %2192 = vmatprep.subr.bf16.mxu0 0
        %2193 = vmatpush1.bf16.msra.mxu0 0
        %2194 = vmatprep.subr.bf16.mxu0 0
        %2195 = vmatpush1.bf16.msra.mxu0 0
        %2196 = vmatprep.subr.bf16.mxu0 0
        %2197 = vmatpush1.bf16.msra.mxu0 0
        %2198 = vmatprep.subr.bf16.mxu0 0
        %2199 = vmatpush1.bf16.msra.mxu0 0
        %2200 = vmatprep.subr.bf16.mxu0 0
        %2201 = vmatpush1.bf16.msra.mxu0 0
        %2202 = vmatprep.subr.bf16.mxu0 0
        %2203 = vmatpush1.bf16.msra.mxu0 0
        %2204 = vmatprep.subr.bf16.mxu0 0
        %2205 = vmatpush1.bf16.msra.mxu0 0
        %2206 = vmatprep.subr.bf16.mxu0 0
        %2207 = vmatpush1.bf16.msra.mxu0 0
        %2208 = vmatprep.subr.bf16.mxu0 0
        %2209 = vmatpush1.bf16.msra.mxu0 0
        %2210 = vmatprep.subr.bf16.mxu0 0
        %2211 = vmatpush1.bf16.msra.mxu0 0
        %2212 = vmatprep.subr.bf16.mxu0 0
        %2213 = vmatpush1.bf16.msra.mxu0 0
        %2214 = vmatprep.subr.bf16.mxu0 0
        %2215 = vmatpush1.bf16.msra.mxu0 0
        %2216 = vmatprep.subr.bf16.mxu0 0
        %2217 = vmatpush1.bf16.msra.mxu0 0
        %2218 = vmatprep.subr.bf16.mxu0 0
        %2219 = vmatpush1.bf16.msra.mxu0 0
        %2220 = vmatprep.subr.bf16.mxu0 0
        %2221 = vmatpush1.bf16.msra.mxu0 0
        %2222 = vmatprep.mubr.bf16.mxu0 0
        %2223 = vmatmul.mubr.bf16.gmra.mrb[0].mxu0 %v2185
        %v2224 = vpop.f32.mrb[0].mxu0
        %v2225 = vadd.f32 0.0, %v2224
        %v2226 = vpop.f32.mrb[0].mxu0
        %v2227 = vpop.f32.mrb[0].mxu0
        %v2228 = vpop.f32.mrb[0].mxu0
        %2229 = vdwg.mxu0
        %2231 = vrot.lane.b32.xlu0 %v2005, 32
        %v2232 = vpop.permute.xlu0 %2231
        %2235 = vrot.lane.b32.xlu0 %v2115, 64
        %v2236 = vpop.permute.xlu0 %2235
        %2239 = vrot.lane.b32.xlu0 %v2225, 96
        %v2240 = vpop.permute.xlu0 %2239
        %v2242 = vsel %vm603, %v1892, %v2232
        %v2243 = vsel %vm1056, %v2242, %v2236
        %v2244 = vsel %vm1058, %v2243, %v2240
        %v2245 = vpack.c.bf16 %v2244, %v2244
        %v2246 = vld [vmem:[%s4 + $0xe] sm:$0x1]
        %v2247 = vlaneseq
        %v2248 = vshrl.u32 %v2247, 7
        %v2249 = vsub.s32 0, %v2248
        %v2250 = vrot.slane %v2246, %v2249
        %v2251 = vunpack.c.h.b16 %v1515
        %v2252 = vunpack.c.h.b16 %v1518
        %v2253 = vunpack.c.h.b16 %v1521
        %v2254 = vunpack.c.h.b16 %v1524
        %v2255 = vunpack.c.h.b16 %v1527
        %v2256 = vunpack.c.h.b16 %v1530
        %v2257 = vunpack.c.h.b16 %v1533
        %v2258 = vunpack.c.h.b16 %v1536
        %v2259 = vunpack.c.h.b16 %v1539
        %v2260 = vunpack.c.h.b16 %v1542
        %v2261 = vunpack.c.h.b16 %v1545
        %v2262 = vunpack.c.h.b16 %v1548
        %v2263 = vunpack.c.h.b16 %v1551
        %v2264 = vunpack.c.h.b16 %v1554
        %v2265 = vunpack.c.h.b16 %v1557
        %v2266 = vunpack.c.h.b16 %v1560
        %v2267 = vpack.c.b16 %v2252, %v2251
        %v2268 = vpack.c.b16 %v2254, %v2253
        %v2269 = vpack.c.b16 %v2256, %v2255
        %v2270 = vpack.c.b16 %v2258, %v2257
        %v2271 = vpack.c.b16 %v2260, %v2259
        %v2272 = vpack.c.b16 %v2262, %v2261
        %v2273 = vpack.c.b16 %v2264, %v2263
        %v2274 = vpack.c.b16 %v2266, %v2265
        %2283 = vmatprep.subr.bf16.mxu0 0
        %2284 = vmatpush1.bf16.msra.mxu0 %v2267
        %2285 = vmatprep.subr.bf16.mxu0 0
        %2286 = vmatpush1.bf16.msra.mxu0 %v2268
        %2287 = vmatprep.subr.bf16.mxu0 0
        %2288 = vmatpush1.bf16.msra.mxu0 %v2269
        %2289 = vmatprep.subr.bf16.mxu0 0
        %2290 = vmatpush1.bf16.msra.mxu0 %v2270
        %2291 = vmatprep.subr.bf16.mxu0 0
        %2292 = vmatpush1.bf16.msra.mxu0 %v2271
        %2293 = vmatprep.subr.bf16.mxu0 0
        %2294 = vmatpush1.bf16.msra.mxu0 %v2272
        %2295 = vmatprep.subr.bf16.mxu0 0
        %2296 = vmatpush1.bf16.msra.mxu0 %v2273
        %2297 = vmatprep.subr.bf16.mxu0 0
        %2298 = vmatpush1.bf16.msra.mxu0 %v2274
        %2299 = vmatprep.subr.bf16.mxu0 0
        %2300 = vmatpush1.bf16.msra.mxu0 0
        %2301 = vmatprep.subr.bf16.mxu0 0
        %2302 = vmatpush1.bf16.msra.mxu0 0
        %2303 = vmatprep.subr.bf16.mxu0 0
        %2304 = vmatpush1.bf16.msra.mxu0 0
        %2305 = vmatprep.subr.bf16.mxu0 0
        %2306 = vmatpush1.bf16.msra.mxu0 0
        %2307 = vmatprep.subr.bf16.mxu0 0
        %2308 = vmatpush1.bf16.msra.mxu0 0
        %2309 = vmatprep.subr.bf16.mxu0 0
        %2310 = vmatpush1.bf16.msra.mxu0 0
        %2311 = vmatprep.subr.bf16.mxu0 0
        %2312 = vmatpush1.bf16.msra.mxu0 0
        %2313 = vmatprep.subr.bf16.mxu0 0
        %2314 = vmatpush1.bf16.msra.mxu0 0
        %2315 = vmatprep.mubr.bf16.mxu0 0
        %2316 = vmatmul.mubr.bf16.gmra.mrb[0].mxu0 %v2245
        %v2317 = vpop.f32.mrb[0].mxu0
        %v2318 = vadd.f32 %v2250, %v2317
        %v2319 = vpop.f32.mrb[0].mxu0
        %v2320 = vpop.f32.mrb[0].mxu0
        %v2321 = vpop.f32.mrb[0].mxu0
        %2322 = vdwg.mxu0
        %v2323 = vadd.f32 %v2318, %v1512
        %v2324 = vld [vmem:[%s4 + $0xf] sm:$0x1]
        %v2325 = vld [vmem:[%s4 + $0x10] sm:$0x1]
        %2326 = vadd.xlane.f32.xlu0 %v2323
        %v2327 = vpop.xlane.xlu0 %2326
        %v2328 = vmul.f32 %v2327, %v297
        %v2329 = vsub.f32 %v2323, %v2328
        %v2330 = vmul.f32 %v2329, %v2329
        %2331 = vadd.xlane.f32.xlu0 %v2330
        %v2332 = vpop.xlane.xlu0 %2331
        %v2333 = vmul.f32 %v2332, %v297
        %v2334 = vadd.f32 %v2333, 1e-12
        %v2335 = vrsqrt.pop %v2334
        %v2336 = vmul.f32 %v2329, %v2335
        %v2337 = vlaneseq
        %v2338 = vshrl.u32 %v2337, 7
        %v2339 = vsub.s32 0, %v2338
        %v2340 = vrot.slane %v2324, %v2339
        %v2341 = vmul.f32 %v2336, %v2340
        %v2342 = vlaneseq
        %v2343 = vshrl.u32 %v2342, 7
        %v2344 = vsub.s32 0, %v2343
        %v2345 = vrot.slane %v2325, %v2344
        %v2346 = vadd.f32 %v2341, %v2345
        %v2347 = vpack.c.bf16 %v2346, %v2346
        %s2348 = scalar_lea.vmem %s5, 2
        %v2349 = vld [vmem:[%s2348] sm:$0x3]
        %v2351 = vlaneseq
        %v2352 = vshrl.u32 %v2351, 7
        %v2353 = vsub.s32 0, %v2352
        %v2354 = vrot.slane %v2349, %v2353
        %v2355 = vlaneseq
        %v2356 = vshrl.u32 %v2355, 7
        %v2357 = vsub.s32 1, %v2356
        %v2358 = vrot.slane %v2349, %v2357
        %v2377 = vunpack.c.l.b16 %v1516
        %v2378 = vunpack.c.h.b16 %v1516
        %v2379 = vunpack.c.l.b16 %v1519
        %v2380 = vunpack.c.h.b16 %v1519
        %v2381 = vunpack.c.l.b16 %v1522
        %v2382 = vunpack.c.h.b16 %v1522
        %v2383 = vunpack.c.l.b16 %v1525
        %v2384 = vunpack.c.h.b16 %v1525
        %v2385 = vunpack.c.l.b16 %v1528
        %v2386 = vunpack.c.h.b16 %v1528
        %v2387 = vunpack.c.l.b16 %v1531
        %v2388 = vunpack.c.h.b16 %v1531
        %v2389 = vunpack.c.l.b16 %v1534
        %v2390 = vunpack.c.h.b16 %v1534
        %v2391 = vunpack.c.l.b16 %v1537
        %v2392 = vunpack.c.h.b16 %v1537
        %v2393 = vunpack.c.l.b16 %v1540
        %v2394 = vunpack.c.h.b16 %v1540
        %v2395 = vunpack.c.l.b16 %v1543
        %v2396 = vunpack.c.h.b16 %v1543
        %v2397 = vunpack.c.l.b16 %v1546
        %v2398 = vunpack.c.h.b16 %v1546
        %v2399 = vunpack.c.l.b16 %v1549
        %v2400 = vunpack.c.h.b16 %v1549
        %v2401 = vunpack.c.l.b16 %v1552
        %v2402 = vunpack.c.h.b16 %v1552
        %v2403 = vunpack.c.l.b16 %v1555
        %v2404 = vunpack.c.h.b16 %v1555
        %v2405 = vunpack.c.l.b16 %v1558
        %v2406 = vunpack.c.h.b16 %v1558
        %v2407 = vunpack.c.l.b16 %v1561
        %v2408 = vunpack.c.h.b16 %v1561
        %v2409 = vpack.c.b16 %v2379, %v2377
        %v2410 = vpack.c.b16 %v2380, %v2378
        %v2411 = vpack.c.b16 %v2383, %v2381
        %v2412 = vpack.c.b16 %v2384, %v2382
        %v2413 = vpack.c.b16 %v2387, %v2385
        %v2414 = vpack.c.b16 %v2388, %v2386
        %v2415 = vpack.c.b16 %v2391, %v2389
        %v2416 = vpack.c.b16 %v2392, %v2390
        %v2417 = vpack.c.b16 %v2395, %v2393
        %v2418 = vpack.c.b16 %v2396, %v2394
        %v2419 = vpack.c.b16 %v2399, %v2397
        %v2420 = vpack.c.b16 %v2400, %v2398
        %v2421 = vpack.c.b16 %v2403, %v2401
        %v2422 = vpack.c.b16 %v2404, %v2402
        %v2423 = vpack.c.b16 %v2407, %v2405
        %v2424 = vpack.c.b16 %v2408, %v2406
        %2441 = vmatprep.subr.bf16.mxu0 %v2410
        %2442 = vmatpush1.bf16.msra.mxu0 %v2409
        %2443 = vmatprep.subr.bf16.mxu0 %v2412
        %2444 = vmatpush1.bf16.msra.mxu0 %v2411
        %2445 = vmatprep.subr.bf16.mxu0 %v2414
        %2446 = vmatpush1.bf16.msra.mxu0 %v2413
        %2447 = vmatprep.subr.bf16.mxu0 %v2416
        %2448 = vmatpush1.bf16.msra.mxu0 %v2415
        %2449 = vmatprep.subr.bf16.mxu0 %v2418
        %2450 = vmatpush1.bf16.msra.mxu0 %v2417
        %2451 = vmatprep.subr.bf16.mxu0 %v2420
        %2452 = vmatpush1.bf16.msra.mxu0 %v2419
        %2453 = vmatprep.subr.bf16.mxu0 %v2422
        %2454 = vmatpush1.bf16.msra.mxu0 %v2421
        %2455 = vmatprep.subr.bf16.mxu0 %v2424
        %2456 = vmatpush1.bf16.msra.mxu0 %v2423
        %2457 = vmatprep.subr.bf16.mxu0 0
        %2458 = vmatpush1.bf16.msra.mxu0 0
        %2459 = vmatprep.subr.bf16.mxu0 0
        %2460 = vmatpush1.bf16.msra.mxu0 0
        %2461 = vmatprep.subr.bf16.mxu0 0
        %2462 = vmatpush1.bf16.msra.mxu0 0
        %2463 = vmatprep.subr.bf16.mxu0 0
        %2464 = vmatpush1.bf16.msra.mxu0 0
        %2465 = vmatprep.subr.bf16.mxu0 0
        %2466 = vmatpush1.bf16.msra.mxu0 0
        %2467 = vmatprep.subr.bf16.mxu0 0
        %2468 = vmatpush1.bf16.msra.mxu0 0
        %2469 = vmatprep.subr.bf16.mxu0 0
        %2470 = vmatpush1.bf16.msra.mxu0 0
        %2471 = vmatprep.subr.bf16.mxu0 0
        %2472 = vmatpush1.bf16.msra.mxu0 0
        %2473 = vmatprep.mubr.bf16.mxu0 0
        %2474 = vmatmul.mubr.bf16.gmra.mrb[0].mxu0 %v2347
        %v2475 = vpop.f32.mrb[0].mxu0
        %v2476 = vadd.f32 %v2354, %v2475
        %v2477 = vpop.f32.mrb[0].mxu0
        %v2478 = vadd.f32 %v2358, %v2477
        %v2479 = vpop.f32.mrb[0].mxu0
        %v2480 = vpop.f32.mrb[0].mxu0
        %2481 = vdwg.mxu0
        %v2482 = vmul.f32 %v2476, 0.5
        %v2483 = vmul.f32 %v2478, 0.5
        %v2484 = vmul.f32 %v2476, 0.044715
        %v2485 = vmul.f32 %v2478, 0.044715
        %v2486 = vmul.f32 %v2484, %v2476
        %v2487 = vmul.f32 %v2485, %v2478
        %v2488 = vmul.f32 %v2486, %v2476
        %v2489 = vmul.f32 %v2487, %v2478
        %v2490 = vadd.f32 %v2476, %v2488
        %v2491 = vadd.f32 %v2478, %v2489
        %v2492 = vmul.f32 %v2490, 0.7978846
        %v2493 = vmul.f32 %v2491, 0.7978846
        %v2494 = vtanh.pop %v2492
        %v2495 = vtanh.pop %v2493
        %v2496 = vadd.f32 %v2494, 1.0
        %v2497 = vadd.f32 %v2495, 1.0
        %v2498 = vmul.f32 %v2482, %v2496
        %v2499 = vmul.f32 %v2483, %v2497
        %s2500 = scalar_lea.vmem [#allocation5], 128
        %v2501 = vld [vmem:[%s2500] sm:$0xf]
        %v2502 = vld [vmem:[%s2500 + $0x4] sm:$0xf]
        %v2503 = vld [vmem:[%s2500 + $0x8] sm:$0xf]
        %v2504 = vld [vmem:[%s2500 + $0xc] sm:$0xf]
        %v2505 = vld [vmem:[%s2500 + $0x10] sm:$0xf]
        %v2506 = vld [vmem:[%s2500 + $0x14] sm:$0xf]
        %v2507 = vld [vmem:[%s2500 + $0x18] sm:$0xf]
        %v2508 = vld [vmem:[%s2500 + $0x1c] sm:$0xf]
        %v2509 = vld [vmem:[%s2500 + $0x20] sm:$0xf]
        %v2510 = vld [vmem:[%s2500 + $0x24] sm:$0xf]
        %v2511 = vld [vmem:[%s2500 + $0x28] sm:$0xf]
        %v2512 = vld [vmem:[%s2500 + $0x2c] sm:$0xf]
        %v2513 = vld [vmem:[%s2500 + $0x30] sm:$0xf]
        %v2514 = vld [vmem:[%s2500 + $0x34] sm:$0xf]
        %v2515 = vld [vmem:[%s2500 + $0x38] sm:$0xf]
        %v2516 = vld [vmem:[%s2500 + $0x3c] sm:$0xf]
        %v2517 = vld [vmem:[%s2500 + $0x40] sm:$0xf]
        %v2518 = vld [vmem:[%s2500 + $0x44] sm:$0xf]
        %v2519 = vld [vmem:[%s2500 + $0x48] sm:$0xf]
        %v2520 = vld [vmem:[%s2500 + $0x4c] sm:$0xf]
        %v2521 = vld [vmem:[%s2500 + $0x50] sm:$0xf]
        %v2522 = vld [vmem:[%s2500 + $0x54] sm:$0xf]
        %v2523 = vld [vmem:[%s2500 + $0x58] sm:$0xf]
        %v2524 = vld [vmem:[%s2500 + $0x5c] sm:$0xf]
        %v2525 = vld [vmem:[%s2500 + $0x60] sm:$0xf]
        %v2526 = vld [vmem:[%s2500 + $0x64] sm:$0xf]
        %v2527 = vld [vmem:[%s2500 + $0x68] sm:$0xf]
        %v2528 = vld [vmem:[%s2500 + $0x6c] sm:$0xf]
        %v2529 = vld [vmem:[%s2500 + $0x70] sm:$0xf]
        %v2530 = vld [vmem:[%s2500 + $0x74] sm:$0xf]
        %v2531 = vld [vmem:[%s2500 + $0x78] sm:$0xf]
        %v2532 = vld [vmem:[%s2500 + $0x7c] sm:$0xf]
        %v2533 = vpack.c.bf16 %v2498, %v2498
        %v2534 = vpack.c.bf16 %v2499, %v2499
        %v2535 = vld [vmem:[%s4 + $0x11] sm:$0x1]
        %v2536 = vlaneseq
        %v2537 = vshrl.u32 %v2536, 7
        %v2538 = vsub.s32 0, %v2537
        %v2539 = vrot.slane %v2535, %v2538
        %v2572 = vunpack.c.l.b16 %v2501
        %v2573 = vunpack.c.l.b16 %v2502
        %v2574 = vunpack.c.l.b16 %v2503
        %v2575 = vunpack.c.l.b16 %v2504
        %v2576 = vunpack.c.l.b16 %v2505
        %v2577 = vunpack.c.l.b16 %v2506
        %v2578 = vunpack.c.l.b16 %v2507
        %v2579 = vunpack.c.l.b16 %v2508
        %v2580 = vunpack.c.l.b16 %v2509
        %v2581 = vunpack.c.l.b16 %v2510
        %v2582 = vunpack.c.l.b16 %v2511
        %v2583 = vunpack.c.l.b16 %v2512
        %v2584 = vunpack.c.l.b16 %v2513
        %v2585 = vunpack.c.l.b16 %v2514
        %v2586 = vunpack.c.l.b16 %v2515
        %v2587 = vunpack.c.l.b16 %v2516
        %v2588 = vunpack.c.l.b16 %v2517
        %v2589 = vunpack.c.l.b16 %v2518
        %v2590 = vunpack.c.l.b16 %v2519
        %v2591 = vunpack.c.l.b16 %v2520
        %v2592 = vunpack.c.l.b16 %v2521
        %v2593 = vunpack.c.l.b16 %v2522
        %v2594 = vunpack.c.l.b16 %v2523
        %v2595 = vunpack.c.l.b16 %v2524
        %v2596 = vunpack.c.l.b16 %v2525
        %v2597 = vunpack.c.l.b16 %v2526
        %v2598 = vunpack.c.l.b16 %v2527
        %v2599 = vunpack.c.l.b16 %v2528
        %v2600 = vunpack.c.l.b16 %v2529
        %v2601 = vunpack.c.l.b16 %v2530
        %v2602 = vunpack.c.l.b16 %v2531
        %v2603 = vunpack.c.l.b16 %v2532
        %v2604 = vpack.c.b16 %v2573, %v2572
        %v2605 = vpack.c.b16 %v2575, %v2574
        %v2606 = vpack.c.b16 %v2577, %v2576
        %v2607 = vpack.c.b16 %v2579, %v2578
        %v2608 = vpack.c.b16 %v2581, %v2580
        %v2609 = vpack.c.b16 %v2583, %v2582
        %v2610 = vpack.c.b16 %v2585, %v2584
        %v2611 = vpack.c.b16 %v2587, %v2586
        %v2612 = vpack.c.b16 %v2589, %v2588
        %v2613 = vpack.c.b16 %v2591, %v2590
        %v2614 = vpack.c.b16 %v2593, %v2592
        %v2615 = vpack.c.b16 %v2595, %v2594
        %v2616 = vpack.c.b16 %v2597, %v2596
        %v2617 = vpack.c.b16 %v2599, %v2598
        %v2618 = vpack.c.b16 %v2601, %v2600
        %v2619 = vpack.c.b16 %v2603, %v2602
        %2636 = vmatprep.subr.bf16.mxu0 0
        %2637 = vmatpush1.bf16.msra.mxu0 %v2604
        %2638 = vmatprep.subr.bf16.mxu0 0
        %2639 = vmatpush1.bf16.msra.mxu0 %v2605
        %2640 = vmatprep.subr.bf16.mxu0 0
        %2641 = vmatpush1.bf16.msra.mxu0 %v2606
        %2642 = vmatprep.subr.bf16.mxu0 0
        %2643 = vmatpush1.bf16.msra.mxu0 %v2607
        %2644 = vmatprep.subr.bf16.mxu0 0
        %2645 = vmatpush1.bf16.msra.mxu0 %v2608
        %2646 = vmatprep.subr.bf16.mxu0 0
        %2647 = vmatpush1.bf16.msra.mxu0 %v2609
        %2648 = vmatprep.subr.bf16.mxu0 0
        %2649 = vmatpush1.bf16.msra.mxu0 %v2610
        %2650 = vmatprep.subr.bf16.mxu0 0
        %2651 = vmatpush1.bf16.msra.mxu0 %v2611
        %2652 = vmatprep.subr.bf16.mxu0 0
        %2653 = vmatpush1.bf16.msra.mxu0 %v2612
        %2654 = vmatprep.subr.bf16.mxu0 0
        %2655 = vmatpush1.bf16.msra.mxu0 %v2613
        %2656 = vmatprep.subr.bf16.mxu0 0
        %2657 = vmatpush1.bf16.msra.mxu0 %v2614
        %2658 = vmatprep.subr.bf16.mxu0 0
        %2659 = vmatpush1.bf16.msra.mxu0 %v2615
        %2660 = vmatprep.subr.bf16.mxu0 0
        %2661 = vmatpush1.bf16.msra.mxu0 %v2616
        %2662 = vmatprep.subr.bf16.mxu0 0
        %2663 = vmatpush1.bf16.msra.mxu0 %v2617
        %2664 = vmatprep.subr.bf16.mxu0 0
        %2665 = vmatpush1.bf16.msra.mxu0 %v2618
        %2666 = vmatprep.subr.bf16.mxu0 0
        %2667 = vmatpush1.bf16.msra.mxu0 %v2619
        %2668 = vmatprep.mubr.bf16.mxu0 %v2534
        %2669 = vmatmul.mubr.bf16.gmra.mrb[0].mxu0 %v2533
        %v2670 = vpop.f32.mrb[0].mxu0
        %v2671 = vadd.f32 %v2539, %v2670
        %v2672 = vpop.f32.mrb[0].mxu0
        %v2673 = vpop.f32.mrb[0].mxu0
        %v2674 = vpop.f32.mrb[0].mxu0
        %2675 = vdwg.mxu0
        %v2676 = vadd.f32 %v2671, %v2346
        %v2677 = vld [vmem:[%s4 + $0x12] sm:$0x1]
        %v2678 = vld [vmem:[%s4 + $0x13] sm:$0x1]
        %2679 = vadd.xlane.f32.xlu0 %v2676
        %v2680 = vpop.xlane.xlu0 %2679
        %v2681 = vmul.f32 %v2680, %v297
        %v2682 = vsub.f32 %v2676, %v2681
        %v2683 = vmul.f32 %v2682, %v2682
        %2684 = vadd.xlane.f32.xlu0 %v2683
        %v2685 = vpop.xlane.xlu0 %2684
        %v2686 = vmul.f32 %v2685, %v297
        %v2687 = vadd.f32 %v2686, 1e-12
        %v2688 = vrsqrt.pop %v2687
        %v2689 = vmul.f32 %v2682, %v2688
        %v2690 = vlaneseq
        %v2691 = vshrl.u32 %v2690, 7
        %v2692 = vsub.s32 0, %v2691
        %v2693 = vrot.slane %v2677, %v2692
        %v2694 = vmul.f32 %v2689, %v2693
        %v2695 = vlaneseq
        %v2696 = vshrl.u32 %v2695, 7
        %v2697 = vsub.s32 0, %v2696
        %v2698 = vrot.slane %v2678, %v2697
        %v2699 = vadd.f32 %v2694, %v2698
        %2700 = vst [vmem:[%s283] sm:$0xff] %v2699
        %s2701 = sand.u32 %s166, 1
        %s2702 = scalar_lea.sflag [#allocation4], %s2701
        %s2703 = sand.u32 %s166, 1
        %s2704 = smul.addr %s2703, 8
        %s2705 = scalar_lea.vmem [#allocation7], %s2704
        // Predicated region
        $region53: #{bert_tuned_encoder_forward.1} parent=43 // pred_check
          %p2706 = pneg %p176
        $region54: #{bert_tuned_encoder_forward.1} parent=43 // pred_check_branch
          %2708 = sbr.rel (%p2706) target = $region56
        $region55: #{bert_tuned_encoder_forward.1} parent=43 // pred_region
          %s2710 = ssub.s32 128, 128
          %2711 = vsyncadd %s2702, %s2710
          %s2712 = smul.addr %s22, 128
          %s2713 = scalar_lea.hbm %s6, %s2712
          %s2715 = sshll.u32 %s2705, 4
          %s2716 = int_to_ptr.vmem [resolvable:$true] %s2715
          %2718 = dma.vmem_to_hbm [thread:$0]  %s2716, 128, %s2713, %s2702
        $region56: #{bert_tuned_encoder_forward.1} parent=43 // pred_fallthru
          _
      $region44: #{bert_tuned_encoder_forward.1} parent=5 // pred_fallthru
        _
      %p2719 = scmp.le.s32.totalorder 2, %s17
      // Predicated region
      $region57: #{bert_tuned_encoder_forward.1} parent=5 // pred_check
        %p2720 = pneg %p2719
      $region58: #{bert_tuned_encoder_forward.1} parent=5 // pred_check_branch
        %2722 = sbr.rel (%p2720) target = $region60
      $region59: #{bert_tuned_encoder_forward.1} parent=5 // pred_region
        %s2723 = ssub.s32 %s17, 2
        // Predicated region
        $region61: #{bert_tuned_encoder_forward.1} parent=59 // pred_check
          %p2724 = pneg %p182
        $region62: #{bert_tuned_encoder_forward.1} parent=59 // pred_check_branch
          %2726 = sbr.rel (%p2724) target = $region64
        $region63: #{bert_tuned_encoder_forward.1} parent=59 // pred_region
          %s2727 = sand.u32 %s167, 1
          %s2728 = scalar_lea.sflag [#allocation4], %s2727
          %s2729 = sand.u32 %s167, 1
          %s2730 = smul.addr %s2729, 8
          %s2731 = scalar_lea.vmem [#allocation7], %s2730
          %2732 = dma.done %s2728, 128
        $region64: #{bert_tuned_encoder_forward.1} parent=59 // pred_fallthru
          _
      $region60: #{bert_tuned_encoder_forward.1} parent=5 // pred_fallthru
        _
    $region6: #{bert_tuned_encoder_forward.1} parent=1 // loop_footer
      %s21 = sadd.s32 1, %s17
    $region7: #{bert_tuned_encoder_forward.1} parent=1 // loop_footer_branch
      %16 = sbr.rel target = $region3
    $region8: #{bert_tuned_encoder_forward.1} parent=1 // loop_exit
      _
    %2733 = vsyncpa [#allocation3], 1
    %s2734 = scalar_lea.sflag [#allocation3], 1
    %2735 = vsyncpa %s2734, 1
    %2736 = vsyncpa [#allocation6], 1
    %2737 = vsyncpa [#allocation4], 1
    %s2738 = scalar_lea.sflag [#allocation4], 1
    %2739 = vsyncpa %s2738, 1

</llo_original>
